<compile_context>
chip_gen: v5e
topology: v5e:2x2
jax: 0.10.0
libtpu: 0.0.40
codegen_flags: <defaults>
</compile_context>

<pallas_src>
import numpy as np

import jax
import jax.numpy as jnp
from jax.experimental import pallas as pl
from jax.experimental.pallas import tpu as pltpu

# ----------------------------------------------------------------------------
# Module constants / static geometry
# ----------------------------------------------------------------------------
KERNELS = {"small": 3, "medium": 5, "large": 9}
CHANNELS = {"small": 4, "medium": 8, "large": 16}
SIGNAL_LEN = 1024
MESSAGE_LEN = 8

STRIDES = [4, 8, 4]
KERNEL_SIZES = [KERNELS["large"], KERNELS["large"], KERNELS["medium"]]
OUT_CHANNELS = [CHANNELS["medium"], CHANNELS["large"], CHANNELS["small"]]


def conv_out_len(in_len, k, s):
    return (in_len - k) // s + 1


_CONV_GEOM = []
_len, _cin = SIGNAL_LEN, 1
for _oc, _k, _s in zip(OUT_CHANNELS, KERNEL_SIZES, STRIDES):
    _CONV_GEOM.append(dict(c_in=_cin, c_out=_oc, k=_k, s=_s, l_in=_len,
                           l_out=conv_out_len(_len, _k, _s)))
    _len, _cin = _CONV_GEOM[-1]["l_out"], _oc

FLAT_FEATURES = _len * _cin          # 7 * 4 = 28
HIDDEN = 8 * MESSAGE_LEN             # 64

# Sanity-check the static geometry the packed weights / kernel rely on.
assert (_CONV_GEOM[0]["c_out"], _CONV_GEOM[0]["l_out"],
        _CONV_GEOM[0]["k"], _CONV_GEOM[0]["s"]) == (8, 254, 9, 4)
assert (_CONV_GEOM[1]["c_out"], _CONV_GEOM[1]["l_out"],
        _CONV_GEOM[1]["k"], _CONV_GEOM[1]["s"]) == (16, 31, 9, 8)
assert (_CONV_GEOM[2]["c_out"], _CONV_GEOM[2]["l_out"],
        _CONV_GEOM[2]["k"], _CONV_GEOM[2]["s"]) == (4, 7, 5, 4)
assert FLAT_FEATURES == 28 and HIDDEN == 64

# Derived in-kernel layout constants (activations are (batch, L*C) with
# (position, channel) lane order -> every conv window is a contiguous slice).
_B_BLK_DEFAULT = 128      # batch rows per grid step (M of every matmul)
_G1 = 16                  # conv1 output positions per grouped banded matmul
_C1_IN_W = 4 * _G1 + 8    # 72  lanes of x consumed per conv1 group
_C1_OUT_W = 8 * _G1       # 128 lanes of y1 produced per conv1 group
_Y1_W = 16 * _C1_OUT_W    # 2048 (2032 valid + 16 zero-tail lanes, never read)
_C2_WIN = 9 * 8           # 72   = K2 * C1   (conv2 window width in lanes)
_C2_STRIDE = 8 * 8        # 64   = s2 * C1   (lane stride between conv2 outputs)
_Y2_W = 31 * 16           # 496
_C3_WIN = 5 * 16          # 80   = K3 * C2
_C3_STRIDE = 4 * 16       # 64   = s3 * C2
_Y3_W = 7 * 4             # 28


# ----------------------------------------------------------------------------
# Fused decoder kernel: 3 convs + ReLUs + 2 linears, B_BLK batch rows per step.
# ----------------------------------------------------------------------------
def _decoder_kernel(x_ref, w1a_ref, w1b_ref, b1_ref, w2_ref, w3_ref, bvec_ref,
                    wl1_ref, wl2_ref, bl2_ref, o_ref, y1_ref, y2_ref, y3_ref):
    f32 = jnp.float32

    def mm(a, b):                     # (M,K) @ (K,N)
        return jnp.dot(a, b, preferred_element_type=f32)

    def mm_nt(a, b):                  # (M,K) @ (N,K)^T  -> (M,N)
        return jax.lax.dot_general(a, b, (((1,), (1,)), ((), ())),
                                   preferred_element_type=f32)

    # Hoist small weight/bias loads out of the unrolled loops.
    w1a = w1a_ref[...]                # (72, 128) banded conv1 weight, 16 pos
    w1b = w1b_ref[...]                # (64, 128) banded conv1 weight, last grp
    b1 = b1_ref[...]                  # (1, 128)  conv1 bias tiled over 16 pos
    w2 = w2_ref[...]                  # (72, 16)
    w3 = w3_ref[...]                  # (80, 4)
    b2 = bvec_ref[:, 0:16]            # (1, 16)
    b3 = bvec_ref[:, 16:20]           # (1, 4)
    bl1 = bvec_ref[:, 20:84]          # (1, 64)

    # ---- conv1 + ReLU: 15 full groups of 16 output positions + 1 tail group.
    # Output y1 is (B, L1*C1) with (position, channel) lane order.
    for g in range(15):
        win = x_ref[:, 64 * g: 64 * g + _C1_IN_W]              # (B, 72)
        y1_ref[:, 128 * g: 128 * g + 128] = jnp.maximum(mm(win, w1a) + b1, 0.0)
    win = x_ref[:, 960:1024]                                    # (B, 64)
    # Last group: 14 valid positions; the final 16 lanes of y1 are never read.
    y1_ref[:, 1920:2048] = jnp.maximum(mm(win, w1b) + b1, 0.0)

    # ---- conv2 + ReLU: one exact (B,72)x(72,16) matmul per output position.
    for j in range(31):
        win = y1_ref[:, _C2_STRIDE * j: _C2_STRIDE * j + _C2_WIN]   # (B, 72)
        y2_ref[:, 16 * j: 16 * j + 16] = jnp.maximum(mm(win, w2) + b2, 0.0)

    # ---- conv3 + ReLU: one exact (B,80)x(80,4) matmul per output position.
    for j in range(7):
        win = y2_ref[:, _C3_STRIDE * j: _C3_STRIDE * j + _C3_WIN]   # (B, 80)
        y3_ref[:, 4 * j: 4 * j + 4] = jnp.maximum(mm(win, w3) + b3, 0.0)

    # ---- dense head: batch on M, flatten folded into the packed linear-1.
    y3 = y3_ref[...]                                            # (B, 28)
    hd = jnp.maximum(mm_nt(y3, wl1_ref[...]) + bl1, 0.0)        # (B, 64)
    # Final matmul emitted transposed -> (8, B): batch on lanes (dense stores).
    out_t = mm_nt(wl2_ref[...], hd) + bl2_ref[...]              # (8, B)
    o_ref[...] = out_t.astype(o_ref.dtype)


def _const_spec(shape):
    zeros = (0,) * len(shape)
    return pl.BlockSpec(shape, lambda b, _z=zeros: _z)


def _decoder_pallas(padded_batch, b_blk):
    grid = (padded_batch // b_blk,)
    in_specs = [
        pl.BlockSpec((b_blk, SIGNAL_LEN), lambda b: (b, 0)),    # x  (B, 1024)
        _const_spec((_C1_IN_W, _C1_OUT_W)),                     # w1a (72, 128)
        _const_spec((64, _C1_OUT_W)),                           # w1b (64, 128)
        _const_spec((1, _C1_OUT_W)),                            # b1 tiled
        _const_spec((_C2_WIN, 16)),                             # w2f (72, 16)
        _const_spec((_C3_WIN, 4)),                              # w3f (80, 4)
        _const_spec((1, 84)),                                   # b2|b3|bl1
        _const_spec((HIDDEN, FLAT_FEATURES)),                   # wl1 (64, 28)
        _const_spec((MESSAGE_LEN, HIDDEN)),                     # wl2 (8, 64)
        _const_spec((MESSAGE_LEN, 1)),                          # bl2 (8, 1)
    ]
    return pl.pallas_call(
        _decoder_kernel,
        out_shape=jax.ShapeDtypeStruct((MESSAGE_LEN, padded_batch), jnp.float32),
        grid=grid,
        in_specs=in_specs,
        out_specs=pl.BlockSpec((MESSAGE_LEN, b_blk), lambda b: (0, b)),
        scratch_shapes=[
            pltpu.VMEM((b_blk, _Y1_W), jnp.float32),   # conv1 activations
            pltpu.VMEM((b_blk, _Y2_W), jnp.float32),   # conv2 activations
            pltpu.VMEM((b_blk, _Y3_W), jnp.float32),   # conv3 activations
        ],
        compiler_params=pltpu.CompilerParams(
            dimension_semantics=("parallel",)),
    )


# ----------------------------------------------------------------------------
# Parameters: canonical (PyTorch-like) init + one-time packing for the kernel
# ----------------------------------------------------------------------------
def init_decoder_params(key, message_len):
    convs = []
    in_ch = 1
    for oc, ks, st in zip(OUT_CHANNELS, KERNEL_SIZES, STRIDES):
        key, kw, kb = jax.random.split(key, 3)
        w = jax.random.normal(kw, (oc, in_ch, ks), jnp.float32) * 0.1
        b = jax.random.normal(kb, (oc,), jnp.float32) * 0.1
        convs.append((w, b, st))
        in_ch = oc

    linears = []
    in_f = FLAT_FEATURES
    for of in [8 * message_len, message_len]:
        key, kw, kb = jax.random.split(key, 3)
        w = jax.random.normal(kw, (of, in_f), jnp.float32) * 0.05  # (out, in)
        b = jax.random.normal(kb, (of,), jnp.float32) * 0.05
        linears.append((w, b))
        in_f = of
    return {"convs": convs, "linears": linears}


def pack_params(params):
    """One-time host-side repack of weights into the kernel's layouts."""
    (w1, b1, _), (w2, b2, _), (w3, b3, _) = params["convs"]
    (lw1, lb1), (lw2, lb2) = params["linears"]
    w1, b1 = np.asarray(w1), np.asarray(b1)
    w2, b2 = np.asarray(w2), np.asarray(b2)
    w3, b3 = np.asarray(w3), np.asarray(b3)
    lw1, lb1 = np.asarray(lw1), np.asarray(lb1)
    lw2, lb2 = np.asarray(lw2), np.asarray(lb2)

    # Conv1: block-banded weight producing 16 consecutive output positions
    # (stride 4, kernel 9, C_in=1) per matmul, output in (pos, channel) order.
    k1 = w1[:, 0, :].T.astype(np.float32)                 # (K=9, C_out=8)
    w1a = np.zeros((_C1_IN_W, _C1_OUT_W), np.float32)     # (72, 128)
    for jj in range(16):
        w1a[4 * jj: 4 * jj + 9, 8 * jj: 8 * jj + 8] = k1
    w1b = np.zeros((64, _C1_OUT_W), np.float32)           # last group: 14 valid
    for jj in range(14):
        w1b[4 * jj: 4 * jj + 9, 8 * jj: 8 * jj + 8] = k1
    b1t = np.tile(b1.astype(np.float32), 16).reshape(1, _C1_OUT_W)

    # Conv2/conv3: tap-major flattened weights, row index = k*C_in + c_in.
    w2f = np.transpose(w2, (2, 1, 0)).reshape(_C2_WIN, 16).astype(np.float32)
    w3f = np.transpose(w3, (2, 1, 0)).reshape(_C3_WIN, 4).astype(np.float32)

    # Linear-1: permute columns from PyTorch's flatten order (c*7 + l) to the
    # kernel's (l*4 + c) activation order; kept (out, in) for an NT matmul.
    wl1 = lw1.reshape(HIDDEN, 4, 7).transpose(0, 2, 1).reshape(
        HIDDEN, FLAT_FEATURES).astype(np.float32)

    # Small bias rows consolidated into a single lane-dense row: [b2 | b3 | bl1].
    bvec = np.concatenate([b2, b3, lb1]).reshape(1, 84).astype(np.float32)

    return {
        "w1a": jnp.asarray(w1a), "w1b": jnp.asarray(w1b), "b1": jnp.asarray(b1t),
        "w2": jnp.asarray(w2f), "w3": jnp.asarray(w3f),
        "bvec": jnp.asarray(bvec),
        "wl1": jnp.asarray(wl1),
        "wl2": jnp.asarray(lw2.astype(np.float32)),
        "bl2": jnp.asarray(lb2.astype(np.float32).reshape(MESSAGE_LEN, 1)),
    }


# ----------------------------------------------------------------------------
# Forward pass (single fused Pallas kernel, jitted)
# ----------------------------------------------------------------------------
def _round_up(n, m):
    return ((n + m - 1) // m) * m


@jax.jit
def decoder_forward(packed, x):
    batch = x.shape[0]
    x2 = x.reshape(batch, SIGNAL_LEN).astype(jnp.float32)
    # Batch block: 128 rows per grid step (fills v5e MXU M; >=2 grid steps on
    # v7x for batch >= 256; v6e could push this higher).  Small batches use one
    # padded block.
    b_blk = _B_BLK_DEFAULT if batch >= _B_BLK_DEFAULT else _round_up(batch, 8)
    padded = _round_up(batch, b_blk)
    if padded != batch:
        x2 = jnp.pad(x2, ((0, padded - batch), (0, 0)))
    out_t = _decoder_pallas(padded, b_blk)(
        x2,
        packed["w1a"], packed["w1b"], packed["b1"],
        packed["w2"], packed["w3"], packed["bvec"],
        packed["wl1"], packed["wl2"], packed["bl2"],
    )
    # Kernel output is lane-dense (8, padded_batch); undo in the wrapper.
    return out_t.T[:batch]


# ----------------------------------------------------------------------------
# Pure-JAX reference (for correctness check)
# ----------------------------------------------------------------------------
def decoder_reference(params, x):
    h = x.reshape(x.shape[0], 1, SIGNAL_LEN)
    for w, b, s in params["convs"]:
        h = jax.lax.conv_general_dilated(
            h, w, window_strides=(s,), padding="VALID",
            dimension_numbers=("NCH", "OIH", "NCH"),
            precision=jax.lax.Precision.HIGHEST)
        h = jax.nn.relu(h + b[None, :, None])
    h = h.reshape(h.shape[0], -1)
    (w1, b1), (w2, b2) = params["linears"]
    h = jax.nn.relu(jnp.dot(h, w1.T, precision="highest") + b1)
    return jnp.dot(h, w2.T, precision="highest") + b2


if __name__ == "__main__":
    key = jax.random.PRNGKey(0)
    key, kx = jax.random.split(key)
    params = init_decoder_params(key, MESSAGE_LEN)
    packed = pack_params(params)

    # Small batch (single padded block) and a larger batch that exercises
    # batch padding plus a multi-step "parallel" grid.
    for batch in (2, 200):
        kx, kk = jax.random.split(kx)
        x = jax.random.normal(kk, (batch, 1, SIGNAL_LEN), jnp.float32)

        out = jax.block_until_ready(decoder_forward(packed, x))
        ref = jax.block_until_ready(decoder_reference(params, x))

        assert out.shape == (batch, MESSAGE_LEN), out.shape
        max_err = float(jnp.max(jnp.abs(out - ref)))
        assert jnp.allclose(out, ref, rtol=2e-4, atol=2e-4), max_err

    print("KERNEL_OK")
</pallas_src>

<mosaic_0001>
module attributes {stable_mosaic.version = 11 : i64} {
  func.func @_decoder_kernel(%arg0: i32, %arg1: memref<8x1024xf32, #tpu.memory_space<vmem>>, %arg2: memref<72x128xf32, #tpu.memory_space<vmem>>, %arg3: memref<64x128xf32, #tpu.memory_space<vmem>>, %arg4: memref<1x128xf32, #tpu.memory_space<vmem>>, %arg5: memref<72x16xf32, #tpu.memory_space<vmem>>, %arg6: memref<80x4xf32, #tpu.memory_space<vmem>>, %arg7: memref<1x84xf32, #tpu.memory_space<vmem>>, %arg8: memref<64x28xf32, #tpu.memory_space<vmem>>, %arg9: memref<8x64xf32, #tpu.memory_space<vmem>>, %arg10: memref<8x1xf32, #tpu.memory_space<vmem>>, %arg11: memref<8x8xf32, #tpu.memory_space<vmem>>, %arg12: memref<8x2048xf32, #tpu.memory_space<vmem>>, %arg13: memref<8x496xf32, #tpu.memory_space<vmem>>, %arg14: memref<8x28xf32, #tpu.memory_space<vmem>>) attributes {dimension_semantics = [#tpu.dimension_semantics<parallel>], iteration_bounds = array<i64: 1>, scalar_prefetch = 0 : i64, scratch_operands = 3 : i64, tpu.core_type = #tpu.core_type<tc>, window_params = [{transform_indices = @transform_0, window_bounds = array<i64: 8, 1024>}, {pipeline_mode = #tpu.pipeline_mode<synchronous>, transform_indices = @transform_1, window_bounds = array<i64: 72, 128>}, {pipeline_mode = #tpu.pipeline_mode<synchronous>, transform_indices = @transform_2, window_bounds = array<i64: 64, 128>}, {pipeline_mode = #tpu.pipeline_mode<synchronous>, transform_indices = @transform_3, window_bounds = array<i64: 1, 128>}, {pipeline_mode = #tpu.pipeline_mode<synchronous>, transform_indices = @transform_4, window_bounds = array<i64: 72, 16>}, {pipeline_mode = #tpu.pipeline_mode<synchronous>, transform_indices = @transform_5, window_bounds = array<i64: 80, 4>}, {pipeline_mode = #tpu.pipeline_mode<synchronous>, transform_indices = @transform_6, window_bounds = array<i64: 1, 84>}, {pipeline_mode = #tpu.pipeline_mode<synchronous>, transform_indices = @transform_7, window_bounds = array<i64: 64, 28>}, {pipeline_mode = #tpu.pipeline_mode<synchronous>, transform_indices = @transform_8, window_bounds = array<i64: 8, 64>}, {pipeline_mode = #tpu.pipeline_mode<synchronous>, transform_indices = @transform_9, window_bounds = array<i64: 8, 1>}, {transform_indices = @transform_10, window_bounds = array<i64: 8, 8>}]} {
    %c0 = arith.constant 0 : index
    %c0_0 = arith.constant 0 : index
    %0 = vector.load %arg2[%c0, %c0_0] : memref<72x128xf32, #tpu.memory_space<vmem>>, vector<72x128xf32>
    %c0_1 = arith.constant 0 : index
    %c0_2 = arith.constant 0 : index
    %1 = vector.load %arg3[%c0_1, %c0_2] : memref<64x128xf32, #tpu.memory_space<vmem>>, vector<64x128xf32>
    %c0_3 = arith.constant 0 : index
    %c0_4 = arith.constant 0 : index
    %2 = vector.load %arg4[%c0_3, %c0_4] : memref<1x128xf32, #tpu.memory_space<vmem>>, vector<1x128xf32>
    %c0_5 = arith.constant 0 : index
    %c0_6 = arith.constant 0 : index
    %3 = vector.load %arg5[%c0_5, %c0_6] : memref<72x16xf32, #tpu.memory_space<vmem>>, vector<72x16xf32>
    %c0_7 = arith.constant 0 : index
    %c0_8 = arith.constant 0 : index
    %4 = vector.load %arg6[%c0_7, %c0_8] : memref<80x4xf32, #tpu.memory_space<vmem>>, vector<80x4xf32>
    %c0_9 = arith.constant 0 : index
    %c0_10 = arith.constant 0 : index
    %5 = vector.load %arg7[%c0_9, %c0_10] : memref<1x84xf32, #tpu.memory_space<vmem>>, vector<1x16xf32>
    %c0_11 = arith.constant 0 : index
    %c16 = arith.constant 16 : index
    %6 = vector.load %arg7[%c0_11, %c16] : memref<1x84xf32, #tpu.memory_space<vmem>>, vector<1x4xf32>
    %c0_12 = arith.constant 0 : index
    %c20 = arith.constant 20 : index
    %7 = vector.load %arg7[%c0_12, %c20] : memref<1x84xf32, #tpu.memory_space<vmem>>, vector<1x64xf32>
    %c0_13 = arith.constant 0 : index
    %c0_14 = arith.constant 0 : index
    %8 = vector.load %arg1[%c0_13, %c0_14] : memref<8x1024xf32, #tpu.memory_space<vmem>>, vector<8x72xf32>
    %cst = arith.constant dense<0.000000e+00> : vector<8x128xf32>
    %9 = tpu.matmul %8, %0, %cst {dimension_numbers = #tpu.dot_dimension_numbers<[1], [0], [0], [1], [0, 0, 1, 1], [], []>} : vector<8x72xf32>, vector<72x128xf32>, vector<8x128xf32> -> vector<8x128xf32>
    %10 = vector.broadcast %2 : vector<1x128xf32> to vector<8x128xf32>
    %11 = arith.addf %9, %10 : vector<8x128xf32>
    %cst_15 = arith.constant 0.000000e+00 : f32
    %12 = vector.broadcast %cst_15 : f32 to vector<8x128xf32>
    %13 = arith.maximumf %11, %12 : vector<8x128xf32>
    %c0_16 = arith.constant 0 : index
    %c0_17 = arith.constant 0 : index
    %14 = vector.load %arg12[%c0_16, %c0_17] : memref<8x2048xf32, #tpu.memory_space<vmem>>, vector<8x128xf32>
    tpu.vector_store %arg12[%c0_16, %c0_17], %13 {strides = array<i32>} : memref<8x2048xf32, #tpu.memory_space<vmem>>, vector<8x128xf32>,
    %c0_18 = arith.constant 0 : index
    %c64 = arith.constant 64 : index
    %15 = vector.load %arg1[%c0_18, %c64] : memref<8x1024xf32, #tpu.memory_space<vmem>>, vector<8x72xf32>
    %cst_19 = arith.constant dense<0.000000e+00> : vector<8x128xf32>
    %16 = tpu.matmul %15, %0, %cst_19 {dimension_numbers = #tpu.dot_dimension_numbers<[1], [0], [0], [1], [0, 0, 1, 1], [], []>} : vector<8x72xf32>, vector<72x128xf32>, vector<8x128xf32> -> vector<8x128xf32>
    %17 = vector.broadcast %2 : vector<1x128xf32> to vector<8x128xf32>
    %18 = arith.addf %16, %17 : vector<8x128xf32>
    %cst_20 = arith.constant 0.000000e+00 : f32
    %19 = vector.broadcast %cst_20 : f32 to vector<8x128xf32>
    %20 = arith.maximumf %18, %19 : vector<8x128xf32>
    %c0_21 = arith.constant 0 : index
    %c128 = arith.constant 128 : index
    %21 = vector.load %arg12[%c0_21, %c128] : memref<8x2048xf32, #tpu.memory_space<vmem>>, vector<8x128xf32>
    tpu.vector_store %arg12[%c0_21, %c128], %20 {strides = array<i32>} : memref<8x2048xf32, #tpu.memory_space<vmem>>, vector<8x128xf32>,
    %c0_22 = arith.constant 0 : index
    %c128_23 = arith.constant 128 : index
    %22 = vector.load %arg1[%c0_22, %c128_23] : memref<8x1024xf32, #tpu.memory_space<vmem>>, vector<8x72xf32>
    %cst_24 = arith.constant dense<0.000000e+00> : vector<8x128xf32>
    %23 = tpu.matmul %22, %0, %cst_24 {dimension_numbers = #tpu.dot_dimension_numbers<[1], [0], [0], [1], [0, 0, 1, 1], [], []>} : vector<8x72xf32>, vector<72x128xf32>, vector<8x128xf32> -> vector<8x128xf32>
    %24 = vector.broadcast %2 : vector<1x128xf32> to vector<8x128xf32>
    %25 = arith.addf %23, %24 : vector<8x128xf32>
    %cst_25 = arith.constant 0.000000e+00 : f32
    %26 = vector.broadcast %cst_25 : f32 to vector<8x128xf32>
    %27 = arith.maximumf %25, %26 : vector<8x128xf32>
    %c0_26 = arith.constant 0 : index
    %c256 = arith.constant 256 : index
    %28 = vector.load %arg12[%c0_26, %c256] : memref<8x2048xf32, #tpu.memory_space<vmem>>, vector<8x128xf32>
    tpu.vector_store %arg12[%c0_26, %c256], %27 {strides = array<i32>} : memref<8x2048xf32, #tpu.memory_space<vmem>>, vector<8x128xf32>,
    %c0_27 = arith.constant 0 : index
    %c192 = arith.constant 192 : index
    %29 = vector.load %arg1[%c0_27, %c192] : memref<8x1024xf32, #tpu.memory_space<vmem>>, vector<8x72xf32>
    %cst_28 = arith.constant dense<0.000000e+00> : vector<8x128xf32>
    %30 = tpu.matmul %29, %0, %cst_28 {dimension_numbers = #tpu.dot_dimension_numbers<[1], [0], [0], [1], [0, 0, 1, 1], [], []>} : vector<8x72xf32>, vector<72x128xf32>, vector<8x128xf32> -> vector<8x128xf32>
    %31 = vector.broadcast %2 : vector<1x128xf32> to vector<8x128xf32>
    %32 = arith.addf %30, %31 : vector<8x128xf32>
    %cst_29 = arith.constant 0.000000e+00 : f32
    %33 = vector.broadcast %cst_29 : f32 to vector<8x128xf32>
    %34 = arith.maximumf %32, %33 : vector<8x128xf32>
    %c0_30 = arith.constant 0 : index
    %c384 = arith.constant 384 : index
    %35 = vector.load %arg12[%c0_30, %c384] : memref<8x2048xf32, #tpu.memory_space<vmem>>, vector<8x128xf32>
    tpu.vector_store %arg12[%c0_30, %c384], %34 {strides = array<i32>} : memref<8x2048xf32, #tpu.memory_space<vmem>>, vector<8x128xf32>,
    %c0_31 = arith.constant 0 : index
    %c256_32 = arith.constant 256 : index
    %36 = vector.load %arg1[%c0_31, %c256_32] : memref<8x1024xf32, #tpu.memory_space<vmem>>, vector<8x72xf32>
    %cst_33 = arith.constant dense<0.000000e+00> : vector<8x128xf32>
    %37 = tpu.matmul %36, %0, %cst_33 {dimension_numbers = #tpu.dot_dimension_numbers<[1], [0], [0], [1], [0, 0, 1, 1], [], []>} : vector<8x72xf32>, vector<72x128xf32>, vector<8x128xf32> -> vector<8x128xf32>
    %38 = vector.broadcast %2 : vector<1x128xf32> to vector<8x128xf32>
    %39 = arith.addf %37, %38 : vector<8x128xf32>
    %cst_34 = arith.constant 0.000000e+00 : f32
    %40 = vector.broadcast %cst_34 : f32 to vector<8x128xf32>
    %41 = arith.maximumf %39, %40 : vector<8x128xf32>
    %c0_35 = arith.constant 0 : index
    %c512 = arith.constant 512 : index
    %42 = vector.load %arg12[%c0_35, %c512] : memref<8x2048xf32, #tpu.memory_space<vmem>>, vector<8x128xf32>
    tpu.vector_store %arg12[%c0_35, %c512], %41 {strides = array<i32>} : memref<8x2048xf32, #tpu.memory_space<vmem>>, vector<8x128xf32>,
    %c0_36 = arith.constant 0 : index
    %c320 = arith.constant 320 : index
    %43 = vector.load %arg1[%c0_36, %c320] : memref<8x1024xf32, #tpu.memory_space<vmem>>, vector<8x72xf32>
    %cst_37 = arith.constant dense<0.000000e+00> : vector<8x128xf32>
    %44 = tpu.matmul %43, %0, %cst_37 {dimension_numbers = #tpu.dot_dimension_numbers<[1], [0], [0], [1], [0, 0, 1, 1], [], []>} : vector<8x72xf32>, vector<72x128xf32>, vector<8x128xf32> -> vector<8x128xf32>
    %45 = vector.broadcast %2 : vector<1x128xf32> to vector<8x128xf32>
    %46 = arith.addf %44, %45 : vector<8x128xf32>
    %cst_38 = arith.constant 0.000000e+00 : f32
    %47 = vector.broadcast %cst_38 : f32 to vector<8x128xf32>
    %48 = arith.maximumf %46, %47 : vector<8x128xf32>
    %c0_39 = arith.constant 0 : index
    %c640 = arith.constant 640 : index
    %49 = vector.load %arg12[%c0_39, %c640] : memref<8x2048xf32, #tpu.memory_space<vmem>>, vector<8x128xf32>
    tpu.vector_store %arg12[%c0_39, %c640], %48 {strides = array<i32>} : memref<8x2048xf32, #tpu.memory_space<vmem>>, vector<8x128xf32>,
    %c0_40 = arith.constant 0 : index
    %c384_41 = arith.constant 384 : index
    %50 = vector.load %arg1[%c0_40, %c384_41] : memref<8x1024xf32, #tpu.memory_space<vmem>>, vector<8x72xf32>
    %cst_42 = arith.constant dense<0.000000e+00> : vector<8x128xf32>
    %51 = tpu.matmul %50, %0, %cst_42 {dimension_numbers = #tpu.dot_dimension_numbers<[1], [0], [0], [1], [0, 0, 1, 1], [], []>} : vector<8x72xf32>, vector<72x128xf32>, vector<8x128xf32> -> vector<8x128xf32>
    %52 = vector.broadcast %2 : vector<1x128xf32> to vector<8x128xf32>
    %53 = arith.addf %51, %52 : vector<8x128xf32>
    %cst_43 = arith.constant 0.000000e+00 : f32
    %54 = vector.broadcast %cst_43 : f32 to vector<8x128xf32>
    %55 = arith.maximumf %53, %54 : vector<8x128xf32>
    %c0_44 = arith.constant 0 : index
    %c768 = arith.constant 768 : index
    %56 = vector.load %arg12[%c0_44, %c768] : memref<8x2048xf32, #tpu.memory_space<vmem>>, vector<8x128xf32>
    tpu.vector_store %arg12[%c0_44, %c768], %55 {strides = array<i32>} : memref<8x2048xf32, #tpu.memory_space<vmem>>, vector<8x128xf32>,
    %c0_45 = arith.constant 0 : index
    %c448 = arith.constant 448 : index
    %57 = vector.load %arg1[%c0_45, %c448] : memref<8x1024xf32, #tpu.memory_space<vmem>>, vector<8x72xf32>
    %cst_46 = arith.constant dense<0.000000e+00> : vector<8x128xf32>
    %58 = tpu.matmul %57, %0, %cst_46 {dimension_numbers = #tpu.dot_dimension_numbers<[1], [0], [0], [1], [0, 0, 1, 1], [], []>} : vector<8x72xf32>, vector<72x128xf32>, vector<8x128xf32> -> vector<8x128xf32>
    %59 = vector.broadcast %2 : vector<1x128xf32> to vector<8x128xf32>
    %60 = arith.addf %58, %59 : vector<8x128xf32>
    %cst_47 = arith.constant 0.000000e+00 : f32
    %61 = vector.broadcast %cst_47 : f32 to vector<8x128xf32>
    %62 = arith.maximumf %60, %61 : vector<8x128xf32>
    %c0_48 = arith.constant 0 : index
    %c896 = arith.constant 896 : index
    %63 = vector.load %arg12[%c0_48, %c896] : memref<8x2048xf32, #tpu.memory_space<vmem>>, vector<8x128xf32>
    tpu.vector_store %arg12[%c0_48, %c896], %62 {strides = array<i32>} : memref<8x2048xf32, #tpu.memory_space<vmem>>, vector<8x128xf32>,
    %c0_49 = arith.constant 0 : index
    %c512_50 = arith.constant 512 : index
    %64 = vector.load %arg1[%c0_49, %c512_50] : memref<8x1024xf32, #tpu.memory_space<vmem>>, vector<8x72xf32>
    %cst_51 = arith.constant dense<0.000000e+00> : vector<8x128xf32>
    %65 = tpu.matmul %64, %0, %cst_51 {dimension_numbers = #tpu.dot_dimension_numbers<[1], [0], [0], [1], [0, 0, 1, 1], [], []>} : vector<8x72xf32>, vector<72x128xf32>, vector<8x128xf32> -> vector<8x128xf32>
    %66 = vector.broadcast %2 : vector<1x128xf32> to vector<8x128xf32>
    %67 = arith.addf %65, %66 : vector<8x128xf32>
    %cst_52 = arith.constant 0.000000e+00 : f32
    %68 = vector.broadcast %cst_52 : f32 to vector<8x128xf32>
    %69 = arith.maximumf %67, %68 : vector<8x128xf32>
    %c0_53 = arith.constant 0 : index
    %c1024 = arith.constant 1024 : index
    %70 = vector.load %arg12[%c0_53, %c1024] : memref<8x2048xf32, #tpu.memory_space<vmem>>, vector<8x128xf32>
    tpu.vector_store %arg12[%c0_53, %c1024], %69 {strides = array<i32>} : memref<8x2048xf32, #tpu.memory_space<vmem>>, vector<8x128xf32>,
    %c0_54 = arith.constant 0 : index
    %c576 = arith.constant 576 : index
    %71 = vector.load %arg1[%c0_54, %c576] : memref<8x1024xf32, #tpu.memory_space<vmem>>, vector<8x72xf32>
    %cst_55 = arith.constant dense<0.000000e+00> : vector<8x128xf32>
    %72 = tpu.matmul %71, %0, %cst_55 {dimension_numbers = #tpu.dot_dimension_numbers<[1], [0], [0], [1], [0, 0, 1, 1], [], []>} : vector<8x72xf32>, vector<72x128xf32>, vector<8x128xf32> -> vector<8x128xf32>
    %73 = vector.broadcast %2 : vector<1x128xf32> to vector<8x128xf32>
    %74 = arith.addf %72, %73 : vector<8x128xf32>
    %cst_56 = arith.constant 0.000000e+00 : f32
    %75 = vector.broadcast %cst_56 : f32 to vector<8x128xf32>
    %76 = arith.maximumf %74, %75 : vector<8x128xf32>
    %c0_57 = arith.constant 0 : index
    %c1152 = arith.constant 1152 : index
    %77 = vector.load %arg12[%c0_57, %c1152] : memref<8x2048xf32, #tpu.memory_space<vmem>>, vector<8x128xf32>
    tpu.vector_store %arg12[%c0_57, %c1152], %76 {strides = array<i32>} : memref<8x2048xf32, #tpu.memory_space<vmem>>, vector<8x128xf32>,
    %c0_58 = arith.constant 0 : index
    %c640_59 = arith.constant 640 : index
    %78 = vector.load %arg1[%c0_58, %c640_59] : memref<8x1024xf32, #tpu.memory_space<vmem>>, vector<8x72xf32>
    %cst_60 = arith.constant dense<0.000000e+00> : vector<8x128xf32>
    %79 = tpu.matmul %78, %0, %cst_60 {dimension_numbers = #tpu.dot_dimension_numbers<[1], [0], [0], [1], [0, 0, 1, 1], [], []>} : vector<8x72xf32>, vector<72x128xf32>, vector<8x128xf32> -> vector<8x128xf32>
    %80 = vector.broadcast %2 : vector<1x128xf32> to vector<8x128xf32>
    %81 = arith.addf %79, %80 : vector<8x128xf32>
    %cst_61 = arith.constant 0.000000e+00 : f32
    %82 = vector.broadcast %cst_61 : f32 to vector<8x128xf32>
    %83 = arith.maximumf %81, %82 : vector<8x128xf32>
    %c0_62 = arith.constant 0 : index
    %c1280 = arith.constant 1280 : index
    %84 = vector.load %arg12[%c0_62, %c1280] : memref<8x2048xf32, #tpu.memory_space<vmem>>, vector<8x128xf32>
    tpu.vector_store %arg12[%c0_62, %c1280], %83 {strides = array<i32>} : memref<8x2048xf32, #tpu.memory_space<vmem>>, vector<8x128xf32>,
    %c0_63 = arith.constant 0 : index
    %c704 = arith.constant 704 : index
    %85 = vector.load %arg1[%c0_63, %c704] : memref<8x1024xf32, #tpu.memory_space<vmem>>, vector<8x72xf32>
    %cst_64 = arith.constant dense<0.000000e+00> : vector<8x128xf32>
    %86 = tpu.matmul %85, %0, %cst_64 {dimension_numbers = #tpu.dot_dimension_numbers<[1], [0], [0], [1], [0, 0, 1, 1], [], []>} : vector<8x72xf32>, vector<72x128xf32>, vector<8x128xf32> -> vector<8x128xf32>
    %87 = vector.broadcast %2 : vector<1x128xf32> to vector<8x128xf32>
    %88 = arith.addf %86, %87 : vector<8x128xf32>
    %cst_65 = arith.constant 0.000000e+00 : f32
    %89 = vector.broadcast %cst_65 : f32 to vector<8x128xf32>
    %90 = arith.maximumf %88, %89 : vector<8x128xf32>
    %c0_66 = arith.constant 0 : index
    %c1408 = arith.constant 1408 : index
    %91 = vector.load %arg12[%c0_66, %c1408] : memref<8x2048xf32, #tpu.memory_space<vmem>>, vector<8x128xf32>
    tpu.vector_store %arg12[%c0_66, %c1408], %90 {strides = array<i32>} : memref<8x2048xf32, #tpu.memory_space<vmem>>, vector<8x128xf32>,
    %c0_67 = arith.constant 0 : index
    %c768_68 = arith.constant 768 : index
    %92 = vector.load %arg1[%c0_67, %c768_68] : memref<8x1024xf32, #tpu.memory_space<vmem>>, vector<8x72xf32>
    %cst_69 = arith.constant dense<0.000000e+00> : vector<8x128xf32>
    %93 = tpu.matmul %92, %0, %cst_69 {dimension_numbers = #tpu.dot_dimension_numbers<[1], [0], [0], [1], [0, 0, 1, 1], [], []>} : vector<8x72xf32>, vector<72x128xf32>, vector<8x128xf32> -> vector<8x128xf32>
    %94 = vector.broadcast %2 : vector<1x128xf32> to vector<8x128xf32>
    %95 = arith.addf %93, %94 : vector<8x128xf32>
    %cst_70 = arith.constant 0.000000e+00 : f32
    %96 = vector.broadcast %cst_70 : f32 to vector<8x128xf32>
    %97 = arith.maximumf %95, %96 : vector<8x128xf32>
    %c0_71 = arith.constant 0 : index
    %c1536 = arith.constant 1536 : index
    %98 = vector.load %arg12[%c0_71, %c1536] : memref<8x2048xf32, #tpu.memory_space<vmem>>, vector<8x128xf32>
    tpu.vector_store %arg12[%c0_71, %c1536], %97 {strides = array<i32>} : memref<8x2048xf32, #tpu.memory_space<vmem>>, vector<8x128xf32>,
    %c0_72 = arith.constant 0 : index
    %c832 = arith.constant 832 : index
    %99 = vector.load %arg1[%c0_72, %c832] : memref<8x1024xf32, #tpu.memory_space<vmem>>, vector<8x72xf32>
    %cst_73 = arith.constant dense<0.000000e+00> : vector<8x128xf32>
    %100 = tpu.matmul %99, %0, %cst_73 {dimension_numbers = #tpu.dot_dimension_numbers<[1], [0], [0], [1], [0, 0, 1, 1], [], []>} : vector<8x72xf32>, vector<72x128xf32>, vector<8x128xf32> -> vector<8x128xf32>
    %101 = vector.broadcast %2 : vector<1x128xf32> to vector<8x128xf32>
    %102 = arith.addf %100, %101 : vector<8x128xf32>
    %cst_74 = arith.constant 0.000000e+00 : f32
    %103 = vector.broadcast %cst_74 : f32 to vector<8x128xf32>
    %104 = arith.maximumf %102, %103 : vector<8x128xf32>
    %c0_75 = arith.constant 0 : index
    %c1664 = arith.constant 1664 : index
    %105 = vector.load %arg12[%c0_75, %c1664] : memref<8x2048xf32, #tpu.memory_space<vmem>>, vector<8x128xf32>
    tpu.vector_store %arg12[%c0_75, %c1664], %104 {strides = array<i32>} : memref<8x2048xf32, #tpu.memory_space<vmem>>, vector<8x128xf32>,
    %c0_76 = arith.constant 0 : index
    %c896_77 = arith.constant 896 : index
    %106 = vector.load %arg1[%c0_76, %c896_77] : memref<8x1024xf32, #tpu.memory_space<vmem>>, vector<8x72xf32>
    %cst_78 = arith.constant dense<0.000000e+00> : vector<8x128xf32>
    %107 = tpu.matmul %106, %0, %cst_78 {dimension_numbers = #tpu.dot_dimension_numbers<[1], [0], [0], [1], [0, 0, 1, 1], [], []>} : vector<8x72xf32>, vector<72x128xf32>, vector<8x128xf32> -> vector<8x128xf32>
    %108 = vector.broadcast %2 : vector<1x128xf32> to vector<8x128xf32>
    %109 = arith.addf %107, %108 : vector<8x128xf32>
    %cst_79 = arith.constant 0.000000e+00 : f32
    %110 = vector.broadcast %cst_79 : f32 to vector<8x128xf32>
    %111 = arith.maximumf %109, %110 : vector<8x128xf32>
    %c0_80 = arith.constant 0 : index
    %c1792 = arith.constant 1792 : index
    %112 = vector.load %arg12[%c0_80, %c1792] : memref<8x2048xf32, #tpu.memory_space<vmem>>, vector<8x128xf32>
    tpu.vector_store %arg12[%c0_80, %c1792], %111 {strides = array<i32>} : memref<8x2048xf32, #tpu.memory_space<vmem>>, vector<8x128xf32>,
    %c0_81 = arith.constant 0 : index
    %c960 = arith.constant 960 : index
    %113 = vector.load %arg1[%c0_81, %c960] : memref<8x1024xf32, #tpu.memory_space<vmem>>, vector<8x64xf32>
    %cst_82 = arith.constant dense<0.000000e+00> : vector<8x128xf32>
    %114 = tpu.matmul %113, %1, %cst_82 {dimension_numbers = #tpu.dot_dimension_numbers<[1], [0], [0], [1], [0, 0, 1, 1], [], []>} : vector<8x64xf32>, vector<64x128xf32>, vector<8x128xf32> -> vector<8x128xf32>
    %115 = vector.broadcast %2 : vector<1x128xf32> to vector<8x128xf32>
    %116 = arith.addf %114, %115 : vector<8x128xf32>
    %cst_83 = arith.constant 0.000000e+00 : f32
    %117 = vector.broadcast %cst_83 : f32 to vector<8x128xf32>
    %118 = arith.maximumf %116, %117 : vector<8x128xf32>
    %c0_84 = arith.constant 0 : index
    %c1920 = arith.constant 1920 : index
    %119 = vector.load %arg12[%c0_84, %c1920] : memref<8x2048xf32, #tpu.memory_space<vmem>>, vector<8x128xf32>
    tpu.vector_store %arg12[%c0_84, %c1920], %118 {strides = array<i32>} : memref<8x2048xf32, #tpu.memory_space<vmem>>, vector<8x128xf32>,
    %c0_85 = arith.constant 0 : index
    %c0_86 = arith.constant 0 : index
    %120 = vector.load %arg12[%c0_85, %c0_86] : memref<8x2048xf32, #tpu.memory_space<vmem>>, vector<8x72xf32>
    %cst_87 = arith.constant dense<0.000000e+00> : vector<8x16xf32>
    %121 = tpu.matmul %120, %3, %cst_87 {dimension_numbers = #tpu.dot_dimension_numbers<[1], [0], [0], [1], [0, 0, 1, 1], [], []>} : vector<8x72xf32>, vector<72x16xf32>, vector<8x16xf32> -> vector<8x16xf32>
    %122 = vector.broadcast %5 : vector<1x16xf32> to vector<8x16xf32>
    %123 = arith.addf %121, %122 : vector<8x16xf32>
    %cst_88 = arith.constant 0.000000e+00 : f32
    %124 = vector.broadcast %cst_88 : f32 to vector<8x16xf32>
    %125 = arith.maximumf %123, %124 : vector<8x16xf32>
    %c0_89 = arith.constant 0 : index
    %c0_90 = arith.constant 0 : index
    %126 = vector.load %arg13[%c0_89, %c0_90] : memref<8x496xf32, #tpu.memory_space<vmem>>, vector<8x16xf32>
    tpu.vector_store %arg13[%c0_89, %c0_90], %125 {strides = array<i32>} : memref<8x496xf32, #tpu.memory_space<vmem>>, vector<8x16xf32>,
    %c0_91 = arith.constant 0 : index
    %c64_92 = arith.constant 64 : index
    %127 = vector.load %arg12[%c0_91, %c64_92] : memref<8x2048xf32, #tpu.memory_space<vmem>>, vector<8x72xf32>
    %cst_93 = arith.constant dense<0.000000e+00> : vector<8x16xf32>
    %128 = tpu.matmul %127, %3, %cst_93 {dimension_numbers = #tpu.dot_dimension_numbers<[1], [0], [0], [1], [0, 0, 1, 1], [], []>} : vector<8x72xf32>, vector<72x16xf32>, vector<8x16xf32> -> vector<8x16xf32>
    %129 = vector.broadcast %5 : vector<1x16xf32> to vector<8x16xf32>
    %130 = arith.addf %128, %129 : vector<8x16xf32>
    %cst_94 = arith.constant 0.000000e+00 : f32
    %131 = vector.broadcast %cst_94 : f32 to vector<8x16xf32>
    %132 = arith.maximumf %130, %131 : vector<8x16xf32>
    %c0_95 = arith.constant 0 : index
    %c16_96 = arith.constant 16 : index
    %133 = vector.load %arg13[%c0_95, %c16_96] : memref<8x496xf32, #tpu.memory_space<vmem>>, vector<8x16xf32>
    tpu.vector_store %arg13[%c0_95, %c16_96], %132 {strides = array<i32>} : memref<8x496xf32, #tpu.memory_space<vmem>>, vector<8x16xf32>,
    %c0_97 = arith.constant 0 : index
    %c128_98 = arith.constant 128 : index
    %134 = vector.load %arg12[%c0_97, %c128_98] : memref<8x2048xf32, #tpu.memory_space<vmem>>, vector<8x72xf32>
    %cst_99 = arith.constant dense<0.000000e+00> : vector<8x16xf32>
    %135 = tpu.matmul %134, %3, %cst_99 {dimension_numbers = #tpu.dot_dimension_numbers<[1], [0], [0], [1], [0, 0, 1, 1], [], []>} : vector<8x72xf32>, vector<72x16xf32>, vector<8x16xf32> -> vector<8x16xf32>
    %136 = vector.broadcast %5 : vector<1x16xf32> to vector<8x16xf32>
    %137 = arith.addf %135, %136 : vector<8x16xf32>
    %cst_100 = arith.constant 0.000000e+00 : f32
    %138 = vector.broadcast %cst_100 : f32 to vector<8x16xf32>
    %139 = arith.maximumf %137, %138 : vector<8x16xf32>
    %c0_101 = arith.constant 0 : index
    %c32 = arith.constant 32 : index
    %140 = vector.load %arg13[%c0_101, %c32] : memref<8x496xf32, #tpu.memory_space<vmem>>, vector<8x16xf32>
    tpu.vector_store %arg13[%c0_101, %c32], %139 {strides = array<i32>} : memref<8x496xf32, #tpu.memory_space<vmem>>, vector<8x16xf32>,
    %c0_102 = arith.constant 0 : index
    %c192_103 = arith.constant 192 : index
    %141 = vector.load %arg12[%c0_102, %c192_103] : memref<8x2048xf32, #tpu.memory_space<vmem>>, vector<8x72xf32>
    %cst_104 = arith.constant dense<0.000000e+00> : vector<8x16xf32>
    %142 = tpu.matmul %141, %3, %cst_104 {dimension_numbers = #tpu.dot_dimension_numbers<[1], [0], [0], [1], [0, 0, 1, 1], [], []>} : vector<8x72xf32>, vector<72x16xf32>, vector<8x16xf32> -> vector<8x16xf32>
    %143 = vector.broadcast %5 : vector<1x16xf32> to vector<8x16xf32>
    %144 = arith.addf %142, %143 : vector<8x16xf32>
    %cst_105 = arith.constant 0.000000e+00 : f32
    %145 = vector.broadcast %cst_105 : f32 to vector<8x16xf32>
    %146 = arith.maximumf %144, %145 : vector<8x16xf32>
    %c0_106 = arith.constant 0 : index
    %c48 = arith.constant 48 : index
    %147 = vector.load %arg13[%c0_106, %c48] : memref<8x496xf32, #tpu.memory_space<vmem>>, vector<8x16xf32>
    tpu.vector_store %arg13[%c0_106, %c48], %146 {strides = array<i32>} : memref<8x496xf32, #tpu.memory_space<vmem>>, vector<8x16xf32>,
    %c0_107 = arith.constant 0 : index
    %c256_108 = arith.constant 256 : index
    %148 = vector.load %arg12[%c0_107, %c256_108] : memref<8x2048xf32, #tpu.memory_space<vmem>>, vector<8x72xf32>
    %cst_109 = arith.constant dense<0.000000e+00> : vector<8x16xf32>
    %149 = tpu.matmul %148, %3, %cst_109 {dimension_numbers = #tpu.dot_dimension_numbers<[1], [0], [0], [1], [0, 0, 1, 1], [], []>} : vector<8x72xf32>, vector<72x16xf32>, vector<8x16xf32> -> vector<8x16xf32>
    %150 = vector.broadcast %5 : vector<1x16xf32> to vector<8x16xf32>
    %151 = arith.addf %149, %150 : vector<8x16xf32>
    %cst_110 = arith.constant 0.000000e+00 : f32
    %152 = vector.broadcast %cst_110 : f32 to vector<8x16xf32>
    %153 = arith.maximumf %151, %152 : vector<8x16xf32>
    %c0_111 = arith.constant 0 : index
    %c64_112 = arith.constant 64 : index
    %154 = vector.load %arg13[%c0_111, %c64_112] : memref<8x496xf32, #tpu.memory_space<vmem>>, vector<8x16xf32>
    tpu.vector_store %arg13[%c0_111, %c64_112], %153 {strides = array<i32>} : memref<8x496xf32, #tpu.memory_space<vmem>>, vector<8x16xf32>,
    %c0_113 = arith.constant 0 : index
    %c320_114 = arith.constant 320 : index
    %155 = vector.load %arg12[%c0_113, %c320_114] : memref<8x2048xf32, #tpu.memory_space<vmem>>, vector<8x72xf32>
    %cst_115 = arith.constant dense<0.000000e+00> : vector<8x16xf32>
    %156 = tpu.matmul %155, %3, %cst_115 {dimension_numbers = #tpu.dot_dimension_numbers<[1], [0], [0], [1], [0, 0, 1, 1], [], []>} : vector<8x72xf32>, vector<72x16xf32>, vector<8x16xf32> -> vector<8x16xf32>
    %157 = vector.broadcast %5 : vector<1x16xf32> to vector<8x16xf32>
    %158 = arith.addf %156, %157 : vector<8x16xf32>
    %cst_116 = arith.constant 0.000000e+00 : f32
    %159 = vector.broadcast %cst_116 : f32 to vector<8x16xf32>
    %160 = arith.maximumf %158, %159 : vector<8x16xf32>
    %c0_117 = arith.constant 0 : index
    %c80 = arith.constant 80 : index
    %161 = vector.load %arg13[%c0_117, %c80] : memref<8x496xf32, #tpu.memory_space<vmem>>, vector<8x16xf32>
    tpu.vector_store %arg13[%c0_117, %c80], %160 {strides = array<i32>} : memref<8x496xf32, #tpu.memory_space<vmem>>, vector<8x16xf32>,
    %c0_118 = arith.constant 0 : index
    %c384_119 = arith.constant 384 : index
    %162 = vector.load %arg12[%c0_118, %c384_119] : memref<8x2048xf32, #tpu.memory_space<vmem>>, vector<8x72xf32>
    %cst_120 = arith.constant dense<0.000000e+00> : vector<8x16xf32>
    %163 = tpu.matmul %162, %3, %cst_120 {dimension_numbers = #tpu.dot_dimension_numbers<[1], [0], [0], [1], [0, 0, 1, 1], [], []>} : vector<8x72xf32>, vector<72x16xf32>, vector<8x16xf32> -> vector<8x16xf32>
    %164 = vector.broadcast %5 : vector<1x16xf32> to vector<8x16xf32>
    %165 = arith.addf %163, %164 : vector<8x16xf32>
    %cst_121 = arith.constant 0.000000e+00 : f32
    %166 = vector.broadcast %cst_121 : f32 to vector<8x16xf32>
    %167 = arith.maximumf %165, %166 : vector<8x16xf32>
    %c0_122 = arith.constant 0 : index
    %c96 = arith.constant 96 : index
    %168 = vector.load %arg13[%c0_122, %c96] : memref<8x496xf32, #tpu.memory_space<vmem>>, vector<8x16xf32>
    tpu.vector_store %arg13[%c0_122, %c96], %167 {strides = array<i32>} : memref<8x496xf32, #tpu.memory_space<vmem>>, vector<8x16xf32>,
    %c0_123 = arith.constant 0 : index
    %c448_124 = arith.constant 448 : index
    %169 = vector.load %arg12[%c0_123, %c448_124] : memref<8x2048xf32, #tpu.memory_space<vmem>>, vector<8x72xf32>
    %cst_125 = arith.constant dense<0.000000e+00> : vector<8x16xf32>
    %170 = tpu.matmul %169, %3, %cst_125 {dimension_numbers = #tpu.dot_dimension_numbers<[1], [0], [0], [1], [0, 0, 1, 1], [], []>} : vector<8x72xf32>, vector<72x16xf32>, vector<8x16xf32> -> vector<8x16xf32>
    %171 = vector.broadcast %5 : vector<1x16xf32> to vector<8x16xf32>
    %172 = arith.addf %170, %171 : vector<8x16xf32>
    %cst_126 = arith.constant 0.000000e+00 : f32
    %173 = vector.broadcast %cst_126 : f32 to vector<8x16xf32>
    %174 = arith.maximumf %172, %173 : vector<8x16xf32>
    %c0_127 = arith.constant 0 : index
    %c112 = arith.constant 112 : index
    %175 = vector.load %arg13[%c0_127, %c112] : memref<8x496xf32, #tpu.memory_space<vmem>>, vector<8x16xf32>
    tpu.vector_store %arg13[%c0_127, %c112], %174 {strides = array<i32>} : memref<8x496xf32, #tpu.memory_space<vmem>>, vector<8x16xf32>,
    %c0_128 = arith.constant 0 : index
    %c512_129 = arith.constant 512 : index
    %176 = vector.load %arg12[%c0_128, %c512_129] : memref<8x2048xf32, #tpu.memory_space<vmem>>, vector<8x72xf32>
    %cst_130 = arith.constant dense<0.000000e+00> : vector<8x16xf32>
    %177 = tpu.matmul %176, %3, %cst_130 {dimension_numbers = #tpu.dot_dimension_numbers<[1], [0], [0], [1], [0, 0, 1, 1], [], []>} : vector<8x72xf32>, vector<72x16xf32>, vector<8x16xf32> -> vector<8x16xf32>
    %178 = vector.broadcast %5 : vector<1x16xf32> to vector<8x16xf32>
    %179 = arith.addf %177, %178 : vector<8x16xf32>
    %cst_131 = arith.constant 0.000000e+00 : f32
    %180 = vector.broadcast %cst_131 : f32 to vector<8x16xf32>
    %181 = arith.maximumf %179, %180 : vector<8x16xf32>
    %c0_132 = arith.constant 0 : index
    %c128_133 = arith.constant 128 : index
    %182 = vector.load %arg13[%c0_132, %c128_133] : memref<8x496xf32, #tpu.memory_space<vmem>>, vector<8x16xf32>
    tpu.vector_store %arg13[%c0_132, %c128_133], %181 {strides = array<i32>} : memref<8x496xf32, #tpu.memory_space<vmem>>, vector<8x16xf32>,
    %c0_134 = arith.constant 0 : index
    %c576_135 = arith.constant 576 : index
    %183 = vector.load %arg12[%c0_134, %c576_135] : memref<8x2048xf32, #tpu.memory_space<vmem>>, vector<8x72xf32>
    %cst_136 = arith.constant dense<0.000000e+00> : vector<8x16xf32>
    %184 = tpu.matmul %183, %3, %cst_136 {dimension_numbers = #tpu.dot_dimension_numbers<[1], [0], [0], [1], [0, 0, 1, 1], [], []>} : vector<8x72xf32>, vector<72x16xf32>, vector<8x16xf32> -> vector<8x16xf32>
    %185 = vector.broadcast %5 : vector<1x16xf32> to vector<8x16xf32>
    %186 = arith.addf %184, %185 : vector<8x16xf32>
    %cst_137 = arith.constant 0.000000e+00 : f32
    %187 = vector.broadcast %cst_137 : f32 to vector<8x16xf32>
    %188 = arith.maximumf %186, %187 : vector<8x16xf32>
    %c0_138 = arith.constant 0 : index
    %c144 = arith.constant 144 : index
    %189 = vector.load %arg13[%c0_138, %c144] : memref<8x496xf32, #tpu.memory_space<vmem>>, vector<8x16xf32>
    tpu.vector_store %arg13[%c0_138, %c144], %188 {strides = array<i32>} : memref<8x496xf32, #tpu.memory_space<vmem>>, vector<8x16xf32>,
    %c0_139 = arith.constant 0 : index
    %c640_140 = arith.constant 640 : index
    %190 = vector.load %arg12[%c0_139, %c640_140] : memref<8x2048xf32, #tpu.memory_space<vmem>>, vector<8x72xf32>
    %cst_141 = arith.constant dense<0.000000e+00> : vector<8x16xf32>
    %191 = tpu.matmul %190, %3, %cst_141 {dimension_numbers = #tpu.dot_dimension_numbers<[1], [0], [0], [1], [0, 0, 1, 1], [], []>} : vector<8x72xf32>, vector<72x16xf32>, vector<8x16xf32> -> vector<8x16xf32>
    %192 = vector.broadcast %5 : vector<1x16xf32> to vector<8x16xf32>
    %193 = arith.addf %191, %192 : vector<8x16xf32>
    %cst_142 = arith.constant 0.000000e+00 : f32
    %194 = vector.broadcast %cst_142 : f32 to vector<8x16xf32>
    %195 = arith.maximumf %193, %194 : vector<8x16xf32>
    %c0_143 = arith.constant 0 : index
    %c160 = arith.constant 160 : index
    %196 = vector.load %arg13[%c0_143, %c160] : memref<8x496xf32, #tpu.memory_space<vmem>>, vector<8x16xf32>
    tpu.vector_store %arg13[%c0_143, %c160], %195 {strides = array<i32>} : memref<8x496xf32, #tpu.memory_space<vmem>>, vector<8x16xf32>,
    %c0_144 = arith.constant 0 : index
    %c704_145 = arith.constant 704 : index
    %197 = vector.load %arg12[%c0_144, %c704_145] : memref<8x2048xf32, #tpu.memory_space<vmem>>, vector<8x72xf32>
    %cst_146 = arith.constant dense<0.000000e+00> : vector<8x16xf32>
    %198 = tpu.matmul %197, %3, %cst_146 {dimension_numbers = #tpu.dot_dimension_numbers<[1], [0], [0], [1], [0, 0, 1, 1], [], []>} : vector<8x72xf32>, vector<72x16xf32>, vector<8x16xf32> -> vector<8x16xf32>
    %199 = vector.broadcast %5 : vector<1x16xf32> to vector<8x16xf32>
    %200 = arith.addf %198, %199 : vector<8x16xf32>
    %cst_147 = arith.constant 0.000000e+00 : f32
    %201 = vector.broadcast %cst_147 : f32 to vector<8x16xf32>
    %202 = arith.maximumf %200, %201 : vector<8x16xf32>
    %c0_148 = arith.constant 0 : index
    %c176 = arith.constant 176 : index
    %203 = vector.load %arg13[%c0_148, %c176] : memref<8x496xf32, #tpu.memory_space<vmem>>, vector<8x16xf32>
    tpu.vector_store %arg13[%c0_148, %c176], %202 {strides = array<i32>} : memref<8x496xf32, #tpu.memory_space<vmem>>, vector<8x16xf32>,
    %c0_149 = arith.constant 0 : index
    %c768_150 = arith.constant 768 : index
    %204 = vector.load %arg12[%c0_149, %c768_150] : memref<8x2048xf32, #tpu.memory_space<vmem>>, vector<8x72xf32>
    %cst_151 = arith.constant dense<0.000000e+00> : vector<8x16xf32>
    %205 = tpu.matmul %204, %3, %cst_151 {dimension_numbers = #tpu.dot_dimension_numbers<[1], [0], [0], [1], [0, 0, 1, 1], [], []>} : vector<8x72xf32>, vector<72x16xf32>, vector<8x16xf32> -> vector<8x16xf32>
    %206 = vector.broadcast %5 : vector<1x16xf32> to vector<8x16xf32>
    %207 = arith.addf %205, %206 : vector<8x16xf32>
    %cst_152 = arith.constant 0.000000e+00 : f32
    %208 = vector.broadcast %cst_152 : f32 to vector<8x16xf32>
    %209 = arith.maximumf %207, %208 : vector<8x16xf32>
    %c0_153 = arith.constant 0 : index
    %c192_154 = arith.constant 192 : index
    %210 = vector.load %arg13[%c0_153, %c192_154] : memref<8x496xf32, #tpu.memory_space<vmem>>, vector<8x16xf32>
    tpu.vector_store %arg13[%c0_153, %c192_154], %209 {strides = array<i32>} : memref<8x496xf32, #tpu.memory_space<vmem>>, vector<8x16xf32>,
    %c0_155 = arith.constant 0 : index
    %c832_156 = arith.constant 832 : index
    %211 = vector.load %arg12[%c0_155, %c832_156] : memref<8x2048xf32, #tpu.memory_space<vmem>>, vector<8x72xf32>
    %cst_157 = arith.constant dense<0.000000e+00> : vector<8x16xf32>
    %212 = tpu.matmul %211, %3, %cst_157 {dimension_numbers = #tpu.dot_dimension_numbers<[1], [0], [0], [1], [0, 0, 1, 1], [], []>} : vector<8x72xf32>, vector<72x16xf32>, vector<8x16xf32> -> vector<8x16xf32>
    %213 = vector.broadcast %5 : vector<1x16xf32> to vector<8x16xf32>
    %214 = arith.addf %212, %213 : vector<8x16xf32>
    %cst_158 = arith.constant 0.000000e+00 : f32
    %215 = vector.broadcast %cst_158 : f32 to vector<8x16xf32>
    %216 = arith.maximumf %214, %215 : vector<8x16xf32>
    %c0_159 = arith.constant 0 : index
    %c208 = arith.constant 208 : index
    %217 = vector.load %arg13[%c0_159, %c208] : memref<8x496xf32, #tpu.memory_space<vmem>>, vector<8x16xf32>
    tpu.vector_store %arg13[%c0_159, %c208], %216 {strides = array<i32>} : memref<8x496xf32, #tpu.memory_space<vmem>>, vector<8x16xf32>,
    %c0_160 = arith.constant 0 : index
    %c896_161 = arith.constant 896 : index
    %218 = vector.load %arg12[%c0_160, %c896_161] : memref<8x2048xf32, #tpu.memory_space<vmem>>, vector<8x72xf32>
    %cst_162 = arith.constant dense<0.000000e+00> : vector<8x16xf32>
    %219 = tpu.matmul %218, %3, %cst_162 {dimension_numbers = #tpu.dot_dimension_numbers<[1], [0], [0], [1], [0, 0, 1, 1], [], []>} : vector<8x72xf32>, vector<72x16xf32>, vector<8x16xf32> -> vector<8x16xf32>
    %220 = vector.broadcast %5 : vector<1x16xf32> to vector<8x16xf32>
    %221 = arith.addf %219, %220 : vector<8x16xf32>
    %cst_163 = arith.constant 0.000000e+00 : f32
    %222 = vector.broadcast %cst_163 : f32 to vector<8x16xf32>
    %223 = arith.maximumf %221, %222 : vector<8x16xf32>
    %c0_164 = arith.constant 0 : index
    %c224 = arith.constant 224 : index
    %224 = vector.load %arg13[%c0_164, %c224] : memref<8x496xf32, #tpu.memory_space<vmem>>, vector<8x16xf32>
    tpu.vector_store %arg13[%c0_164, %c224], %223 {strides = array<i32>} : memref<8x496xf32, #tpu.memory_space<vmem>>, vector<8x16xf32>,
    %c0_165 = arith.constant 0 : index
    %c960_166 = arith.constant 960 : index
    %225 = vector.load %arg12[%c0_165, %c960_166] : memref<8x2048xf32, #tpu.memory_space<vmem>>, vector<8x72xf32>
    %cst_167 = arith.constant dense<0.000000e+00> : vector<8x16xf32>
    %226 = tpu.matmul %225, %3, %cst_167 {dimension_numbers = #tpu.dot_dimension_numbers<[1], [0], [0], [1], [0, 0, 1, 1], [], []>} : vector<8x72xf32>, vector<72x16xf32>, vector<8x16xf32> -> vector<8x16xf32>
    %227 = vector.broadcast %5 : vector<1x16xf32> to vector<8x16xf32>
    %228 = arith.addf %226, %227 : vector<8x16xf32>
    %cst_168 = arith.constant 0.000000e+00 : f32
    %229 = vector.broadcast %cst_168 : f32 to vector<8x16xf32>
    %230 = arith.maximumf %228, %229 : vector<8x16xf32>
    %c0_169 = arith.constant 0 : index
    %c240 = arith.constant 240 : index
    %231 = vector.load %arg13[%c0_169, %c240] : memref<8x496xf32, #tpu.memory_space<vmem>>, vector<8x16xf32>
    tpu.vector_store %arg13[%c0_169, %c240], %230 {strides = array<i32>} : memref<8x496xf32, #tpu.memory_space<vmem>>, vector<8x16xf32>,
    %c0_170 = arith.constant 0 : index
    %c1024_171 = arith.constant 1024 : index
    %232 = vector.load %arg12[%c0_170, %c1024_171] : memref<8x2048xf32, #tpu.memory_space<vmem>>, vector<8x72xf32>
    %cst_172 = arith.constant dense<0.000000e+00> : vector<8x16xf32>
    %233 = tpu.matmul %232, %3, %cst_172 {dimension_numbers = #tpu.dot_dimension_numbers<[1], [0], [0], [1], [0, 0, 1, 1], [], []>} : vector<8x72xf32>, vector<72x16xf32>, vector<8x16xf32> -> vector<8x16xf32>
    %234 = vector.broadcast %5 : vector<1x16xf32> to vector<8x16xf32>
    %235 = arith.addf %233, %234 : vector<8x16xf32>
    %cst_173 = arith.constant 0.000000e+00 : f32
    %236 = vector.broadcast %cst_173 : f32 to vector<8x16xf32>
    %237 = arith.maximumf %235, %236 : vector<8x16xf32>
    %c0_174 = arith.constant 0 : index
    %c256_175 = arith.constant 256 : index
    %238 = vector.load %arg13[%c0_174, %c256_175] : memref<8x496xf32, #tpu.memory_space<vmem>>, vector<8x16xf32>
    tpu.vector_store %arg13[%c0_174, %c256_175], %237 {strides = array<i32>} : memref<8x496xf32, #tpu.memory_space<vmem>>, vector<8x16xf32>,
    %c0_176 = arith.constant 0 : index
    %c1088 = arith.constant 1088 : index
    %239 = vector.load %arg12[%c0_176, %c1088] : memref<8x2048xf32, #tpu.memory_space<vmem>>, vector<8x72xf32>
    %cst_177 = arith.constant dense<0.000000e+00> : vector<8x16xf32>
    %240 = tpu.matmul %239, %3, %cst_177 {dimension_numbers = #tpu.dot_dimension_numbers<[1], [0], [0], [1], [0, 0, 1, 1], [], []>} : vector<8x72xf32>, vector<72x16xf32>, vector<8x16xf32> -> vector<8x16xf32>
    %241 = vector.broadcast %5 : vector<1x16xf32> to vector<8x16xf32>
    %242 = arith.addf %240, %241 : vector<8x16xf32>
    %cst_178 = arith.constant 0.000000e+00 : f32
    %243 = vector.broadcast %cst_178 : f32 to vector<8x16xf32>
    %244 = arith.maximumf %242, %243 : vector<8x16xf32>
    %c0_179 = arith.constant 0 : index
    %c272 = arith.constant 272 : index
    %245 = vector.load %arg13[%c0_179, %c272] : memref<8x496xf32, #tpu.memory_space<vmem>>, vector<8x16xf32>
    tpu.vector_store %arg13[%c0_179, %c272], %244 {strides = array<i32>} : memref<8x496xf32, #tpu.memory_space<vmem>>, vector<8x16xf32>,
    %c0_180 = arith.constant 0 : index
    %c1152_181 = arith.constant 1152 : index
    %246 = vector.load %arg12[%c0_180, %c1152_181] : memref<8x2048xf32, #tpu.memory_space<vmem>>, vector<8x72xf32>
    %cst_182 = arith.constant dense<0.000000e+00> : vector<8x16xf32>
    %247 = tpu.matmul %246, %3, %cst_182 {dimension_numbers = #tpu.dot_dimension_numbers<[1], [0], [0], [1], [0, 0, 1, 1], [], []>} : vector<8x72xf32>, vector<72x16xf32>, vector<8x16xf32> -> vector<8x16xf32>
    %248 = vector.broadcast %5 : vector<1x16xf32> to vector<8x16xf32>
    %249 = arith.addf %247, %248 : vector<8x16xf32>
    %cst_183 = arith.constant 0.000000e+00 : f32
    %250 = vector.broadcast %cst_183 : f32 to vector<8x16xf32>
    %251 = arith.maximumf %249, %250 : vector<8x16xf32>
    %c0_184 = arith.constant 0 : index
    %c288 = arith.constant 288 : index
    %252 = vector.load %arg13[%c0_184, %c288] : memref<8x496xf32, #tpu.memory_space<vmem>>, vector<8x16xf32>
    tpu.vector_store %arg13[%c0_184, %c288], %251 {strides = array<i32>} : memref<8x496xf32, #tpu.memory_space<vmem>>, vector<8x16xf32>,
    %c0_185 = arith.constant 0 : index
    %c1216 = arith.constant 1216 : index
    %253 = vector.load %arg12[%c0_185, %c1216] : memref<8x2048xf32, #tpu.memory_space<vmem>>, vector<8x72xf32>
    %cst_186 = arith.constant dense<0.000000e+00> : vector<8x16xf32>
    %254 = tpu.matmul %253, %3, %cst_186 {dimension_numbers = #tpu.dot_dimension_numbers<[1], [0], [0], [1], [0, 0, 1, 1], [], []>} : vector<8x72xf32>, vector<72x16xf32>, vector<8x16xf32> -> vector<8x16xf32>
    %255 = vector.broadcast %5 : vector<1x16xf32> to vector<8x16xf32>
    %256 = arith.addf %254, %255 : vector<8x16xf32>
    %cst_187 = arith.constant 0.000000e+00 : f32
    %257 = vector.broadcast %cst_187 : f32 to vector<8x16xf32>
    %258 = arith.maximumf %256, %257 : vector<8x16xf32>
    %c0_188 = arith.constant 0 : index
    %c304 = arith.constant 304 : index
    %259 = vector.load %arg13[%c0_188, %c304] : memref<8x496xf32, #tpu.memory_space<vmem>>, vector<8x16xf32>
    tpu.vector_store %arg13[%c0_188, %c304], %258 {strides = array<i32>} : memref<8x496xf32, #tpu.memory_space<vmem>>, vector<8x16xf32>,
    %c0_189 = arith.constant 0 : index
    %c1280_190 = arith.constant 1280 : index
    %260 = vector.load %arg12[%c0_189, %c1280_190] : memref<8x2048xf32, #tpu.memory_space<vmem>>, vector<8x72xf32>
    %cst_191 = arith.constant dense<0.000000e+00> : vector<8x16xf32>
    %261 = tpu.matmul %260, %3, %cst_191 {dimension_numbers = #tpu.dot_dimension_numbers<[1], [0], [0], [1], [0, 0, 1, 1], [], []>} : vector<8x72xf32>, vector<72x16xf32>, vector<8x16xf32> -> vector<8x16xf32>
    %262 = vector.broadcast %5 : vector<1x16xf32> to vector<8x16xf32>
    %263 = arith.addf %261, %262 : vector<8x16xf32>
    %cst_192 = arith.constant 0.000000e+00 : f32
    %264 = vector.broadcast %cst_192 : f32 to vector<8x16xf32>
    %265 = arith.maximumf %263, %264 : vector<8x16xf32>
    %c0_193 = arith.constant 0 : index
    %c320_194 = arith.constant 320 : index
    %266 = vector.load %arg13[%c0_193, %c320_194] : memref<8x496xf32, #tpu.memory_space<vmem>>, vector<8x16xf32>
    tpu.vector_store %arg13[%c0_193, %c320_194], %265 {strides = array<i32>} : memref<8x496xf32, #tpu.memory_space<vmem>>, vector<8x16xf32>,
    %c0_195 = arith.constant 0 : index
    %c1344 = arith.constant 1344 : index
    %267 = vector.load %arg12[%c0_195, %c1344] : memref<8x2048xf32, #tpu.memory_space<vmem>>, vector<8x72xf32>
    %cst_196 = arith.constant dense<0.000000e+00> : vector<8x16xf32>
    %268 = tpu.matmul %267, %3, %cst_196 {dimension_numbers = #tpu.dot_dimension_numbers<[1], [0], [0], [1], [0, 0, 1, 1], [], []>} : vector<8x72xf32>, vector<72x16xf32>, vector<8x16xf32> -> vector<8x16xf32>
    %269 = vector.broadcast %5 : vector<1x16xf32> to vector<8x16xf32>
    %270 = arith.addf %268, %269 : vector<8x16xf32>
    %cst_197 = arith.constant 0.000000e+00 : f32
    %271 = vector.broadcast %cst_197 : f32 to vector<8x16xf32>
    %272 = arith.maximumf %270, %271 : vector<8x16xf32>
    %c0_198 = arith.constant 0 : index
    %c336 = arith.constant 336 : index
    %273 = vector.load %arg13[%c0_198, %c336] : memref<8x496xf32, #tpu.memory_space<vmem>>, vector<8x16xf32>
    tpu.vector_store %arg13[%c0_198, %c336], %272 {strides = array<i32>} : memref<8x496xf32, #tpu.memory_space<vmem>>, vector<8x16xf32>,
    %c0_199 = arith.constant 0 : index
    %c1408_200 = arith.constant 1408 : index
    %274 = vector.load %arg12[%c0_199, %c1408_200] : memref<8x2048xf32, #tpu.memory_space<vmem>>, vector<8x72xf32>
    %cst_201 = arith.constant dense<0.000000e+00> : vector<8x16xf32>
    %275 = tpu.matmul %274, %3, %cst_201 {dimension_numbers = #tpu.dot_dimension_numbers<[1], [0], [0], [1], [0, 0, 1, 1], [], []>} : vector<8x72xf32>, vector<72x16xf32>, vector<8x16xf32> -> vector<8x16xf32>
    %276 = vector.broadcast %5 : vector<1x16xf32> to vector<8x16xf32>
    %277 = arith.addf %275, %276 : vector<8x16xf32>
    %cst_202 = arith.constant 0.000000e+00 : f32
    %278 = vector.broadcast %cst_202 : f32 to vector<8x16xf32>
    %279 = arith.maximumf %277, %278 : vector<8x16xf32>
    %c0_203 = arith.constant 0 : index
    %c352 = arith.constant 352 : index
    %280 = vector.load %arg13[%c0_203, %c352] : memref<8x496xf32, #tpu.memory_space<vmem>>, vector<8x16xf32>
    tpu.vector_store %arg13[%c0_203, %c352], %279 {strides = array<i32>} : memref<8x496xf32, #tpu.memory_space<vmem>>, vector<8x16xf32>,
    %c0_204 = arith.constant 0 : index
    %c1472 = arith.constant 1472 : index
    %281 = vector.load %arg12[%c0_204, %c1472] : memref<8x2048xf32, #tpu.memory_space<vmem>>, vector<8x72xf32>
    %cst_205 = arith.constant dense<0.000000e+00> : vector<8x16xf32>
    %282 = tpu.matmul %281, %3, %cst_205 {dimension_numbers = #tpu.dot_dimension_numbers<[1], [0], [0], [1], [0, 0, 1, 1], [], []>} : vector<8x72xf32>, vector<72x16xf32>, vector<8x16xf32> -> vector<8x16xf32>
    %283 = vector.broadcast %5 : vector<1x16xf32> to vector<8x16xf32>
    %284 = arith.addf %282, %283 : vector<8x16xf32>
    %cst_206 = arith.constant 0.000000e+00 : f32
    %285 = vector.broadcast %cst_206 : f32 to vector<8x16xf32>
    %286 = arith.maximumf %284, %285 : vector<8x16xf32>
    %c0_207 = arith.constant 0 : index
    %c368 = arith.constant 368 : index
    %287 = vector.load %arg13[%c0_207, %c368] : memref<8x496xf32, #tpu.memory_space<vmem>>, vector<8x16xf32>
    tpu.vector_store %arg13[%c0_207, %c368], %286 {strides = array<i32>} : memref<8x496xf32, #tpu.memory_space<vmem>>, vector<8x16xf32>,
    %c0_208 = arith.constant 0 : index
    %c1536_209 = arith.constant 1536 : index
    %288 = vector.load %arg12[%c0_208, %c1536_209] : memref<8x2048xf32, #tpu.memory_space<vmem>>, vector<8x72xf32>
    %cst_210 = arith.constant dense<0.000000e+00> : vector<8x16xf32>
    %289 = tpu.matmul %288, %3, %cst_210 {dimension_numbers = #tpu.dot_dimension_numbers<[1], [0], [0], [1], [0, 0, 1, 1], [], []>} : vector<8x72xf32>, vector<72x16xf32>, vector<8x16xf32> -> vector<8x16xf32>
    %290 = vector.broadcast %5 : vector<1x16xf32> to vector<8x16xf32>
    %291 = arith.addf %289, %290 : vector<8x16xf32>
    %cst_211 = arith.constant 0.000000e+00 : f32
    %292 = vector.broadcast %cst_211 : f32 to vector<8x16xf32>
    %293 = arith.maximumf %291, %292 : vector<8x16xf32>
    %c0_212 = arith.constant 0 : index
    %c384_213 = arith.constant 384 : index
    %294 = vector.load %arg13[%c0_212, %c384_213] : memref<8x496xf32, #tpu.memory_space<vmem>>, vector<8x16xf32>
    tpu.vector_store %arg13[%c0_212, %c384_213], %293 {strides = array<i32>} : memref<8x496xf32, #tpu.memory_space<vmem>>, vector<8x16xf32>,
    %c0_214 = arith.constant 0 : index
    %c1600 = arith.constant 1600 : index
    %295 = vector.load %arg12[%c0_214, %c1600] : memref<8x2048xf32, #tpu.memory_space<vmem>>, vector<8x72xf32>
    %cst_215 = arith.constant dense<0.000000e+00> : vector<8x16xf32>
    %296 = tpu.matmul %295, %3, %cst_215 {dimension_numbers = #tpu.dot_dimension_numbers<[1], [0], [0], [1], [0, 0, 1, 1], [], []>} : vector<8x72xf32>, vector<72x16xf32>, vector<8x16xf32> -> vector<8x16xf32>
    %297 = vector.broadcast %5 : vector<1x16xf32> to vector<8x16xf32>
    %298 = arith.addf %296, %297 : vector<8x16xf32>
    %cst_216 = arith.constant 0.000000e+00 : f32
    %299 = vector.broadcast %cst_216 : f32 to vector<8x16xf32>
    %300 = arith.maximumf %298, %299 : vector<8x16xf32>
    %c0_217 = arith.constant 0 : index
    %c400 = arith.constant 400 : index
    %301 = vector.load %arg13[%c0_217, %c400] : memref<8x496xf32, #tpu.memory_space<vmem>>, vector<8x16xf32>
    tpu.vector_store %arg13[%c0_217, %c400], %300 {strides = array<i32>} : memref<8x496xf32, #tpu.memory_space<vmem>>, vector<8x16xf32>,
    %c0_218 = arith.constant 0 : index
    %c1664_219 = arith.constant 1664 : index
    %302 = vector.load %arg12[%c0_218, %c1664_219] : memref<8x2048xf32, #tpu.memory_space<vmem>>, vector<8x72xf32>
    %cst_220 = arith.constant dense<0.000000e+00> : vector<8x16xf32>
    %303 = tpu.matmul %302, %3, %cst_220 {dimension_numbers = #tpu.dot_dimension_numbers<[1], [0], [0], [1], [0, 0, 1, 1], [], []>} : vector<8x72xf32>, vector<72x16xf32>, vector<8x16xf32> -> vector<8x16xf32>
    %304 = vector.broadcast %5 : vector<1x16xf32> to vector<8x16xf32>
    %305 = arith.addf %303, %304 : vector<8x16xf32>
    %cst_221 = arith.constant 0.000000e+00 : f32
    %306 = vector.broadcast %cst_221 : f32 to vector<8x16xf32>
    %307 = arith.maximumf %305, %306 : vector<8x16xf32>
    %c0_222 = arith.constant 0 : index
    %c416 = arith.constant 416 : index
    %308 = vector.load %arg13[%c0_222, %c416] : memref<8x496xf32, #tpu.memory_space<vmem>>, vector<8x16xf32>
    tpu.vector_store %arg13[%c0_222, %c416], %307 {strides = array<i32>} : memref<8x496xf32, #tpu.memory_space<vmem>>, vector<8x16xf32>,
    %c0_223 = arith.constant 0 : index
    %c1728 = arith.constant 1728 : index
    %309 = vector.load %arg12[%c0_223, %c1728] : memref<8x2048xf32, #tpu.memory_space<vmem>>, vector<8x72xf32>
    %cst_224 = arith.constant dense<0.000000e+00> : vector<8x16xf32>
    %310 = tpu.matmul %309, %3, %cst_224 {dimension_numbers = #tpu.dot_dimension_numbers<[1], [0], [0], [1], [0, 0, 1, 1], [], []>} : vector<8x72xf32>, vector<72x16xf32>, vector<8x16xf32> -> vector<8x16xf32>
    %311 = vector.broadcast %5 : vector<1x16xf32> to vector<8x16xf32>
    %312 = arith.addf %310, %311 : vector<8x16xf32>
    %cst_225 = arith.constant 0.000000e+00 : f32
    %313 = vector.broadcast %cst_225 : f32 to vector<8x16xf32>
    %314 = arith.maximumf %312, %313 : vector<8x16xf32>
    %c0_226 = arith.constant 0 : index
    %c432 = arith.constant 432 : index
    %315 = vector.load %arg13[%c0_226, %c432] : memref<8x496xf32, #tpu.memory_space<vmem>>, vector<8x16xf32>
    tpu.vector_store %arg13[%c0_226, %c432], %314 {strides = array<i32>} : memref<8x496xf32, #tpu.memory_space<vmem>>, vector<8x16xf32>,
    %c0_227 = arith.constant 0 : index
    %c1792_228 = arith.constant 1792 : index
    %316 = vector.load %arg12[%c0_227, %c1792_228] : memref<8x2048xf32, #tpu.memory_space<vmem>>, vector<8x72xf32>
    %cst_229 = arith.constant dense<0.000000e+00> : vector<8x16xf32>
    %317 = tpu.matmul %316, %3, %cst_229 {dimension_numbers = #tpu.dot_dimension_numbers<[1], [0], [0], [1], [0, 0, 1, 1], [], []>} : vector<8x72xf32>, vector<72x16xf32>, vector<8x16xf32> -> vector<8x16xf32>
    %318 = vector.broadcast %5 : vector<1x16xf32> to vector<8x16xf32>
    %319 = arith.addf %317, %318 : vector<8x16xf32>
    %cst_230 = arith.constant 0.000000e+00 : f32
    %320 = vector.broadcast %cst_230 : f32 to vector<8x16xf32>
    %321 = arith.maximumf %319, %320 : vector<8x16xf32>
    %c0_231 = arith.constant 0 : index
    %c448_232 = arith.constant 448 : index
    %322 = vector.load %arg13[%c0_231, %c448_232] : memref<8x496xf32, #tpu.memory_space<vmem>>, vector<8x16xf32>
    tpu.vector_store %arg13[%c0_231, %c448_232], %321 {strides = array<i32>} : memref<8x496xf32, #tpu.memory_space<vmem>>, vector<8x16xf32>,
    %c0_233 = arith.constant 0 : index
    %c1856 = arith.constant 1856 : index
    %323 = vector.load %arg12[%c0_233, %c1856] : memref<8x2048xf32, #tpu.memory_space<vmem>>, vector<8x72xf32>
    %cst_234 = arith.constant dense<0.000000e+00> : vector<8x16xf32>
    %324 = tpu.matmul %323, %3, %cst_234 {dimension_numbers = #tpu.dot_dimension_numbers<[1], [0], [0], [1], [0, 0, 1, 1], [], []>} : vector<8x72xf32>, vector<72x16xf32>, vector<8x16xf32> -> vector<8x16xf32>
    %325 = vector.broadcast %5 : vector<1x16xf32> to vector<8x16xf32>
    %326 = arith.addf %324, %325 : vector<8x16xf32>
    %cst_235 = arith.constant 0.000000e+00 : f32
    %327 = vector.broadcast %cst_235 : f32 to vector<8x16xf32>
    %328 = arith.maximumf %326, %327 : vector<8x16xf32>
    %c0_236 = arith.constant 0 : index
    %c464 = arith.constant 464 : index
    %329 = vector.load %arg13[%c0_236, %c464] : memref<8x496xf32, #tpu.memory_space<vmem>>, vector<8x16xf32>
    tpu.vector_store %arg13[%c0_236, %c464], %328 {strides = array<i32>} : memref<8x496xf32, #tpu.memory_space<vmem>>, vector<8x16xf32>,
    %c0_237 = arith.constant 0 : index
    %c1920_238 = arith.constant 1920 : index
    %330 = vector.load %arg12[%c0_237, %c1920_238] : memref<8x2048xf32, #tpu.memory_space<vmem>>, vector<8x72xf32>
    %cst_239 = arith.constant dense<0.000000e+00> : vector<8x16xf32>
    %331 = tpu.matmul %330, %3, %cst_239 {dimension_numbers = #tpu.dot_dimension_numbers<[1], [0], [0], [1], [0, 0, 1, 1], [], []>} : vector<8x72xf32>, vector<72x16xf32>, vector<8x16xf32> -> vector<8x16xf32>
    %332 = vector.broadcast %5 : vector<1x16xf32> to vector<8x16xf32>
    %333 = arith.addf %331, %332 : vector<8x16xf32>
    %cst_240 = arith.constant 0.000000e+00 : f32
    %334 = vector.broadcast %cst_240 : f32 to vector<8x16xf32>
    %335 = arith.maximumf %333, %334 : vector<8x16xf32>
    %c0_241 = arith.constant 0 : index
    %c480 = arith.constant 480 : index
    %336 = vector.load %arg13[%c0_241, %c480] : memref<8x496xf32, #tpu.memory_space<vmem>>, vector<8x16xf32>
    tpu.vector_store %arg13[%c0_241, %c480], %335 {strides = array<i32>} : memref<8x496xf32, #tpu.memory_space<vmem>>, vector<8x16xf32>,
    %c0_242 = arith.constant 0 : index
    %c0_243 = arith.constant 0 : index
    %337 = vector.load %arg13[%c0_242, %c0_243] : memref<8x496xf32, #tpu.memory_space<vmem>>, vector<8x80xf32>
    %cst_244 = arith.constant dense<0.000000e+00> : vector<8x4xf32>
    %338 = tpu.matmul %337, %4, %cst_244 {dimension_numbers = #tpu.dot_dimension_numbers<[1], [0], [0], [1], [0, 0, 1, 1], [], []>} : vector<8x80xf32>, vector<80x4xf32>, vector<8x4xf32> -> vector<8x4xf32>
    %339 = vector.broadcast %6 : vector<1x4xf32> to vector<8x4xf32>
    %340 = arith.addf %338, %339 : vector<8x4xf32>
    %cst_245 = arith.constant 0.000000e+00 : f32
    %341 = vector.broadcast %cst_245 : f32 to vector<8x4xf32>
    %342 = arith.maximumf %340, %341 : vector<8x4xf32>
    %c0_246 = arith.constant 0 : index
    %c0_247 = arith.constant 0 : index
    %343 = vector.load %arg14[%c0_246, %c0_247] : memref<8x28xf32, #tpu.memory_space<vmem>>, vector<8x4xf32>
    tpu.vector_store %arg14[%c0_246, %c0_247], %342 {strides = array<i32>} : memref<8x28xf32, #tpu.memory_space<vmem>>, vector<8x4xf32>,
    %c0_248 = arith.constant 0 : index
    %c64_249 = arith.constant 64 : index
    %344 = vector.load %arg13[%c0_248, %c64_249] : memref<8x496xf32, #tpu.memory_space<vmem>>, vector<8x80xf32>
    %cst_250 = arith.constant dense<0.000000e+00> : vector<8x4xf32>
    %345 = tpu.matmul %344, %4, %cst_250 {dimension_numbers = #tpu.dot_dimension_numbers<[1], [0], [0], [1], [0, 0, 1, 1], [], []>} : vector<8x80xf32>, vector<80x4xf32>, vector<8x4xf32> -> vector<8x4xf32>
    %346 = vector.broadcast %6 : vector<1x4xf32> to vector<8x4xf32>
    %347 = arith.addf %345, %346 : vector<8x4xf32>
    %cst_251 = arith.constant 0.000000e+00 : f32
    %348 = vector.broadcast %cst_251 : f32 to vector<8x4xf32>
    %349 = arith.maximumf %347, %348 : vector<8x4xf32>
    %c0_252 = arith.constant 0 : index
    %c4 = arith.constant 4 : index
    %350 = vector.load %arg14[%c0_252, %c4] : memref<8x28xf32, #tpu.memory_space<vmem>>, vector<8x4xf32>
    tpu.vector_store %arg14[%c0_252, %c4], %349 {strides = array<i32>} : memref<8x28xf32, #tpu.memory_space<vmem>>, vector<8x4xf32>,
    %c0_253 = arith.constant 0 : index
    %c128_254 = arith.constant 128 : index
    %351 = vector.load %arg13[%c0_253, %c128_254] : memref<8x496xf32, #tpu.memory_space<vmem>>, vector<8x80xf32>
    %cst_255 = arith.constant dense<0.000000e+00> : vector<8x4xf32>
    %352 = tpu.matmul %351, %4, %cst_255 {dimension_numbers = #tpu.dot_dimension_numbers<[1], [0], [0], [1], [0, 0, 1, 1], [], []>} : vector<8x80xf32>, vector<80x4xf32>, vector<8x4xf32> -> vector<8x4xf32>
    %353 = vector.broadcast %6 : vector<1x4xf32> to vector<8x4xf32>
    %354 = arith.addf %352, %353 : vector<8x4xf32>
    %cst_256 = arith.constant 0.000000e+00 : f32
    %355 = vector.broadcast %cst_256 : f32 to vector<8x4xf32>
    %356 = arith.maximumf %354, %355 : vector<8x4xf32>
    %c0_257 = arith.constant 0 : index
    %c8 = arith.constant 8 : index
    %357 = vector.load %arg14[%c0_257, %c8] : memref<8x28xf32, #tpu.memory_space<vmem>>, vector<8x4xf32>
    tpu.vector_store %arg14[%c0_257, %c8], %356 {strides = array<i32>} : memref<8x28xf32, #tpu.memory_space<vmem>>, vector<8x4xf32>,
    %c0_258 = arith.constant 0 : index
    %c192_259 = arith.constant 192 : index
    %358 = vector.load %arg13[%c0_258, %c192_259] : memref<8x496xf32, #tpu.memory_space<vmem>>, vector<8x80xf32>
    %cst_260 = arith.constant dense<0.000000e+00> : vector<8x4xf32>
    %359 = tpu.matmul %358, %4, %cst_260 {dimension_numbers = #tpu.dot_dimension_numbers<[1], [0], [0], [1], [0, 0, 1, 1], [], []>} : vector<8x80xf32>, vector<80x4xf32>, vector<8x4xf32> -> vector<8x4xf32>
    %360 = vector.broadcast %6 : vector<1x4xf32> to vector<8x4xf32>
    %361 = arith.addf %359, %360 : vector<8x4xf32>
    %cst_261 = arith.constant 0.000000e+00 : f32
    %362 = vector.broadcast %cst_261 : f32 to vector<8x4xf32>
    %363 = arith.maximumf %361, %362 : vector<8x4xf32>
    %c0_262 = arith.constant 0 : index
    %c12 = arith.constant 12 : index
    %364 = vector.load %arg14[%c0_262, %c12] : memref<8x28xf32, #tpu.memory_space<vmem>>, vector<8x4xf32>
    tpu.vector_store %arg14[%c0_262, %c12], %363 {strides = array<i32>} : memref<8x28xf32, #tpu.memory_space<vmem>>, vector<8x4xf32>,
    %c0_263 = arith.constant 0 : index
    %c256_264 = arith.constant 256 : index
    %365 = vector.load %arg13[%c0_263, %c256_264] : memref<8x496xf32, #tpu.memory_space<vmem>>, vector<8x80xf32>
    %cst_265 = arith.constant dense<0.000000e+00> : vector<8x4xf32>
    %366 = tpu.matmul %365, %4, %cst_265 {dimension_numbers = #tpu.dot_dimension_numbers<[1], [0], [0], [1], [0, 0, 1, 1], [], []>} : vector<8x80xf32>, vector<80x4xf32>, vector<8x4xf32> -> vector<8x4xf32>
    %367 = vector.broadcast %6 : vector<1x4xf32> to vector<8x4xf32>
    %368 = arith.addf %366, %367 : vector<8x4xf32>
    %cst_266 = arith.constant 0.000000e+00 : f32
    %369 = vector.broadcast %cst_266 : f32 to vector<8x4xf32>
    %370 = arith.maximumf %368, %369 : vector<8x4xf32>
    %c0_267 = arith.constant 0 : index
    %c16_268 = arith.constant 16 : index
    %371 = vector.load %arg14[%c0_267, %c16_268] : memref<8x28xf32, #tpu.memory_space<vmem>>, vector<8x4xf32>
    tpu.vector_store %arg14[%c0_267, %c16_268], %370 {strides = array<i32>} : memref<8x28xf32, #tpu.memory_space<vmem>>, vector<8x4xf32>,
    %c0_269 = arith.constant 0 : index
    %c320_270 = arith.constant 320 : index
    %372 = vector.load %arg13[%c0_269, %c320_270] : memref<8x496xf32, #tpu.memory_space<vmem>>, vector<8x80xf32>
    %cst_271 = arith.constant dense<0.000000e+00> : vector<8x4xf32>
    %373 = tpu.matmul %372, %4, %cst_271 {dimension_numbers = #tpu.dot_dimension_numbers<[1], [0], [0], [1], [0, 0, 1, 1], [], []>} : vector<8x80xf32>, vector<80x4xf32>, vector<8x4xf32> -> vector<8x4xf32>
    %374 = vector.broadcast %6 : vector<1x4xf32> to vector<8x4xf32>
    %375 = arith.addf %373, %374 : vector<8x4xf32>
    %cst_272 = arith.constant 0.000000e+00 : f32
    %376 = vector.broadcast %cst_272 : f32 to vector<8x4xf32>
    %377 = arith.maximumf %375, %376 : vector<8x4xf32>
    %c0_273 = arith.constant 0 : index
    %c20_274 = arith.constant 20 : index
    %378 = vector.load %arg14[%c0_273, %c20_274] : memref<8x28xf32, #tpu.memory_space<vmem>>, vector<8x4xf32>
    tpu.vector_store %arg14[%c0_273, %c20_274], %377 {strides = array<i32>} : memref<8x28xf32, #tpu.memory_space<vmem>>, vector<8x4xf32>,
    %c0_275 = arith.constant 0 : index
    %c384_276 = arith.constant 384 : index
    %379 = vector.load %arg13[%c0_275, %c384_276] : memref<8x496xf32, #tpu.memory_space<vmem>>, vector<8x80xf32>
    %cst_277 = arith.constant dense<0.000000e+00> : vector<8x4xf32>
    %380 = tpu.matmul %379, %4, %cst_277 {dimension_numbers = #tpu.dot_dimension_numbers<[1], [0], [0], [1], [0, 0, 1, 1], [], []>} : vector<8x80xf32>, vector<80x4xf32>, vector<8x4xf32> -> vector<8x4xf32>
    %381 = vector.broadcast %6 : vector<1x4xf32> to vector<8x4xf32>
    %382 = arith.addf %380, %381 : vector<8x4xf32>
    %cst_278 = arith.constant 0.000000e+00 : f32
    %383 = vector.broadcast %cst_278 : f32 to vector<8x4xf32>
    %384 = arith.maximumf %382, %383 : vector<8x4xf32>
    %c0_279 = arith.constant 0 : index
    %c24 = arith.constant 24 : index
    %385 = vector.load %arg14[%c0_279, %c24] : memref<8x28xf32, #tpu.memory_space<vmem>>, vector<8x4xf32>
    tpu.vector_store %arg14[%c0_279, %c24], %384 {strides = array<i32>} : memref<8x28xf32, #tpu.memory_space<vmem>>, vector<8x4xf32>,
    %c0_280 = arith.constant 0 : index
    %c0_281 = arith.constant 0 : index
    %386 = vector.load %arg14[%c0_280, %c0_281] : memref<8x28xf32, #tpu.memory_space<vmem>>, vector<8x28xf32>
    %c0_282 = arith.constant 0 : index
    %c0_283 = arith.constant 0 : index
    %387 = vector.load %arg8[%c0_282, %c0_283] : memref<64x28xf32, #tpu.memory_space<vmem>>, vector<64x28xf32>
    %cst_284 = arith.constant dense<0.000000e+00> : vector<8x64xf32>
    %388 = tpu.matmul %386, %387, %cst_284 {dimension_numbers = #tpu.dot_dimension_numbers<[1], [1], [0], [0], [0, 0, 1, 0], [], []>} : vector<8x28xf32>, vector<64x28xf32>, vector<8x64xf32> -> vector<8x64xf32>
    %389 = vector.broadcast %7 : vector<1x64xf32> to vector<8x64xf32>
    %390 = arith.addf %388, %389 : vector<8x64xf32>
    %cst_285 = arith.constant 0.000000e+00 : f32
    %391 = vector.broadcast %cst_285 : f32 to vector<8x64xf32>
    %392 = arith.maximumf %390, %391 : vector<8x64xf32>
    %c0_286 = arith.constant 0 : index
    %c0_287 = arith.constant 0 : index
    %393 = vector.load %arg9[%c0_286, %c0_287] : memref<8x64xf32, #tpu.memory_space<vmem>>, vector<8x64xf32>
    %cst_288 = arith.constant dense<0.000000e+00> : vector<8x8xf32>
    %394 = tpu.matmul %393, %392, %cst_288 {dimension_numbers = #tpu.dot_dimension_numbers<[1], [1], [0], [0], [0, 0, 1, 0], [], []>} : vector<8x64xf32>, vector<8x64xf32>, vector<8x8xf32> -> vector<8x8xf32>
    %c0_289 = arith.constant 0 : index
    %c0_290 = arith.constant 0 : index
    %395 = vector.load %arg10[%c0_289, %c0_290] : memref<8x1xf32, #tpu.memory_space<vmem>>, vector<8x1xf32>
    %396 = vector.broadcast %395 : vector<8x1xf32> to vector<8x8xf32>
    %397 = arith.addf %394, %396 : vector<8x8xf32>
    %c0_291 = arith.constant 0 : index
    %c0_292 = arith.constant 0 : index
    %398 = vector.load %arg11[%c0_291, %c0_292] : memref<8x8xf32, #tpu.memory_space<vmem>>, vector<8x8xf32>
    tpu.vector_store %arg11[%c0_291, %c0_292], %397 {strides = array<i32>} : memref<8x8xf32, #tpu.memory_space<vmem>>, vector<8x8xf32>,
    return
  }
  func.func @transform_0(%arg0: i32) -> (i32, i32) {
    %c0_i32 = arith.constant 0 : i32
    %c0_i32_0 = arith.constant 0 : i32
    return %arg0, %c0_i32 : i32, i32
  }
  func.func @transform_1(%arg0: i32) -> (i32, i32) {
    %c0_i32 = arith.constant 0 : i32
    %c0_i32_0 = arith.constant 0 : i32
    %c0_i32_1 = arith.constant 0 : i32
    return %c0_i32, %c0_i32_0 : i32, i32
  }
  func.func @transform_2(%arg0: i32) -> (i32, i32) {
    %c0_i32 = arith.constant 0 : i32
    %c0_i32_0 = arith.constant 0 : i32
    %c0_i32_1 = arith.constant 0 : i32
    return %c0_i32, %c0_i32_0 : i32, i32
  }
  func.func @transform_3(%arg0: i32) -> (i32, i32) {
    %c0_i32 = arith.constant 0 : i32
    %c0_i32_0 = arith.constant 0 : i32
    %c0_i32_1 = arith.constant 0 : i32
    return %c0_i32, %c0_i32_0 : i32, i32
  }
  func.func @transform_4(%arg0: i32) -> (i32, i32) {
    %c0_i32 = arith.constant 0 : i32
    %c0_i32_0 = arith.constant 0 : i32
    %c0_i32_1 = arith.constant 0 : i32
    return %c0_i32, %c0_i32_0 : i32, i32
  }
  func.func @transform_5(%arg0: i32) -> (i32, i32) {
    %c0_i32 = arith.constant 0 : i32
    %c0_i32_0 = arith.constant 0 : i32
    %c0_i32_1 = arith.constant 0 : i32
    return %c0_i32, %c0_i32_0 : i32, i32
  }
  func.func @transform_6(%arg0: i32) -> (i32, i32) {
    %c0_i32 = arith.constant 0 : i32
    %c0_i32_0 = arith.constant 0 : i32
    %c0_i32_1 = arith.constant 0 : i32
    return %c0_i32, %c0_i32_0 : i32, i32
  }
  func.func @transform_7(%arg0: i32) -> (i32, i32) {
    %c0_i32 = arith.constant 0 : i32
    %c0_i32_0 = arith.constant 0 : i32
    %c0_i32_1 = arith.constant 0 : i32
    return %c0_i32, %c0_i32_0 : i32, i32
  }
  func.func @transform_8(%arg0: i32) -> (i32, i32) {
    %c0_i32 = arith.constant 0 : i32
    %c0_i32_0 = arith.constant 0 : i32
    %c0_i32_1 = arith.constant 0 : i32
    return %c0_i32, %c0_i32_0 : i32, i32
  }
  func.func @transform_9(%arg0: i32) -> (i32, i32) {
    %c0_i32 = arith.constant 0 : i32
    %c0_i32_0 = arith.constant 0 : i32
    %c0_i32_1 = arith.constant 0 : i32
    return %c0_i32, %c0_i32_0 : i32, i32
  }
  func.func @transform_10(%arg0: i32) -> (i32, i32) {
    %c0_i32 = arith.constant 0 : i32
    %c0_i32_0 = arith.constant 0 : i32
    return %c0_i32, %arg0 : i32, i32
  }
}

</mosaic_0001>

<llo_original>
// kernel: decoder_forward.1
$region0: #{decoder_forward.1}
  #allocation0 [shape = 'u32[]', space=smem, size = 0x4, offset = 0x4, fixed_abs, tag = 'smem constant byte address 0x4 - core index']
  #allocation1 [shape = 'u32[72,128]{1,0:T(1,128)}', space=vmem, size = 0x9000, scoped, tag = 'internal scratch']
  #allocation2 [shape = 'f32[8,2048]{1,0:T(8,128)}', space=vmem, size = 0x10000, scoped, tag = 'scratch operand']
  #allocation3 [shape = 'f32[8,496]{1,0:T(8,128)}', space=vmem, size = 0x4000, scoped, tag = 'scratch operand']
  #allocation4 [shape = 'f32[8,28]{1,0:T(8,128)}', space=vmem, size = 0x1000, scoped, tag = 'scratch operand']
  %s0 = inlined_call_operand.vmem [shape: f32[8,1024], index: 0, kind: input, shape index: {}]
  %s1 = inlined_call_operand.vmem [shape: f32[72,128], index: 1, kind: input, shape index: {}]
  %s2 = inlined_call_operand.vmem [shape: f32[64,128], index: 2, kind: input, shape index: {}]
  %s3 = inlined_call_operand.vmem [shape: f32[1,128], index: 3, kind: input, shape index: {}]
  %s4 = inlined_call_operand.vmem [shape: f32[72,16], index: 4, kind: input, shape index: {}]
  %s5 = inlined_call_operand.vmem [shape: f32[80,4], index: 5, kind: input, shape index: {}]
  %s6 = inlined_call_operand.vmem [shape: f32[1,84], index: 6, kind: input, shape index: {}]
  %s7 = inlined_call_operand.vmem [shape: f32[64,28], index: 7, kind: input, shape index: {}]
  %s8 = inlined_call_operand.vmem [shape: f32[8,64], index: 8, kind: input, shape index: {}]
  %s9 = inlined_call_operand.vmem [shape: f32[8,1], index: 9, kind: input, shape index: {}]
  %s10 = inlined_call_operand.vmem [shape: f32[8,8], index: 10, kind: output, shape index: {}]
  %s11 = sld [smem:[#allocation0]]
  $region50: #{decoder_forward.1} parent=0
    _
  %s13 = ssub.s32 1, %s11
  %s14 = scalar_select 0, %s13, %s11
  // Predicated region
  $region2: #{decoder_forward.1} parent=0 // pred_check
    _
  $region3: #{decoder_forward.1} parent=0 // pred_check_branch
    %16 = sbr.rel (0) target = $region5
  $region4: #{decoder_forward.1} parent=0 // pred_region
    _
  $region5: #{decoder_forward.1} parent=0 // pred_fallthru
    _
  // Predicated region
  $region6: #{decoder_forward.1} parent=0 // pred_check
    _
  $region7: #{decoder_forward.1} parent=0 // pred_check_branch
    %18 = sbr.rel (0) target = $region9
  $region8: #{decoder_forward.1} parent=0 // pred_region
    _
  $region9: #{decoder_forward.1} parent=0 // pred_fallthru
    _
  // Predicated region
  $region10: #{decoder_forward.1} parent=0 // pred_check
    _
  $region11: #{decoder_forward.1} parent=0 // pred_check_branch
    %20 = sbr.rel (0) target = $region13
  $region12: #{decoder_forward.1} parent=0 // pred_region
    _
  $region13: #{decoder_forward.1} parent=0 // pred_fallthru
    _
  // Predicated region
  $region14: #{decoder_forward.1} parent=0 // pred_check
    _
  $region15: #{decoder_forward.1} parent=0 // pred_check_branch
    %22 = sbr.rel (0) target = $region17
  $region16: #{decoder_forward.1} parent=0 // pred_region
    _
  $region17: #{decoder_forward.1} parent=0 // pred_fallthru
    _
  // Predicated region
  $region18: #{decoder_forward.1} parent=0 // pred_check
    _
  $region19: #{decoder_forward.1} parent=0 // pred_check_branch
    %24 = sbr.rel (0) target = $region21
  $region20: #{decoder_forward.1} parent=0 // pred_region
    _
  $region21: #{decoder_forward.1} parent=0 // pred_fallthru
    _
  // Predicated region
  $region22: #{decoder_forward.1} parent=0 // pred_check
    _
  $region23: #{decoder_forward.1} parent=0 // pred_check_branch
    %26 = sbr.rel (0) target = $region25
  $region24: #{decoder_forward.1} parent=0 // pred_region
    _
  $region25: #{decoder_forward.1} parent=0 // pred_fallthru
    _
  // Predicated region
  $region26: #{decoder_forward.1} parent=0 // pred_check
    _
  $region27: #{decoder_forward.1} parent=0 // pred_check_branch
    %28 = sbr.rel (0) target = $region29
  $region28: #{decoder_forward.1} parent=0 // pred_region
    _
  $region29: #{decoder_forward.1} parent=0 // pred_fallthru
    _
  // Predicated region
  $region30: #{decoder_forward.1} parent=0 // pred_check
    _
  $region31: #{decoder_forward.1} parent=0 // pred_check_branch
    %30 = sbr.rel (0) target = $region33
  $region32: #{decoder_forward.1} parent=0 // pred_region
    _
  $region33: #{decoder_forward.1} parent=0 // pred_fallthru
    _
  // Predicated region
  $region34: #{decoder_forward.1} parent=0 // pred_check
    _
  $region35: #{decoder_forward.1} parent=0 // pred_check_branch
    %32 = sbr.rel (0) target = $region37
  $region36: #{decoder_forward.1} parent=0 // pred_region
    _
  $region37: #{decoder_forward.1} parent=0 // pred_fallthru
    _
  // Predicated region
  $region38: #{decoder_forward.1} parent=0 // pred_check
    _
  $region39: #{decoder_forward.1} parent=0 // pred_check_branch
    %34 = sbr.rel (0) target = $region41
  $region40: #{decoder_forward.1} parent=0 // pred_region
    _
  $region41: #{decoder_forward.1} parent=0 // pred_fallthru
    _
  %v35 = vld [vmem:[%s1] sm:$0xff]
  %v36 = vld [vmem:[%s1 + $0x8] sm:$0xff]
  %v37 = vld [vmem:[%s1 + $0x10] sm:$0xff]
  %v38 = vld [vmem:[%s1 + $0x18] sm:$0xff]
  %v39 = vld [vmem:[%s1 + $0x20] sm:$0xff]
  %v40 = vld [vmem:[%s1 + $0x28] sm:$0xff]
  %v41 = vld [vmem:[%s1 + $0x30] sm:$0xff]
  %v42 = vld [vmem:[%s1 + $0x38] sm:$0xff]
  %v43 = vld [vmem:[%s1 + $0x40] sm:$0xff]
  %v44 = vld [vmem:[%s2] sm:$0xff]
  %v45 = vld [vmem:[%s2 + $0x8] sm:$0xff]
  %v46 = vld [vmem:[%s2 + $0x10] sm:$0xff]
  %v47 = vld [vmem:[%s2 + $0x18] sm:$0xff]
  %v48 = vld [vmem:[%s2 + $0x20] sm:$0xff]
  %v49 = vld [vmem:[%s2 + $0x28] sm:$0xff]
  %v50 = vld [vmem:[%s2 + $0x30] sm:$0xff]
  %v51 = vld [vmem:[%s2 + $0x38] sm:$0xff]
  %v52 = vld [vmem:[%s3] sm:$0x1]
  %v53 = vld [vmem:[%s4] sm:$0xff]
  %v54 = vld [vmem:[%s4 + $0x8] sm:$0xff]
  %v55 = vld [vmem:[%s4 + $0x10] sm:$0xff]
  %v56 = vld [vmem:[%s4 + $0x18] sm:$0xff]
  %v57 = vld [vmem:[%s4 + $0x20] sm:$0xff]
  %v58 = vld [vmem:[%s4 + $0x28] sm:$0xff]
  %v59 = vld [vmem:[%s4 + $0x30] sm:$0xff]
  %v60 = vld [vmem:[%s4 + $0x38] sm:$0xff]
  %v61 = vld [vmem:[%s4 + $0x40] sm:$0xff]
  %v62 = vld [vmem:[%s5] sm:$0xff]
  %v63 = vld [vmem:[%s5 + $0x8] sm:$0xff]
  %v64 = vld [vmem:[%s5 + $0x10] sm:$0xff]
  %v65 = vld [vmem:[%s5 + $0x18] sm:$0xff]
  %v66 = vld [vmem:[%s5 + $0x20] sm:$0xff]
  %v67 = vld [vmem:[%s5 + $0x28] sm:$0xff]
  %v68 = vld [vmem:[%s5 + $0x30] sm:$0xff]
  %v69 = vld [vmem:[%s5 + $0x38] sm:$0xff]
  %v70 = vld [vmem:[%s5 + $0x40] sm:$0xff]
  %v71 = vld [vmem:[%s5 + $0x48] sm:$0xff]
  %v72 = vld [vmem:[%s6] sm:$0x1]
  %v73 = vld [vmem:[%s0] sm:$0xff]
  %v75 = vperm.slane %v52, 0
  %vm77 = vcmask 588800
  %v79 = vsel %vm77, %v73, 0
  %81 = vmatpush.msra.mxu0 0.0
  %82 = vmatpush.msra.mxu0 0.0
  %83 = vmatpush.msra.mxu0 0.0
  %84 = vmatpush.msra.mxu0 0.0
  %85 = vmatpush.msra.mxu0 0.0
  %86 = vmatpush.msra.mxu0 0.0
  %87 = vmatpush.msra.mxu0 0.0
  %88 = vmatpush.msra.mxu0 %v43
  %89 = vmatpush.msra.mxu0 %v42
  %90 = vmatpush.msra.mxu0 %v41
  %91 = vmatpush.msra.mxu0 %v40
  %92 = vmatpush.msra.mxu0 %v39
  %93 = vmatpush.msra.mxu0 %v38
  %94 = vmatpush.msra.mxu0 %v37
  %95 = vmatpush.msra.mxu0 %v36
  %96 = vmatpush.msra.mxu0 %v35
  %97 = vmatmul.f32.gmra.mxu0 %v79
  %v98 = vpop.f32.mrf.mxu0
  %v99 = vadd.f32 %v75, %v98
  %100 = vdwg.mxu0
  %v101 = vmax.f32 %v99, 0.0
  %102 = vst [vmem:[#allocation2] sm:$0xff] %v101
  %v103 = vld [vmem:[%s0] sm:$0xff]
  %v104 = vld [vmem:[%s0 + $0x8] sm:$0xff]
  %107 = vrot.lane.b32.xlu0 %v103, 64
  %v108 = vpop.permute.xlu0 %107
  %109 = vrot.lane.b32.xlu0 %v104, 64
  %v110 = vpop.permute.xlu0 %109
  %vm111 = vcmask 523264
  %v112 = vsel %vm111, %v108, %v110
  %v113 = vsel %vm77, %v112, 0
  %115 = vmatpush.msra.mxu0 0.0
  %116 = vmatpush.msra.mxu0 0.0
  %117 = vmatpush.msra.mxu0 0.0
  %118 = vmatpush.msra.mxu0 0.0
  %119 = vmatpush.msra.mxu0 0.0
  %120 = vmatpush.msra.mxu0 0.0
  %121 = vmatpush.msra.mxu0 0.0
  %122 = vmatpush.msra.mxu0 %v43
  %123 = vmatpush.msra.mxu0 %v42
  %124 = vmatpush.msra.mxu0 %v41
  %125 = vmatpush.msra.mxu0 %v40
  %126 = vmatpush.msra.mxu0 %v39
  %127 = vmatpush.msra.mxu0 %v38
  %128 = vmatpush.msra.mxu0 %v37
  %129 = vmatpush.msra.mxu0 %v36
  %130 = vmatpush.msra.mxu0 %v35
  %131 = vmatmul.f32.gmra.mxu0 %v113
  %v132 = vpop.f32.mrf.mxu0
  %v133 = vadd.f32 %v75, %v132
  %134 = vdwg.mxu0
  %v135 = vmax.f32 %v133, 0.0
  %136 = vst [vmem:[#allocation2 + $0x8] sm:$0xff] %v135
  %v137 = vld [vmem:[%s0 + $0x8] sm:$0xff]
  %v139 = vsel %vm77, %v137, 0
  %141 = vmatpush.msra.mxu0 0.0
  %142 = vmatpush.msra.mxu0 0.0
  %143 = vmatpush.msra.mxu0 0.0
  %144 = vmatpush.msra.mxu0 0.0
  %145 = vmatpush.msra.mxu0 0.0
  %146 = vmatpush.msra.mxu0 0.0
  %147 = vmatpush.msra.mxu0 0.0
  %148 = vmatpush.msra.mxu0 %v43
  %149 = vmatpush.msra.mxu0 %v42
  %150 = vmatpush.msra.mxu0 %v41
  %151 = vmatpush.msra.mxu0 %v40
  %152 = vmatpush.msra.mxu0 %v39
  %153 = vmatpush.msra.mxu0 %v38
  %154 = vmatpush.msra.mxu0 %v37
  %155 = vmatpush.msra.mxu0 %v36
  %156 = vmatpush.msra.mxu0 %v35
  %157 = vmatmul.f32.gmra.mxu0 %v139
  %v158 = vpop.f32.mrf.mxu0
  %v159 = vadd.f32 %v75, %v158
  %160 = vdwg.mxu0
  %v161 = vmax.f32 %v159, 0.0
  %162 = vst [vmem:[#allocation2 + $0x10] sm:$0xff] %v161
  %v163 = vld [vmem:[%s0 + $0x8] sm:$0xff]
  %v164 = vld [vmem:[%s0 + $0x10] sm:$0xff]
  %167 = vrot.lane.b32.xlu0 %v163, 64
  %v168 = vpop.permute.xlu0 %167
  %169 = vrot.lane.b32.xlu0 %v164, 64
  %v170 = vpop.permute.xlu0 %169
  %v171 = vsel %vm111, %v168, %v170
  %v172 = vsel %vm77, %v171, 0
  %174 = vmatpush.msra.mxu0 0.0
  %175 = vmatpush.msra.mxu0 0.0
  %176 = vmatpush.msra.mxu0 0.0
  %177 = vmatpush.msra.mxu0 0.0
  %178 = vmatpush.msra.mxu0 0.0
  %179 = vmatpush.msra.mxu0 0.0
  %180 = vmatpush.msra.mxu0 0.0
  %181 = vmatpush.msra.mxu0 %v43
  %182 = vmatpush.msra.mxu0 %v42
  %183 = vmatpush.msra.mxu0 %v41
  %184 = vmatpush.msra.mxu0 %v40
  %185 = vmatpush.msra.mxu0 %v39
  %186 = vmatpush.msra.mxu0 %v38
  %187 = vmatpush.msra.mxu0 %v37
  %188 = vmatpush.msra.mxu0 %v36
  %189 = vmatpush.msra.mxu0 %v35
  %190 = vmatmul.f32.gmra.mxu0 %v172
  %v191 = vpop.f32.mrf.mxu0
  %v192 = vadd.f32 %v75, %v191
  %193 = vdwg.mxu0
  %v194 = vmax.f32 %v192, 0.0
  %195 = vst [vmem:[#allocation2 + $0x18] sm:$0xff] %v194
  %v196 = vld [vmem:[%s0 + $0x10] sm:$0xff]
  %v198 = vsel %vm77, %v196, 0
  %200 = vmatpush.msra.mxu0 0.0
  %201 = vmatpush.msra.mxu0 0.0
  %202 = vmatpush.msra.mxu0 0.0
  %203 = vmatpush.msra.mxu0 0.0
  %204 = vmatpush.msra.mxu0 0.0
  %205 = vmatpush.msra.mxu0 0.0
  %206 = vmatpush.msra.mxu0 0.0
  %207 = vmatpush.msra.mxu0 %v43
  %208 = vmatpush.msra.mxu0 %v42
  %209 = vmatpush.msra.mxu0 %v41
  %210 = vmatpush.msra.mxu0 %v40
  %211 = vmatpush.msra.mxu0 %v39
  %212 = vmatpush.msra.mxu0 %v38
  %213 = vmatpush.msra.mxu0 %v37
  %214 = vmatpush.msra.mxu0 %v36
  %215 = vmatpush.msra.mxu0 %v35
  %216 = vmatmul.f32.gmra.mxu0 %v198
  %v217 = vpop.f32.mrf.mxu0
  %v218 = vadd.f32 %v75, %v217
  %219 = vdwg.mxu0
  %v220 = vmax.f32 %v218, 0.0
  %221 = vst [vmem:[#allocation2 + $0x20] sm:$0xff] %v220
  %v222 = vld [vmem:[%s0 + $0x10] sm:$0xff]
  %v223 = vld [vmem:[%s0 + $0x18] sm:$0xff]
  %226 = vrot.lane.b32.xlu0 %v222, 64
  %v227 = vpop.permute.xlu0 %226
  %228 = vrot.lane.b32.xlu0 %v223, 64
  %v229 = vpop.permute.xlu0 %228
  %v230 = vsel %vm111, %v227, %v229
  %v231 = vsel %vm77, %v230, 0
  %233 = vmatpush.msra.mxu0 0.0
  %234 = vmatpush.msra.mxu0 0.0
  %235 = vmatpush.msra.mxu0 0.0
  %236 = vmatpush.msra.mxu0 0.0
  %237 = vmatpush.msra.mxu0 0.0
  %238 = vmatpush.msra.mxu0 0.0
  %239 = vmatpush.msra.mxu0 0.0
  %240 = vmatpush.msra.mxu0 %v43
  %241 = vmatpush.msra.mxu0 %v42
  %242 = vmatpush.msra.mxu0 %v41
  %243 = vmatpush.msra.mxu0 %v40
  %244 = vmatpush.msra.mxu0 %v39
  %245 = vmatpush.msra.mxu0 %v38
  %246 = vmatpush.msra.mxu0 %v37
  %247 = vmatpush.msra.mxu0 %v36
  %248 = vmatpush.msra.mxu0 %v35
  %249 = vmatmul.f32.gmra.mxu0 %v231
  %v250 = vpop.f32.mrf.mxu0
  %v251 = vadd.f32 %v75, %v250
  %252 = vdwg.mxu0
  %v253 = vmax.f32 %v251, 0.0
  %254 = vst [vmem:[#allocation2 + $0x28] sm:$0xff] %v253
  %v255 = vld [vmem:[%s0 + $0x18] sm:$0xff]
  %v257 = vsel %vm77, %v255, 0
  %259 = vmatpush.msra.mxu0 0.0
  %260 = vmatpush.msra.mxu0 0.0
  %261 = vmatpush.msra.mxu0 0.0
  %262 = vmatpush.msra.mxu0 0.0
  %263 = vmatpush.msra.mxu0 0.0
  %264 = vmatpush.msra.mxu0 0.0
  %265 = vmatpush.msra.mxu0 0.0
  %266 = vmatpush.msra.mxu0 %v43
  %267 = vmatpush.msra.mxu0 %v42
  %268 = vmatpush.msra.mxu0 %v41
  %269 = vmatpush.msra.mxu0 %v40
  %270 = vmatpush.msra.mxu0 %v39
  %271 = vmatpush.msra.mxu0 %v38
  %272 = vmatpush.msra.mxu0 %v37
  %273 = vmatpush.msra.mxu0 %v36
  %274 = vmatpush.msra.mxu0 %v35
  %275 = vmatmul.f32.gmra.mxu0 %v257
  %v276 = vpop.f32.mrf.mxu0
  %v277 = vadd.f32 %v75, %v276
  %278 = vdwg.mxu0
  %v279 = vmax.f32 %v277, 0.0
  %280 = vst [vmem:[#allocation2 + $0x30] sm:$0xff] %v279
  %v281 = vld [vmem:[%s0 + $0x18] sm:$0xff]
  %v282 = vld [vmem:[%s0 + $0x20] sm:$0xff]
  %285 = vrot.lane.b32.xlu0 %v281, 64
  %v286 = vpop.permute.xlu0 %285
  %287 = vrot.lane.b32.xlu0 %v282, 64
  %v288 = vpop.permute.xlu0 %287
  %v289 = vsel %vm111, %v286, %v288
  %v290 = vsel %vm77, %v289, 0
  %292 = vmatpush.msra.mxu0 0.0
  %293 = vmatpush.msra.mxu0 0.0
  %294 = vmatpush.msra.mxu0 0.0
  %295 = vmatpush.msra.mxu0 0.0
  %296 = vmatpush.msra.mxu0 0.0
  %297 = vmatpush.msra.mxu0 0.0
  %298 = vmatpush.msra.mxu0 0.0
  %299 = vmatpush.msra.mxu0 %v43
  %300 = vmatpush.msra.mxu0 %v42
  %301 = vmatpush.msra.mxu0 %v41
  %302 = vmatpush.msra.mxu0 %v40
  %303 = vmatpush.msra.mxu0 %v39
  %304 = vmatpush.msra.mxu0 %v38
  %305 = vmatpush.msra.mxu0 %v37
  %306 = vmatpush.msra.mxu0 %v36
  %307 = vmatpush.msra.mxu0 %v35
  %308 = vmatmul.f32.gmra.mxu0 %v290
  %v309 = vpop.f32.mrf.mxu0
  %v310 = vadd.f32 %v75, %v309
  %311 = vdwg.mxu0
  %v312 = vmax.f32 %v310, 0.0
  %313 = vst [vmem:[#allocation2 + $0x38] sm:$0xff] %v312
  %v314 = vld [vmem:[%s0 + $0x20] sm:$0xff]
  %v316 = vsel %vm77, %v314, 0
  %318 = vmatpush.msra.mxu0 0.0
  %319 = vmatpush.msra.mxu0 0.0
  %320 = vmatpush.msra.mxu0 0.0
  %321 = vmatpush.msra.mxu0 0.0
  %322 = vmatpush.msra.mxu0 0.0
  %323 = vmatpush.msra.mxu0 0.0
  %324 = vmatpush.msra.mxu0 0.0
  %325 = vmatpush.msra.mxu0 %v43
  %326 = vmatpush.msra.mxu0 %v42
  %327 = vmatpush.msra.mxu0 %v41
  %328 = vmatpush.msra.mxu0 %v40
  %329 = vmatpush.msra.mxu0 %v39
  %330 = vmatpush.msra.mxu0 %v38
  %331 = vmatpush.msra.mxu0 %v37
  %332 = vmatpush.msra.mxu0 %v36
  %333 = vmatpush.msra.mxu0 %v35
  %334 = vmatmul.f32.gmra.mxu0 %v316
  %v335 = vpop.f32.mrf.mxu0
  %v336 = vadd.f32 %v75, %v335
  %337 = vdwg.mxu0
  %v338 = vmax.f32 %v336, 0.0
  %339 = vst [vmem:[#allocation2 + $0x40] sm:$0xff] %v338
  %v340 = vld [vmem:[%s0 + $0x20] sm:$0xff]
  %v341 = vld [vmem:[%s0 + $0x28] sm:$0xff]
  %344 = vrot.lane.b32.xlu0 %v340, 64
  %v345 = vpop.permute.xlu0 %344
  %346 = vrot.lane.b32.xlu0 %v341, 64
  %v347 = vpop.permute.xlu0 %346
  %v348 = vsel %vm111, %v345, %v347
  %v349 = vsel %vm77, %v348, 0
  %351 = vmatpush.msra.mxu0 0.0
  %352 = vmatpush.msra.mxu0 0.0
  %353 = vmatpush.msra.mxu0 0.0
  %354 = vmatpush.msra.mxu0 0.0
  %355 = vmatpush.msra.mxu0 0.0
  %356 = vmatpush.msra.mxu0 0.0
  %357 = vmatpush.msra.mxu0 0.0
  %358 = vmatpush.msra.mxu0 %v43
  %359 = vmatpush.msra.mxu0 %v42
  %360 = vmatpush.msra.mxu0 %v41
  %361 = vmatpush.msra.mxu0 %v40
  %362 = vmatpush.msra.mxu0 %v39
  %363 = vmatpush.msra.mxu0 %v38
  %364 = vmatpush.msra.mxu0 %v37
  %365 = vmatpush.msra.mxu0 %v36
  %366 = vmatpush.msra.mxu0 %v35
  %367 = vmatmul.f32.gmra.mxu0 %v349
  %v368 = vpop.f32.mrf.mxu0
  %v369 = vadd.f32 %v75, %v368
  %370 = vdwg.mxu0
  %v371 = vmax.f32 %v369, 0.0
  %372 = vst [vmem:[#allocation2 + $0x48] sm:$0xff] %v371
  %v373 = vld [vmem:[%s0 + $0x28] sm:$0xff]
  %v375 = vsel %vm77, %v373, 0
  %377 = vmatpush.msra.mxu0 0.0
  %378 = vmatpush.msra.mxu0 0.0
  %379 = vmatpush.msra.mxu0 0.0
  %380 = vmatpush.msra.mxu0 0.0
  %381 = vmatpush.msra.mxu0 0.0
  %382 = vmatpush.msra.mxu0 0.0
  %383 = vmatpush.msra.mxu0 0.0
  %384 = vmatpush.msra.mxu0 %v43
  %385 = vmatpush.msra.mxu0 %v42
  %386 = vmatpush.msra.mxu0 %v41
  %387 = vmatpush.msra.mxu0 %v40
  %388 = vmatpush.msra.mxu0 %v39
  %389 = vmatpush.msra.mxu0 %v38
  %390 = vmatpush.msra.mxu0 %v37
  %391 = vmatpush.msra.mxu0 %v36
  %392 = vmatpush.msra.mxu0 %v35
  %393 = vmatmul.f32.gmra.mxu0 %v375
  %v394 = vpop.f32.mrf.mxu0
  %v395 = vadd.f32 %v75, %v394
  %396 = vdwg.mxu0
  %v397 = vmax.f32 %v395, 0.0
  %398 = vst [vmem:[#allocation2 + $0x50] sm:$0xff] %v397
  %v399 = vld [vmem:[%s0 + $0x28] sm:$0xff]
  %v400 = vld [vmem:[%s0 + $0x30] sm:$0xff]
  %403 = vrot.lane.b32.xlu0 %v399, 64
  %v404 = vpop.permute.xlu0 %403
  %405 = vrot.lane.b32.xlu0 %v400, 64
  %v406 = vpop.permute.xlu0 %405
  %v407 = vsel %vm111, %v404, %v406
  %v408 = vsel %vm77, %v407, 0
  %410 = vmatpush.msra.mxu0 0.0
  %411 = vmatpush.msra.mxu0 0.0
  %412 = vmatpush.msra.mxu0 0.0
  %413 = vmatpush.msra.mxu0 0.0
  %414 = vmatpush.msra.mxu0 0.0
  %415 = vmatpush.msra.mxu0 0.0
  %416 = vmatpush.msra.mxu0 0.0
  %417 = vmatpush.msra.mxu0 %v43
  %418 = vmatpush.msra.mxu0 %v42
  %419 = vmatpush.msra.mxu0 %v41
  %420 = vmatpush.msra.mxu0 %v40
  %421 = vmatpush.msra.mxu0 %v39
  %422 = vmatpush.msra.mxu0 %v38
  %423 = vmatpush.msra.mxu0 %v37
  %424 = vmatpush.msra.mxu0 %v36
  %425 = vmatpush.msra.mxu0 %v35
  %426 = vmatmul.f32.gmra.mxu0 %v408
  %v427 = vpop.f32.mrf.mxu0
  %v428 = vadd.f32 %v75, %v427
  %429 = vdwg.mxu0
  %v430 = vmax.f32 %v428, 0.0
  %431 = vst [vmem:[#allocation2 + $0x58] sm:$0xff] %v430
  %v432 = vld [vmem:[%s0 + $0x30] sm:$0xff]
  %v434 = vsel %vm77, %v432, 0
  %436 = vmatpush.msra.mxu0 0.0
  %437 = vmatpush.msra.mxu0 0.0
  %438 = vmatpush.msra.mxu0 0.0
  %439 = vmatpush.msra.mxu0 0.0
  %440 = vmatpush.msra.mxu0 0.0
  %441 = vmatpush.msra.mxu0 0.0
  %442 = vmatpush.msra.mxu0 0.0
  %443 = vmatpush.msra.mxu0 %v43
  %444 = vmatpush.msra.mxu0 %v42
  %445 = vmatpush.msra.mxu0 %v41
  %446 = vmatpush.msra.mxu0 %v40
  %447 = vmatpush.msra.mxu0 %v39
  %448 = vmatpush.msra.mxu0 %v38
  %449 = vmatpush.msra.mxu0 %v37
  %450 = vmatpush.msra.mxu0 %v36
  %451 = vmatpush.msra.mxu0 %v35
  %452 = vmatmul.f32.gmra.mxu0 %v434
  %v453 = vpop.f32.mrf.mxu0
  %v454 = vadd.f32 %v75, %v453
  %455 = vdwg.mxu0
  %v456 = vmax.f32 %v454, 0.0
  %457 = vst [vmem:[#allocation2 + $0x60] sm:$0xff] %v456
  %v458 = vld [vmem:[%s0 + $0x30] sm:$0xff]
  %v459 = vld [vmem:[%s0 + $0x38] sm:$0xff]
  %462 = vrot.lane.b32.xlu0 %v458, 64
  %v463 = vpop.permute.xlu0 %462
  %464 = vrot.lane.b32.xlu0 %v459, 64
  %v465 = vpop.permute.xlu0 %464
  %v466 = vsel %vm111, %v463, %v465
  %v467 = vsel %vm77, %v466, 0
  %469 = vmatpush.msra.mxu0 0.0
  %470 = vmatpush.msra.mxu0 0.0
  %471 = vmatpush.msra.mxu0 0.0
  %472 = vmatpush.msra.mxu0 0.0
  %473 = vmatpush.msra.mxu0 0.0
  %474 = vmatpush.msra.mxu0 0.0
  %475 = vmatpush.msra.mxu0 0.0
  %476 = vmatpush.msra.mxu0 %v43
  %477 = vmatpush.msra.mxu0 %v42
  %478 = vmatpush.msra.mxu0 %v41
  %479 = vmatpush.msra.mxu0 %v40
  %480 = vmatpush.msra.mxu0 %v39
  %481 = vmatpush.msra.mxu0 %v38
  %482 = vmatpush.msra.mxu0 %v37
  %483 = vmatpush.msra.mxu0 %v36
  %484 = vmatpush.msra.mxu0 %v35
  %485 = vmatmul.f32.gmra.mxu0 %v467
  %v486 = vpop.f32.mrf.mxu0
  %v487 = vadd.f32 %v75, %v486
  %488 = vdwg.mxu0
  %v489 = vmax.f32 %v487, 0.0
  %490 = vst [vmem:[#allocation2 + $0x68] sm:$0xff] %v489
  %v491 = vld [vmem:[%s0 + $0x38] sm:$0xff]
  %v493 = vsel %vm77, %v491, 0
  %495 = vmatpush.msra.mxu0 0.0
  %496 = vmatpush.msra.mxu0 0.0
  %497 = vmatpush.msra.mxu0 0.0
  %498 = vmatpush.msra.mxu0 0.0
  %499 = vmatpush.msra.mxu0 0.0
  %500 = vmatpush.msra.mxu0 0.0
  %501 = vmatpush.msra.mxu0 0.0
  %502 = vmatpush.msra.mxu0 %v43
  %503 = vmatpush.msra.mxu0 %v42
  %504 = vmatpush.msra.mxu0 %v41
  %505 = vmatpush.msra.mxu0 %v40
  %506 = vmatpush.msra.mxu0 %v39
  %507 = vmatpush.msra.mxu0 %v38
  %508 = vmatpush.msra.mxu0 %v37
  %509 = vmatpush.msra.mxu0 %v36
  %510 = vmatpush.msra.mxu0 %v35
  %511 = vmatmul.f32.gmra.mxu0 %v493
  %v512 = vpop.f32.mrf.mxu0
  %v513 = vadd.f32 %v75, %v512
  %514 = vdwg.mxu0
  %v515 = vmax.f32 %v513, 0.0
  %516 = vst [vmem:[#allocation2 + $0x70] sm:$0xff] %v515
  %v517 = vld [vmem:[%s0 + $0x38] sm:$0xff]
  %519 = vrot.lane.b32.xlu0 %v517, 64
  %v520 = vpop.permute.xlu0 %519
  %v521 = vsel %vm111, %v520, 0
  %523 = vmatpush.msra.mxu0 0.0
  %524 = vmatpush.msra.mxu0 0.0
  %525 = vmatpush.msra.mxu0 0.0
  %526 = vmatpush.msra.mxu0 0.0
  %527 = vmatpush.msra.mxu0 0.0
  %528 = vmatpush.msra.mxu0 0.0
  %529 = vmatpush.msra.mxu0 0.0
  %530 = vmatpush.msra.mxu0 0.0
  %531 = vmatpush.msra.mxu0 %v51
  %532 = vmatpush.msra.mxu0 %v50
  %533 = vmatpush.msra.mxu0 %v49
  %534 = vmatpush.msra.mxu0 %v48
  %535 = vmatpush.msra.mxu0 %v47
  %536 = vmatpush.msra.mxu0 %v46
  %537 = vmatpush.msra.mxu0 %v45
  %538 = vmatpush.msra.mxu0 %v44
  %539 = vmatmul.f32.gmra.mxu0 %v521
  %v540 = vpop.f32.mrf.mxu0
  %v541 = vadd.f32 %v75, %v540
  %542 = vdwg.mxu0
  %v543 = vmax.f32 %v541, 0.0
  %544 = vst [vmem:[#allocation2 + $0x78] sm:$0xff] %v543
  %v545 = vld [vmem:[#allocation2] sm:$0xff]
  %v547 = vperm.slane %v72, 0
  %v550 = vsel %vm77, %v545, 0
  %552 = vmatpush.msra.mxu0 0.0
  %553 = vmatpush.msra.mxu0 0.0
  %554 = vmatpush.msra.mxu0 0.0
  %555 = vmatpush.msra.mxu0 0.0
  %556 = vmatpush.msra.mxu0 0.0
  %557 = vmatpush.msra.mxu0 0.0
  %558 = vmatpush.msra.mxu0 0.0
  %559 = vmatpush.msra.mxu0 %v61
  %560 = vmatpush.msra.mxu0 %v60
  %561 = vmatpush.msra.mxu0 %v59
  %562 = vmatpush.msra.mxu0 %v58
  %563 = vmatpush.msra.mxu0 %v57
  %564 = vmatpush.msra.mxu0 %v56
  %565 = vmatpush.msra.mxu0 %v55
  %566 = vmatpush.msra.mxu0 %v54
  %567 = vmatpush.msra.mxu0 %v53
  %568 = vmatmul.f32.gmra.mxu0 %v550
  %v569 = vpop.f32.mrf.mxu0
  %v570 = vadd.f32 %v547, %v569
  %571 = vdwg.mxu0
  %v572 = vmax.f32 %v570, 0.0
  %vm573 = vcmask 130048
  %574 = vst.msk [vmem:[#allocation3] sm:$0xff] %vm573, %v572
  %v575 = vld [vmem:[#allocation2] sm:$0xff]
  %v576 = vld [vmem:[#allocation2 + $0x8] sm:$0xff]
  %579 = vrot.lane.b32.xlu0 %v575, 64
  %v580 = vpop.permute.xlu0 %579
  %581 = vrot.lane.b32.xlu0 %v576, 64
  %v582 = vpop.permute.xlu0 %581
  %v583 = vsel %vm111, %v580, %v582
  %v584 = vsel %vm77, %v583, 0
  %586 = vmatpush.msra.mxu0 0.0
  %587 = vmatpush.msra.mxu0 0.0
  %588 = vmatpush.msra.mxu0 0.0
  %589 = vmatpush.msra.mxu0 0.0
  %590 = vmatpush.msra.mxu0 0.0
  %591 = vmatpush.msra.mxu0 0.0
  %592 = vmatpush.msra.mxu0 0.0
  %593 = vmatpush.msra.mxu0 %v61
  %594 = vmatpush.msra.mxu0 %v60
  %595 = vmatpush.msra.mxu0 %v59
  %596 = vmatpush.msra.mxu0 %v58
  %597 = vmatpush.msra.mxu0 %v57
  %598 = vmatpush.msra.mxu0 %v56
  %599 = vmatpush.msra.mxu0 %v55
  %600 = vmatpush.msra.mxu0 %v54
  %601 = vmatpush.msra.mxu0 %v53
  %602 = vmatmul.f32.gmra.mxu0 %v584
  %v603 = vpop.f32.mrf.mxu0
  %v604 = vadd.f32 %v547, %v603
  %605 = vdwg.mxu0
  %v606 = vmax.f32 %v604, 0.0
  %608 = vrot.lane.b32.xlu0 %v606, 16
  %v609 = vpop.permute.xlu0 %608
  %vm611 = vcmask 261248
  %612 = vst.msk [vmem:[#allocation3] sm:$0xff] %vm611, %v609
  %v613 = vld [vmem:[#allocation2 + $0x8] sm:$0xff]
  %v615 = vsel %vm77, %v613, 0
  %617 = vmatpush.msra.mxu0 0.0
  %618 = vmatpush.msra.mxu0 0.0
  %619 = vmatpush.msra.mxu0 0.0
  %620 = vmatpush.msra.mxu0 0.0
  %621 = vmatpush.msra.mxu0 0.0
  %622 = vmatpush.msra.mxu0 0.0
  %623 = vmatpush.msra.mxu0 0.0
  %624 = vmatpush.msra.mxu0 %v61
  %625 = vmatpush.msra.mxu0 %v60
  %626 = vmatpush.msra.mxu0 %v59
  %627 = vmatpush.msra.mxu0 %v58
  %628 = vmatpush.msra.mxu0 %v57
  %629 = vmatpush.msra.mxu0 %v56
  %630 = vmatpush.msra.mxu0 %v55
  %631 = vmatpush.msra.mxu0 %v54
  %632 = vmatpush.msra.mxu0 %v53
  %633 = vmatmul.f32.gmra.mxu0 %v615
  %v634 = vpop.f32.mrf.mxu0
  %v635 = vadd.f32 %v547, %v634
  %636 = vdwg.mxu0
  %v637 = vmax.f32 %v635, 0.0
  %639 = vrot.lane.b32.xlu0 %v637, 32
  %v640 = vpop.permute.xlu0 %639
  %vm642 = vcmask 392448
  %643 = vst.msk [vmem:[#allocation3] sm:$0xff] %vm642, %v640
  %v644 = vld [vmem:[#allocation2 + $0x8] sm:$0xff]
  %v645 = vld [vmem:[#allocation2 + $0x10] sm:$0xff]
  %648 = vrot.lane.b32.xlu0 %v644, 64
  %v649 = vpop.permute.xlu0 %648
  %650 = vrot.lane.b32.xlu0 %v645, 64
  %v651 = vpop.permute.xlu0 %650
  %v652 = vsel %vm111, %v649, %v651
  %v653 = vsel %vm77, %v652, 0
  %655 = vmatpush.msra.mxu0 0.0
  %656 = vmatpush.msra.mxu0 0.0
  %657 = vmatpush.msra.mxu0 0.0
  %658 = vmatpush.msra.mxu0 0.0
  %659 = vmatpush.msra.mxu0 0.0
  %660 = vmatpush.msra.mxu0 0.0
  %661 = vmatpush.msra.mxu0 0.0
  %662 = vmatpush.msra.mxu0 %v61
  %663 = vmatpush.msra.mxu0 %v60
  %664 = vmatpush.msra.mxu0 %v59
  %665 = vmatpush.msra.mxu0 %v58
  %666 = vmatpush.msra.mxu0 %v57
  %667 = vmatpush.msra.mxu0 %v56
  %668 = vmatpush.msra.mxu0 %v55
  %669 = vmatpush.msra.mxu0 %v54
  %670 = vmatpush.msra.mxu0 %v53
  %671 = vmatmul.f32.gmra.mxu0 %v653
  %v672 = vpop.f32.mrf.mxu0
  %v673 = vadd.f32 %v547, %v672
  %674 = vdwg.mxu0
  %v675 = vmax.f32 %v673, 0.0
  %677 = vrot.lane.b32.xlu0 %v675, 48
  %v678 = vpop.permute.xlu0 %677
  %vm680 = vcmask 523648
  %681 = vst.msk [vmem:[#allocation3] sm:$0xff] %vm680, %v678
  %v682 = vld [vmem:[#allocation2 + $0x10] sm:$0xff]
  %v684 = vsel %vm77, %v682, 0
  %686 = vmatpush.msra.mxu0 0.0
  %687 = vmatpush.msra.mxu0 0.0
  %688 = vmatpush.msra.mxu0 0.0
  %689 = vmatpush.msra.mxu0 0.0
  %690 = vmatpush.msra.mxu0 0.0
  %691 = vmatpush.msra.mxu0 0.0
  %692 = vmatpush.msra.mxu0 0.0
  %693 = vmatpush.msra.mxu0 %v61
  %694 = vmatpush.msra.mxu0 %v60
  %695 = vmatpush.msra.mxu0 %v59
  %696 = vmatpush.msra.mxu0 %v58
  %697 = vmatpush.msra.mxu0 %v57
  %698 = vmatpush.msra.mxu0 %v56
  %699 = vmatpush.msra.mxu0 %v55
  %700 = vmatpush.msra.mxu0 %v54
  %701 = vmatpush.msra.mxu0 %v53
  %702 = vmatmul.f32.gmra.mxu0 %v684
  %v703 = vpop.f32.mrf.mxu0
  %v704 = vadd.f32 %v547, %v703
  %705 = vdwg.mxu0
  %v706 = vmax.f32 %v704, 0.0
  %708 = vrot.lane.b32.xlu0 %v706, 64
  %v709 = vpop.permute.xlu0 %708
  %vm711 = vcmask 654848
  %712 = vst.msk [vmem:[#allocation3] sm:$0xff] %vm711, %v709
  %v713 = vld [vmem:[#allocation2 + $0x10] sm:$0xff]
  %v714 = vld [vmem:[#allocation2 + $0x18] sm:$0xff]
  %717 = vrot.lane.b32.xlu0 %v713, 64
  %v718 = vpop.permute.xlu0 %717
  %719 = vrot.lane.b32.xlu0 %v714, 64
  %v720 = vpop.permute.xlu0 %719
  %v721 = vsel %vm111, %v718, %v720
  %v722 = vsel %vm77, %v721, 0
  %724 = vmatpush.msra.mxu0 0.0
  %725 = vmatpush.msra.mxu0 0.0
  %726 = vmatpush.msra.mxu0 0.0
  %727 = vmatpush.msra.mxu0 0.0
  %728 = vmatpush.msra.mxu0 0.0
  %729 = vmatpush.msra.mxu0 0.0
  %730 = vmatpush.msra.mxu0 0.0
  %731 = vmatpush.msra.mxu0 %v61
  %732 = vmatpush.msra.mxu0 %v60
  %733 = vmatpush.msra.mxu0 %v59
  %734 = vmatpush.msra.mxu0 %v58
  %735 = vmatpush.msra.mxu0 %v57
  %736 = vmatpush.msra.mxu0 %v56
  %737 = vmatpush.msra.mxu0 %v55
  %738 = vmatpush.msra.mxu0 %v54
  %739 = vmatpush.msra.mxu0 %v53
  %740 = vmatmul.f32.gmra.mxu0 %v722
  %v741 = vpop.f32.mrf.mxu0
  %v742 = vadd.f32 %v547, %v741
  %743 = vdwg.mxu0
  %v744 = vmax.f32 %v742, 0.0
  %746 = vrot.lane.b32.xlu0 %v744, 80
  %v747 = vpop.permute.xlu0 %746
  %vm749 = vcmask 786048
  %750 = vst.msk [vmem:[#allocation3] sm:$0xff] %vm749, %v747
  %v751 = vld [vmem:[#allocation2 + $0x18] sm:$0xff]
  %v753 = vsel %vm77, %v751, 0
  %755 = vmatpush.msra.mxu0 0.0
  %756 = vmatpush.msra.mxu0 0.0
  %757 = vmatpush.msra.mxu0 0.0
  %758 = vmatpush.msra.mxu0 0.0
  %759 = vmatpush.msra.mxu0 0.0
  %760 = vmatpush.msra.mxu0 0.0
  %761 = vmatpush.msra.mxu0 0.0
  %762 = vmatpush.msra.mxu0 %v61
  %763 = vmatpush.msra.mxu0 %v60
  %764 = vmatpush.msra.mxu0 %v59
  %765 = vmatpush.msra.mxu0 %v58
  %766 = vmatpush.msra.mxu0 %v57
  %767 = vmatpush.msra.mxu0 %v56
  %768 = vmatpush.msra.mxu0 %v55
  %769 = vmatpush.msra.mxu0 %v54
  %770 = vmatpush.msra.mxu0 %v53
  %771 = vmatmul.f32.gmra.mxu0 %v753
  %v772 = vpop.f32.mrf.mxu0
  %v773 = vadd.f32 %v547, %v772
  %774 = vdwg.mxu0
  %v775 = vmax.f32 %v773, 0.0
  %777 = vrot.lane.b32.xlu0 %v775, 96
  %v778 = vpop.permute.xlu0 %777
  %vm780 = vcmask 917248
  %781 = vst.msk [vmem:[#allocation3] sm:$0xff] %vm780, %v778
  %v782 = vld [vmem:[#allocation2 + $0x18] sm:$0xff]
  %v783 = vld [vmem:[#allocation2 + $0x20] sm:$0xff]
  %786 = vrot.lane.b32.xlu0 %v782, 64
  %v787 = vpop.permute.xlu0 %786
  %788 = vrot.lane.b32.xlu0 %v783, 64
  %v789 = vpop.permute.xlu0 %788
  %v790 = vsel %vm111, %v787, %v789
  %v791 = vsel %vm77, %v790, 0
  %793 = vmatpush.msra.mxu0 0.0
  %794 = vmatpush.msra.mxu0 0.0
  %795 = vmatpush.msra.mxu0 0.0
  %796 = vmatpush.msra.mxu0 0.0
  %797 = vmatpush.msra.mxu0 0.0
  %798 = vmatpush.msra.mxu0 0.0
  %799 = vmatpush.msra.mxu0 0.0
  %800 = vmatpush.msra.mxu0 %v61
  %801 = vmatpush.msra.mxu0 %v60
  %802 = vmatpush.msra.mxu0 %v59
  %803 = vmatpush.msra.mxu0 %v58
  %804 = vmatpush.msra.mxu0 %v57
  %805 = vmatpush.msra.mxu0 %v56
  %806 = vmatpush.msra.mxu0 %v55
  %807 = vmatpush.msra.mxu0 %v54
  %808 = vmatpush.msra.mxu0 %v53
  %809 = vmatmul.f32.gmra.mxu0 %v791
  %v810 = vpop.f32.mrf.mxu0
  %v811 = vadd.f32 %v547, %v810
  %812 = vdwg.mxu0
  %v813 = vmax.f32 %v811, 0.0
  %815 = vrot.lane.b32.xlu0 %v813, 112
  %v816 = vpop.permute.xlu0 %815
  %vm818 = vcmask 1048448
  %819 = vst.msk [vmem:[#allocation3] sm:$0xff] %vm818, %v816
  %v820 = vld [vmem:[#allocation2 + $0x20] sm:$0xff]
  %v822 = vsel %vm77, %v820, 0
  %824 = vmatpush.msra.mxu0 0.0
  %825 = vmatpush.msra.mxu0 0.0
  %826 = vmatpush.msra.mxu0 0.0
  %827 = vmatpush.msra.mxu0 0.0
  %828 = vmatpush.msra.mxu0 0.0
  %829 = vmatpush.msra.mxu0 0.0
  %830 = vmatpush.msra.mxu0 0.0
  %831 = vmatpush.msra.mxu0 %v61
  %832 = vmatpush.msra.mxu0 %v60
  %833 = vmatpush.msra.mxu0 %v59
  %834 = vmatpush.msra.mxu0 %v58
  %835 = vmatpush.msra.mxu0 %v57
  %836 = vmatpush.msra.mxu0 %v56
  %837 = vmatpush.msra.mxu0 %v55
  %838 = vmatpush.msra.mxu0 %v54
  %839 = vmatpush.msra.mxu0 %v53
  %840 = vmatmul.f32.gmra.mxu0 %v822
  %v841 = vpop.f32.mrf.mxu0
  %v842 = vadd.f32 %v547, %v841
  %843 = vdwg.mxu0
  %v844 = vmax.f32 %v842, 0.0
  %845 = vst.msk [vmem:[#allocation3 + $0x8] sm:$0xff] %vm573, %v844
  %v846 = vld [vmem:[#allocation2 + $0x20] sm:$0xff]
  %v847 = vld [vmem:[#allocation2 + $0x28] sm:$0xff]
  %850 = vrot.lane.b32.xlu0 %v846, 64
  %v851 = vpop.permute.xlu0 %850
  %852 = vrot.lane.b32.xlu0 %v847, 64
  %v853 = vpop.permute.xlu0 %852
  %v854 = vsel %vm111, %v851, %v853
  %v855 = vsel %vm77, %v854, 0
  %857 = vmatpush.msra.mxu0 0.0
  %858 = vmatpush.msra.mxu0 0.0
  %859 = vmatpush.msra.mxu0 0.0
  %860 = vmatpush.msra.mxu0 0.0
  %861 = vmatpush.msra.mxu0 0.0
  %862 = vmatpush.msra.mxu0 0.0
  %863 = vmatpush.msra.mxu0 0.0
  %864 = vmatpush.msra.mxu0 %v61
  %865 = vmatpush.msra.mxu0 %v60
  %866 = vmatpush.msra.mxu0 %v59
  %867 = vmatpush.msra.mxu0 %v58
  %868 = vmatpush.msra.mxu0 %v57
  %869 = vmatpush.msra.mxu0 %v56
  %870 = vmatpush.msra.mxu0 %v55
  %871 = vmatpush.msra.mxu0 %v54
  %872 = vmatpush.msra.mxu0 %v53
  %873 = vmatmul.f32.gmra.mxu0 %v855
  %v874 = vpop.f32.mrf.mxu0
  %v875 = vadd.f32 %v547, %v874
  %876 = vdwg.mxu0
  %v877 = vmax.f32 %v875, 0.0
  %879 = vrot.lane.b32.xlu0 %v877, 16
  %v880 = vpop.permute.xlu0 %879
  %882 = vst.msk [vmem:[#allocation3 + $0x8] sm:$0xff] %vm611, %v880
  %v883 = vld [vmem:[#allocation2 + $0x28] sm:$0xff]
  %v885 = vsel %vm77, %v883, 0
  %887 = vmatpush.msra.mxu0 0.0
  %888 = vmatpush.msra.mxu0 0.0
  %889 = vmatpush.msra.mxu0 0.0
  %890 = vmatpush.msra.mxu0 0.0
  %891 = vmatpush.msra.mxu0 0.0
  %892 = vmatpush.msra.mxu0 0.0
  %893 = vmatpush.msra.mxu0 0.0
  %894 = vmatpush.msra.mxu0 %v61
  %895 = vmatpush.msra.mxu0 %v60
  %896 = vmatpush.msra.mxu0 %v59
  %897 = vmatpush.msra.mxu0 %v58
  %898 = vmatpush.msra.mxu0 %v57
  %899 = vmatpush.msra.mxu0 %v56
  %900 = vmatpush.msra.mxu0 %v55
  %901 = vmatpush.msra.mxu0 %v54
  %902 = vmatpush.msra.mxu0 %v53
  %903 = vmatmul.f32.gmra.mxu0 %v885
  %v904 = vpop.f32.mrf.mxu0
  %v905 = vadd.f32 %v547, %v904
  %906 = vdwg.mxu0
  %v907 = vmax.f32 %v905, 0.0
  %909 = vrot.lane.b32.xlu0 %v907, 32
  %v910 = vpop.permute.xlu0 %909
  %912 = vst.msk [vmem:[#allocation3 + $0x8] sm:$0xff] %vm642, %v910
  %v913 = vld [vmem:[#allocation2 + $0x28] sm:$0xff]
  %v914 = vld [vmem:[#allocation2 + $0x30] sm:$0xff]
  %917 = vrot.lane.b32.xlu0 %v913, 64
  %v918 = vpop.permute.xlu0 %917
  %919 = vrot.lane.b32.xlu0 %v914, 64
  %v920 = vpop.permute.xlu0 %919
  %v921 = vsel %vm111, %v918, %v920
  %v922 = vsel %vm77, %v921, 0
  %924 = vmatpush.msra.mxu0 0.0
  %925 = vmatpush.msra.mxu0 0.0
  %926 = vmatpush.msra.mxu0 0.0
  %927 = vmatpush.msra.mxu0 0.0
  %928 = vmatpush.msra.mxu0 0.0
  %929 = vmatpush.msra.mxu0 0.0
  %930 = vmatpush.msra.mxu0 0.0
  %931 = vmatpush.msra.mxu0 %v61
  %932 = vmatpush.msra.mxu0 %v60
  %933 = vmatpush.msra.mxu0 %v59
  %934 = vmatpush.msra.mxu0 %v58
  %935 = vmatpush.msra.mxu0 %v57
  %936 = vmatpush.msra.mxu0 %v56
  %937 = vmatpush.msra.mxu0 %v55
  %938 = vmatpush.msra.mxu0 %v54
  %939 = vmatpush.msra.mxu0 %v53
  %940 = vmatmul.f32.gmra.mxu0 %v922
  %v941 = vpop.f32.mrf.mxu0
  %v942 = vadd.f32 %v547, %v941
  %943 = vdwg.mxu0
  %v944 = vmax.f32 %v942, 0.0
  %946 = vrot.lane.b32.xlu0 %v944, 48
  %v947 = vpop.permute.xlu0 %946
  %949 = vst.msk [vmem:[#allocation3 + $0x8] sm:$0xff] %vm680, %v947
  %v950 = vld [vmem:[#allocation2 + $0x30] sm:$0xff]
  %v952 = vsel %vm77, %v950, 0
  %954 = vmatpush.msra.mxu0 0.0
  %955 = vmatpush.msra.mxu0 0.0
  %956 = vmatpush.msra.mxu0 0.0
  %957 = vmatpush.msra.mxu0 0.0
  %958 = vmatpush.msra.mxu0 0.0
  %959 = vmatpush.msra.mxu0 0.0
  %960 = vmatpush.msra.mxu0 0.0
  %961 = vmatpush.msra.mxu0 %v61
  %962 = vmatpush.msra.mxu0 %v60
  %963 = vmatpush.msra.mxu0 %v59
  %964 = vmatpush.msra.mxu0 %v58
  %965 = vmatpush.msra.mxu0 %v57
  %966 = vmatpush.msra.mxu0 %v56
  %967 = vmatpush.msra.mxu0 %v55
  %968 = vmatpush.msra.mxu0 %v54
  %969 = vmatpush.msra.mxu0 %v53
  %970 = vmatmul.f32.gmra.mxu0 %v952
  %v971 = vpop.f32.mrf.mxu0
  %v972 = vadd.f32 %v547, %v971
  %973 = vdwg.mxu0
  %v974 = vmax.f32 %v972, 0.0
  %976 = vrot.lane.b32.xlu0 %v974, 64
  %v977 = vpop.permute.xlu0 %976
  %979 = vst.msk [vmem:[#allocation3 + $0x8] sm:$0xff] %vm711, %v977
  %v980 = vld [vmem:[#allocation2 + $0x30] sm:$0xff]
  %v981 = vld [vmem:[#allocation2 + $0x38] sm:$0xff]
  %984 = vrot.lane.b32.xlu0 %v980, 64
  %v985 = vpop.permute.xlu0 %984
  %986 = vrot.lane.b32.xlu0 %v981, 64
  %v987 = vpop.permute.xlu0 %986
  %v988 = vsel %vm111, %v985, %v987
  %v989 = vsel %vm77, %v988, 0
  %991 = vmatpush.msra.mxu0 0.0
  %992 = vmatpush.msra.mxu0 0.0
  %993 = vmatpush.msra.mxu0 0.0
  %994 = vmatpush.msra.mxu0 0.0
  %995 = vmatpush.msra.mxu0 0.0
  %996 = vmatpush.msra.mxu0 0.0
  %997 = vmatpush.msra.mxu0 0.0
  %998 = vmatpush.msra.mxu0 %v61
  %999 = vmatpush.msra.mxu0 %v60
  %1000 = vmatpush.msra.mxu0 %v59
  %1001 = vmatpush.msra.mxu0 %v58
  %1002 = vmatpush.msra.mxu0 %v57
  %1003 = vmatpush.msra.mxu0 %v56
  %1004 = vmatpush.msra.mxu0 %v55
  %1005 = vmatpush.msra.mxu0 %v54
  %1006 = vmatpush.msra.mxu0 %v53
  %1007 = vmatmul.f32.gmra.mxu0 %v989
  %v1008 = vpop.f32.mrf.mxu0
  %v1009 = vadd.f32 %v547, %v1008
  %1010 = vdwg.mxu0
  %v1011 = vmax.f32 %v1009, 0.0
  %1013 = vrot.lane.b32.xlu0 %v1011, 80
  %v1014 = vpop.permute.xlu0 %1013
  %1016 = vst.msk [vmem:[#allocation3 + $0x8] sm:$0xff] %vm749, %v1014
  %v1017 = vld [vmem:[#allocation2 + $0x38] sm:$0xff]
  %v1019 = vsel %vm77, %v1017, 0
  %1021 = vmatpush.msra.mxu0 0.0
  %1022 = vmatpush.msra.mxu0 0.0
  %1023 = vmatpush.msra.mxu0 0.0
  %1024 = vmatpush.msra.mxu0 0.0
  %1025 = vmatpush.msra.mxu0 0.0
  %1026 = vmatpush.msra.mxu0 0.0
  %1027 = vmatpush.msra.mxu0 0.0
  %1028 = vmatpush.msra.mxu0 %v61
  %1029 = vmatpush.msra.mxu0 %v60
  %1030 = vmatpush.msra.mxu0 %v59
  %1031 = vmatpush.msra.mxu0 %v58
  %1032 = vmatpush.msra.mxu0 %v57
  %1033 = vmatpush.msra.mxu0 %v56
  %1034 = vmatpush.msra.mxu0 %v55
  %1035 = vmatpush.msra.mxu0 %v54
  %1036 = vmatpush.msra.mxu0 %v53
  %1037 = vmatmul.f32.gmra.mxu0 %v1019
  %v1038 = vpop.f32.mrf.mxu0
  %v1039 = vadd.f32 %v547, %v1038
  %1040 = vdwg.mxu0
  %v1041 = vmax.f32 %v1039, 0.0
  %1043 = vrot.lane.b32.xlu0 %v1041, 96
  %v1044 = vpop.permute.xlu0 %1043
  %1046 = vst.msk [vmem:[#allocation3 + $0x8] sm:$0xff] %vm780, %v1044
  %v1047 = vld [vmem:[#allocation2 + $0x38] sm:$0xff]
  %v1048 = vld [vmem:[#allocation2 + $0x40] sm:$0xff]
  %1051 = vrot.lane.b32.xlu0 %v1047, 64
  %v1052 = vpop.permute.xlu0 %1051
  %1053 = vrot.lane.b32.xlu0 %v1048, 64
  %v1054 = vpop.permute.xlu0 %1053
  %v1055 = vsel %vm111, %v1052, %v1054
  %v1056 = vsel %vm77, %v1055, 0
  %1058 = vmatpush.msra.mxu0 0.0
  %1059 = vmatpush.msra.mxu0 0.0
  %1060 = vmatpush.msra.mxu0 0.0
  %1061 = vmatpush.msra.mxu0 0.0
  %1062 = vmatpush.msra.mxu0 0.0
  %1063 = vmatpush.msra.mxu0 0.0
  %1064 = vmatpush.msra.mxu0 0.0
  %1065 = vmatpush.msra.mxu0 %v61
  %1066 = vmatpush.msra.mxu0 %v60
  %1067 = vmatpush.msra.mxu0 %v59
  %1068 = vmatpush.msra.mxu0 %v58
  %1069 = vmatpush.msra.mxu0 %v57
  %1070 = vmatpush.msra.mxu0 %v56
  %1071 = vmatpush.msra.mxu0 %v55
  %1072 = vmatpush.msra.mxu0 %v54
  %1073 = vmatpush.msra.mxu0 %v53
  %1074 = vmatmul.f32.gmra.mxu0 %v1056
  %v1075 = vpop.f32.mrf.mxu0
  %v1076 = vadd.f32 %v547, %v1075
  %1077 = vdwg.mxu0
  %v1078 = vmax.f32 %v1076, 0.0
  %1080 = vrot.lane.b32.xlu0 %v1078, 112
  %v1081 = vpop.permute.xlu0 %1080
  %1083 = vst.msk [vmem:[#allocation3 + $0x8] sm:$0xff] %vm818, %v1081
  %v1084 = vld [vmem:[#allocation2 + $0x40] sm:$0xff]
  %v1086 = vsel %vm77, %v1084, 0
  %1088 = vmatpush.msra.mxu0 0.0
  %1089 = vmatpush.msra.mxu0 0.0
  %1090 = vmatpush.msra.mxu0 0.0
  %1091 = vmatpush.msra.mxu0 0.0
  %1092 = vmatpush.msra.mxu0 0.0
  %1093 = vmatpush.msra.mxu0 0.0
  %1094 = vmatpush.msra.mxu0 0.0
  %1095 = vmatpush.msra.mxu0 %v61
  %1096 = vmatpush.msra.mxu0 %v60
  %1097 = vmatpush.msra.mxu0 %v59
  %1098 = vmatpush.msra.mxu0 %v58
  %1099 = vmatpush.msra.mxu0 %v57
  %1100 = vmatpush.msra.mxu0 %v56
  %1101 = vmatpush.msra.mxu0 %v55
  %1102 = vmatpush.msra.mxu0 %v54
  %1103 = vmatpush.msra.mxu0 %v53
  %1104 = vmatmul.f32.gmra.mxu0 %v1086
  %v1105 = vpop.f32.mrf.mxu0
  %v1106 = vadd.f32 %v547, %v1105
  %1107 = vdwg.mxu0
  %v1108 = vmax.f32 %v1106, 0.0
  %1109 = vst.msk [vmem:[#allocation3 + $0x10] sm:$0xff] %vm573, %v1108
  %v1110 = vld [vmem:[#allocation2 + $0x40] sm:$0xff]
  %v1111 = vld [vmem:[#allocation2 + $0x48] sm:$0xff]
  %1114 = vrot.lane.b32.xlu0 %v1110, 64
  %v1115 = vpop.permute.xlu0 %1114
  %1116 = vrot.lane.b32.xlu0 %v1111, 64
  %v1117 = vpop.permute.xlu0 %1116
  %v1118 = vsel %vm111, %v1115, %v1117
  %v1119 = vsel %vm77, %v1118, 0
  %1121 = vmatpush.msra.mxu0 0.0
  %1122 = vmatpush.msra.mxu0 0.0
  %1123 = vmatpush.msra.mxu0 0.0
  %1124 = vmatpush.msra.mxu0 0.0
  %1125 = vmatpush.msra.mxu0 0.0
  %1126 = vmatpush.msra.mxu0 0.0
  %1127 = vmatpush.msra.mxu0 0.0
  %1128 = vmatpush.msra.mxu0 %v61
  %1129 = vmatpush.msra.mxu0 %v60
  %1130 = vmatpush.msra.mxu0 %v59
  %1131 = vmatpush.msra.mxu0 %v58
  %1132 = vmatpush.msra.mxu0 %v57
  %1133 = vmatpush.msra.mxu0 %v56
  %1134 = vmatpush.msra.mxu0 %v55
  %1135 = vmatpush.msra.mxu0 %v54
  %1136 = vmatpush.msra.mxu0 %v53
  %1137 = vmatmul.f32.gmra.mxu0 %v1119
  %v1138 = vpop.f32.mrf.mxu0
  %v1139 = vadd.f32 %v547, %v1138
  %1140 = vdwg.mxu0
  %v1141 = vmax.f32 %v1139, 0.0
  %1143 = vrot.lane.b32.xlu0 %v1141, 16
  %v1144 = vpop.permute.xlu0 %1143
  %1146 = vst.msk [vmem:[#allocation3 + $0x10] sm:$0xff] %vm611, %v1144
  %v1147 = vld [vmem:[#allocation2 + $0x48] sm:$0xff]
  %v1149 = vsel %vm77, %v1147, 0
  %1151 = vmatpush.msra.mxu0 0.0
  %1152 = vmatpush.msra.mxu0 0.0
  %1153 = vmatpush.msra.mxu0 0.0
  %1154 = vmatpush.msra.mxu0 0.0
  %1155 = vmatpush.msra.mxu0 0.0
  %1156 = vmatpush.msra.mxu0 0.0
  %1157 = vmatpush.msra.mxu0 0.0
  %1158 = vmatpush.msra.mxu0 %v61
  %1159 = vmatpush.msra.mxu0 %v60
  %1160 = vmatpush.msra.mxu0 %v59
  %1161 = vmatpush.msra.mxu0 %v58
  %1162 = vmatpush.msra.mxu0 %v57
  %1163 = vmatpush.msra.mxu0 %v56
  %1164 = vmatpush.msra.mxu0 %v55
  %1165 = vmatpush.msra.mxu0 %v54
  %1166 = vmatpush.msra.mxu0 %v53
  %1167 = vmatmul.f32.gmra.mxu0 %v1149
  %v1168 = vpop.f32.mrf.mxu0
  %v1169 = vadd.f32 %v547, %v1168
  %1170 = vdwg.mxu0
  %v1171 = vmax.f32 %v1169, 0.0
  %1173 = vrot.lane.b32.xlu0 %v1171, 32
  %v1174 = vpop.permute.xlu0 %1173
  %1176 = vst.msk [vmem:[#allocation3 + $0x10] sm:$0xff] %vm642, %v1174
  %v1177 = vld [vmem:[#allocation2 + $0x48] sm:$0xff]
  %v1178 = vld [vmem:[#allocation2 + $0x50] sm:$0xff]
  %1181 = vrot.lane.b32.xlu0 %v1177, 64
  %v1182 = vpop.permute.xlu0 %1181
  %1183 = vrot.lane.b32.xlu0 %v1178, 64
  %v1184 = vpop.permute.xlu0 %1183
  %v1185 = vsel %vm111, %v1182, %v1184
  %v1186 = vsel %vm77, %v1185, 0
  %1188 = vmatpush.msra.mxu0 0.0
  %1189 = vmatpush.msra.mxu0 0.0
  %1190 = vmatpush.msra.mxu0 0.0
  %1191 = vmatpush.msra.mxu0 0.0
  %1192 = vmatpush.msra.mxu0 0.0
  %1193 = vmatpush.msra.mxu0 0.0
  %1194 = vmatpush.msra.mxu0 0.0
  %1195 = vmatpush.msra.mxu0 %v61
  %1196 = vmatpush.msra.mxu0 %v60
  %1197 = vmatpush.msra.mxu0 %v59
  %1198 = vmatpush.msra.mxu0 %v58
  %1199 = vmatpush.msra.mxu0 %v57
  %1200 = vmatpush.msra.mxu0 %v56
  %1201 = vmatpush.msra.mxu0 %v55
  %1202 = vmatpush.msra.mxu0 %v54
  %1203 = vmatpush.msra.mxu0 %v53
  %1204 = vmatmul.f32.gmra.mxu0 %v1186
  %v1205 = vpop.f32.mrf.mxu0
  %v1206 = vadd.f32 %v547, %v1205
  %1207 = vdwg.mxu0
  %v1208 = vmax.f32 %v1206, 0.0
  %1210 = vrot.lane.b32.xlu0 %v1208, 48
  %v1211 = vpop.permute.xlu0 %1210
  %1213 = vst.msk [vmem:[#allocation3 + $0x10] sm:$0xff] %vm680, %v1211
  %v1214 = vld [vmem:[#allocation2 + $0x50] sm:$0xff]
  %v1216 = vsel %vm77, %v1214, 0
  %1218 = vmatpush.msra.mxu0 0.0
  %1219 = vmatpush.msra.mxu0 0.0
  %1220 = vmatpush.msra.mxu0 0.0
  %1221 = vmatpush.msra.mxu0 0.0
  %1222 = vmatpush.msra.mxu0 0.0
  %1223 = vmatpush.msra.mxu0 0.0
  %1224 = vmatpush.msra.mxu0 0.0
  %1225 = vmatpush.msra.mxu0 %v61
  %1226 = vmatpush.msra.mxu0 %v60
  %1227 = vmatpush.msra.mxu0 %v59
  %1228 = vmatpush.msra.mxu0 %v58
  %1229 = vmatpush.msra.mxu0 %v57
  %1230 = vmatpush.msra.mxu0 %v56
  %1231 = vmatpush.msra.mxu0 %v55
  %1232 = vmatpush.msra.mxu0 %v54
  %1233 = vmatpush.msra.mxu0 %v53
  %1234 = vmatmul.f32.gmra.mxu0 %v1216
  %v1235 = vpop.f32.mrf.mxu0
  %v1236 = vadd.f32 %v547, %v1235
  %1237 = vdwg.mxu0
  %v1238 = vmax.f32 %v1236, 0.0
  %1240 = vrot.lane.b32.xlu0 %v1238, 64
  %v1241 = vpop.permute.xlu0 %1240
  %1243 = vst.msk [vmem:[#allocation3 + $0x10] sm:$0xff] %vm711, %v1241
  %v1244 = vld [vmem:[#allocation2 + $0x50] sm:$0xff]
  %v1245 = vld [vmem:[#allocation2 + $0x58] sm:$0xff]
  %1248 = vrot.lane.b32.xlu0 %v1244, 64
  %v1249 = vpop.permute.xlu0 %1248
  %1250 = vrot.lane.b32.xlu0 %v1245, 64
  %v1251 = vpop.permute.xlu0 %1250
  %v1252 = vsel %vm111, %v1249, %v1251
  %v1253 = vsel %vm77, %v1252, 0
  %1255 = vmatpush.msra.mxu0 0.0
  %1256 = vmatpush.msra.mxu0 0.0
  %1257 = vmatpush.msra.mxu0 0.0
  %1258 = vmatpush.msra.mxu0 0.0
  %1259 = vmatpush.msra.mxu0 0.0
  %1260 = vmatpush.msra.mxu0 0.0
  %1261 = vmatpush.msra.mxu0 0.0
  %1262 = vmatpush.msra.mxu0 %v61
  %1263 = vmatpush.msra.mxu0 %v60
  %1264 = vmatpush.msra.mxu0 %v59
  %1265 = vmatpush.msra.mxu0 %v58
  %1266 = vmatpush.msra.mxu0 %v57
  %1267 = vmatpush.msra.mxu0 %v56
  %1268 = vmatpush.msra.mxu0 %v55
  %1269 = vmatpush.msra.mxu0 %v54
  %1270 = vmatpush.msra.mxu0 %v53
  %1271 = vmatmul.f32.gmra.mxu0 %v1253
  %v1272 = vpop.f32.mrf.mxu0
  %v1273 = vadd.f32 %v547, %v1272
  %1274 = vdwg.mxu0
  %v1275 = vmax.f32 %v1273, 0.0
  %1277 = vrot.lane.b32.xlu0 %v1275, 80
  %v1278 = vpop.permute.xlu0 %1277
  %1280 = vst.msk [vmem:[#allocation3 + $0x10] sm:$0xff] %vm749, %v1278
  %v1281 = vld [vmem:[#allocation2 + $0x58] sm:$0xff]
  %v1283 = vsel %vm77, %v1281, 0
  %1285 = vmatpush.msra.mxu0 0.0
  %1286 = vmatpush.msra.mxu0 0.0
  %1287 = vmatpush.msra.mxu0 0.0
  %1288 = vmatpush.msra.mxu0 0.0
  %1289 = vmatpush.msra.mxu0 0.0
  %1290 = vmatpush.msra.mxu0 0.0
  %1291 = vmatpush.msra.mxu0 0.0
  %1292 = vmatpush.msra.mxu0 %v61
  %1293 = vmatpush.msra.mxu0 %v60
  %1294 = vmatpush.msra.mxu0 %v59
  %1295 = vmatpush.msra.mxu0 %v58
  %1296 = vmatpush.msra.mxu0 %v57
  %1297 = vmatpush.msra.mxu0 %v56
  %1298 = vmatpush.msra.mxu0 %v55
  %1299 = vmatpush.msra.mxu0 %v54
  %1300 = vmatpush.msra.mxu0 %v53
  %1301 = vmatmul.f32.gmra.mxu0 %v1283
  %v1302 = vpop.f32.mrf.mxu0
  %v1303 = vadd.f32 %v547, %v1302
  %1304 = vdwg.mxu0
  %v1305 = vmax.f32 %v1303, 0.0
  %1307 = vrot.lane.b32.xlu0 %v1305, 96
  %v1308 = vpop.permute.xlu0 %1307
  %1310 = vst.msk [vmem:[#allocation3 + $0x10] sm:$0xff] %vm780, %v1308
  %v1311 = vld [vmem:[#allocation2 + $0x58] sm:$0xff]
  %v1312 = vld [vmem:[#allocation2 + $0x60] sm:$0xff]
  %1315 = vrot.lane.b32.xlu0 %v1311, 64
  %v1316 = vpop.permute.xlu0 %1315
  %1317 = vrot.lane.b32.xlu0 %v1312, 64
  %v1318 = vpop.permute.xlu0 %1317
  %v1319 = vsel %vm111, %v1316, %v1318
  %v1320 = vsel %vm77, %v1319, 0
  %1322 = vmatpush.msra.mxu0 0.0
  %1323 = vmatpush.msra.mxu0 0.0
  %1324 = vmatpush.msra.mxu0 0.0
  %1325 = vmatpush.msra.mxu0 0.0
  %1326 = vmatpush.msra.mxu0 0.0
  %1327 = vmatpush.msra.mxu0 0.0
  %1328 = vmatpush.msra.mxu0 0.0
  %1329 = vmatpush.msra.mxu0 %v61
  %1330 = vmatpush.msra.mxu0 %v60
  %1331 = vmatpush.msra.mxu0 %v59
  %1332 = vmatpush.msra.mxu0 %v58
  %1333 = vmatpush.msra.mxu0 %v57
  %1334 = vmatpush.msra.mxu0 %v56
  %1335 = vmatpush.msra.mxu0 %v55
  %1336 = vmatpush.msra.mxu0 %v54
  %1337 = vmatpush.msra.mxu0 %v53
  %1338 = vmatmul.f32.gmra.mxu0 %v1320
  %v1339 = vpop.f32.mrf.mxu0
  %v1340 = vadd.f32 %v547, %v1339
  %1341 = vdwg.mxu0
  %v1342 = vmax.f32 %v1340, 0.0
  %1344 = vrot.lane.b32.xlu0 %v1342, 112
  %v1345 = vpop.permute.xlu0 %1344
  %1347 = vst.msk [vmem:[#allocation3 + $0x10] sm:$0xff] %vm818, %v1345
  %v1348 = vld [vmem:[#allocation2 + $0x60] sm:$0xff]
  %v1350 = vsel %vm77, %v1348, 0
  %1352 = vmatpush.msra.mxu0 0.0
  %1353 = vmatpush.msra.mxu0 0.0
  %1354 = vmatpush.msra.mxu0 0.0
  %1355 = vmatpush.msra.mxu0 0.0
  %1356 = vmatpush.msra.mxu0 0.0
  %1357 = vmatpush.msra.mxu0 0.0
  %1358 = vmatpush.msra.mxu0 0.0
  %1359 = vmatpush.msra.mxu0 %v61
  %1360 = vmatpush.msra.mxu0 %v60
  %1361 = vmatpush.msra.mxu0 %v59
  %1362 = vmatpush.msra.mxu0 %v58
  %1363 = vmatpush.msra.mxu0 %v57
  %1364 = vmatpush.msra.mxu0 %v56
  %1365 = vmatpush.msra.mxu0 %v55
  %1366 = vmatpush.msra.mxu0 %v54
  %1367 = vmatpush.msra.mxu0 %v53
  %1368 = vmatmul.f32.gmra.mxu0 %v1350
  %v1369 = vpop.f32.mrf.mxu0
  %v1370 = vadd.f32 %v547, %v1369
  %1371 = vdwg.mxu0
  %v1372 = vmax.f32 %v1370, 0.0
  %1373 = vst.msk [vmem:[#allocation3 + $0x18] sm:$0xff] %vm573, %v1372
  %v1374 = vld [vmem:[#allocation2 + $0x60] sm:$0xff]
  %v1375 = vld [vmem:[#allocation2 + $0x68] sm:$0xff]
  %1378 = vrot.lane.b32.xlu0 %v1374, 64
  %v1379 = vpop.permute.xlu0 %1378
  %1380 = vrot.lane.b32.xlu0 %v1375, 64
  %v1381 = vpop.permute.xlu0 %1380
  %v1382 = vsel %vm111, %v1379, %v1381
  %v1383 = vsel %vm77, %v1382, 0
  %1385 = vmatpush.msra.mxu0 0.0
  %1386 = vmatpush.msra.mxu0 0.0
  %1387 = vmatpush.msra.mxu0 0.0
  %1388 = vmatpush.msra.mxu0 0.0
  %1389 = vmatpush.msra.mxu0 0.0
  %1390 = vmatpush.msra.mxu0 0.0
  %1391 = vmatpush.msra.mxu0 0.0
  %1392 = vmatpush.msra.mxu0 %v61
  %1393 = vmatpush.msra.mxu0 %v60
  %1394 = vmatpush.msra.mxu0 %v59
  %1395 = vmatpush.msra.mxu0 %v58
  %1396 = vmatpush.msra.mxu0 %v57
  %1397 = vmatpush.msra.mxu0 %v56
  %1398 = vmatpush.msra.mxu0 %v55
  %1399 = vmatpush.msra.mxu0 %v54
  %1400 = vmatpush.msra.mxu0 %v53
  %1401 = vmatmul.f32.gmra.mxu0 %v1383
  %v1402 = vpop.f32.mrf.mxu0
  %v1403 = vadd.f32 %v547, %v1402
  %1404 = vdwg.mxu0
  %v1405 = vmax.f32 %v1403, 0.0
  %1407 = vrot.lane.b32.xlu0 %v1405, 16
  %v1408 = vpop.permute.xlu0 %1407
  %1410 = vst.msk [vmem:[#allocation3 + $0x18] sm:$0xff] %vm611, %v1408
  %v1411 = vld [vmem:[#allocation2 + $0x68] sm:$0xff]
  %v1413 = vsel %vm77, %v1411, 0
  %1415 = vmatpush.msra.mxu0 0.0
  %1416 = vmatpush.msra.mxu0 0.0
  %1417 = vmatpush.msra.mxu0 0.0
  %1418 = vmatpush.msra.mxu0 0.0
  %1419 = vmatpush.msra.mxu0 0.0
  %1420 = vmatpush.msra.mxu0 0.0
  %1421 = vmatpush.msra.mxu0 0.0
  %1422 = vmatpush.msra.mxu0 %v61
  %1423 = vmatpush.msra.mxu0 %v60
  %1424 = vmatpush.msra.mxu0 %v59
  %1425 = vmatpush.msra.mxu0 %v58
  %1426 = vmatpush.msra.mxu0 %v57
  %1427 = vmatpush.msra.mxu0 %v56
  %1428 = vmatpush.msra.mxu0 %v55
  %1429 = vmatpush.msra.mxu0 %v54
  %1430 = vmatpush.msra.mxu0 %v53
  %1431 = vmatmul.f32.gmra.mxu0 %v1413
  %v1432 = vpop.f32.mrf.mxu0
  %v1433 = vadd.f32 %v547, %v1432
  %1434 = vdwg.mxu0
  %v1435 = vmax.f32 %v1433, 0.0
  %1437 = vrot.lane.b32.xlu0 %v1435, 32
  %v1438 = vpop.permute.xlu0 %1437
  %1440 = vst.msk [vmem:[#allocation3 + $0x18] sm:$0xff] %vm642, %v1438
  %v1441 = vld [vmem:[#allocation2 + $0x68] sm:$0xff]
  %v1442 = vld [vmem:[#allocation2 + $0x70] sm:$0xff]
  %1445 = vrot.lane.b32.xlu0 %v1441, 64
  %v1446 = vpop.permute.xlu0 %1445
  %1447 = vrot.lane.b32.xlu0 %v1442, 64
  %v1448 = vpop.permute.xlu0 %1447
  %v1449 = vsel %vm111, %v1446, %v1448
  %v1450 = vsel %vm77, %v1449, 0
  %1452 = vmatpush.msra.mxu0 0.0
  %1453 = vmatpush.msra.mxu0 0.0
  %1454 = vmatpush.msra.mxu0 0.0
  %1455 = vmatpush.msra.mxu0 0.0
  %1456 = vmatpush.msra.mxu0 0.0
  %1457 = vmatpush.msra.mxu0 0.0
  %1458 = vmatpush.msra.mxu0 0.0
  %1459 = vmatpush.msra.mxu0 %v61
  %1460 = vmatpush.msra.mxu0 %v60
  %1461 = vmatpush.msra.mxu0 %v59
  %1462 = vmatpush.msra.mxu0 %v58
  %1463 = vmatpush.msra.mxu0 %v57
  %1464 = vmatpush.msra.mxu0 %v56
  %1465 = vmatpush.msra.mxu0 %v55
  %1466 = vmatpush.msra.mxu0 %v54
  %1467 = vmatpush.msra.mxu0 %v53
  %1468 = vmatmul.f32.gmra.mxu0 %v1450
  %v1469 = vpop.f32.mrf.mxu0
  %v1470 = vadd.f32 %v547, %v1469
  %1471 = vdwg.mxu0
  %v1472 = vmax.f32 %v1470, 0.0
  %1474 = vrot.lane.b32.xlu0 %v1472, 48
  %v1475 = vpop.permute.xlu0 %1474
  %1477 = vst.msk [vmem:[#allocation3 + $0x18] sm:$0xff] %vm680, %v1475
  %v1478 = vld [vmem:[#allocation2 + $0x70] sm:$0xff]
  %v1480 = vsel %vm77, %v1478, 0
  %1482 = vmatpush.msra.mxu0 0.0
  %1483 = vmatpush.msra.mxu0 0.0
  %1484 = vmatpush.msra.mxu0 0.0
  %1485 = vmatpush.msra.mxu0 0.0
  %1486 = vmatpush.msra.mxu0 0.0
  %1487 = vmatpush.msra.mxu0 0.0
  %1488 = vmatpush.msra.mxu0 0.0
  %1489 = vmatpush.msra.mxu0 %v61
  %1490 = vmatpush.msra.mxu0 %v60
  %1491 = vmatpush.msra.mxu0 %v59
  %1492 = vmatpush.msra.mxu0 %v58
  %1493 = vmatpush.msra.mxu0 %v57
  %1494 = vmatpush.msra.mxu0 %v56
  %1495 = vmatpush.msra.mxu0 %v55
  %1496 = vmatpush.msra.mxu0 %v54
  %1497 = vmatpush.msra.mxu0 %v53
  %1498 = vmatmul.f32.gmra.mxu0 %v1480
  %v1499 = vpop.f32.mrf.mxu0
  %v1500 = vadd.f32 %v547, %v1499
  %1501 = vdwg.mxu0
  %v1502 = vmax.f32 %v1500, 0.0
  %1504 = vrot.lane.b32.xlu0 %v1502, 64
  %v1505 = vpop.permute.xlu0 %1504
  %1507 = vst.msk [vmem:[#allocation3 + $0x18] sm:$0xff] %vm711, %v1505
  %v1508 = vld [vmem:[#allocation2 + $0x70] sm:$0xff]
  %v1509 = vld [vmem:[#allocation2 + $0x78] sm:$0xff]
  %1512 = vrot.lane.b32.xlu0 %v1508, 64
  %v1513 = vpop.permute.xlu0 %1512
  %1514 = vrot.lane.b32.xlu0 %v1509, 64
  %v1515 = vpop.permute.xlu0 %1514
  %v1516 = vsel %vm111, %v1513, %v1515
  %v1517 = vsel %vm77, %v1516, 0
  %1519 = vmatpush.msra.mxu0 0.0
  %1520 = vmatpush.msra.mxu0 0.0
  %1521 = vmatpush.msra.mxu0 0.0
  %1522 = vmatpush.msra.mxu0 0.0
  %1523 = vmatpush.msra.mxu0 0.0
  %1524 = vmatpush.msra.mxu0 0.0
  %1525 = vmatpush.msra.mxu0 0.0
  %1526 = vmatpush.msra.mxu0 %v61
  %1527 = vmatpush.msra.mxu0 %v60
  %1528 = vmatpush.msra.mxu0 %v59
  %1529 = vmatpush.msra.mxu0 %v58
  %1530 = vmatpush.msra.mxu0 %v57
  %1531 = vmatpush.msra.mxu0 %v56
  %1532 = vmatpush.msra.mxu0 %v55
  %1533 = vmatpush.msra.mxu0 %v54
  %1534 = vmatpush.msra.mxu0 %v53
  %1535 = vmatmul.f32.gmra.mxu0 %v1517
  %v1536 = vpop.f32.mrf.mxu0
  %v1537 = vadd.f32 %v547, %v1536
  %1538 = vdwg.mxu0
  %v1539 = vmax.f32 %v1537, 0.0
  %1541 = vrot.lane.b32.xlu0 %v1539, 80
  %v1542 = vpop.permute.xlu0 %1541
  %1544 = vst.msk [vmem:[#allocation3 + $0x18] sm:$0xff] %vm749, %v1542
  %v1545 = vld [vmem:[#allocation2 + $0x78] sm:$0xff]
  %v1547 = vsel %vm77, %v1545, 0
  %1549 = vmatpush.msra.mxu0 0.0
  %1550 = vmatpush.msra.mxu0 0.0
  %1551 = vmatpush.msra.mxu0 0.0
  %1552 = vmatpush.msra.mxu0 0.0
  %1553 = vmatpush.msra.mxu0 0.0
  %1554 = vmatpush.msra.mxu0 0.0
  %1555 = vmatpush.msra.mxu0 0.0
  %1556 = vmatpush.msra.mxu0 %v61
  %1557 = vmatpush.msra.mxu0 %v60
  %1558 = vmatpush.msra.mxu0 %v59
  %1559 = vmatpush.msra.mxu0 %v58
  %1560 = vmatpush.msra.mxu0 %v57
  %1561 = vmatpush.msra.mxu0 %v56
  %1562 = vmatpush.msra.mxu0 %v55
  %1563 = vmatpush.msra.mxu0 %v54
  %1564 = vmatpush.msra.mxu0 %v53
  %1565 = vmatmul.f32.gmra.mxu0 %v1547
  %v1566 = vpop.f32.mrf.mxu0
  %v1567 = vadd.f32 %v547, %v1566
  %1568 = vdwg.mxu0
  %v1569 = vmax.f32 %v1567, 0.0
  %1571 = vrot.lane.b32.xlu0 %v1569, 96
  %v1572 = vpop.permute.xlu0 %1571
  %1574 = vst.msk [vmem:[#allocation3 + $0x18] sm:$0xff] %vm780, %v1572
  %v1575 = vld [vmem:[#allocation3] sm:$0xff]
  %1576 = vrot.lane.b32.xlu0 %v547, 112
  %v1577 = vpop.permute.xlu0 %1576
  %vm1579 = vcmask 654336
  %v1581 = vsel %vm1579, %v1575, 0
  %1583 = vmatpush.msra.mxu0 0.0
  %1584 = vmatpush.msra.mxu0 0.0
  %1585 = vmatpush.msra.mxu0 0.0
  %1586 = vmatpush.msra.mxu0 0.0
  %1587 = vmatpush.msra.mxu0 0.0
  %1588 = vmatpush.msra.mxu0 0.0
  %1589 = vmatpush.msra.mxu0 %v71
  %1590 = vmatpush.msra.mxu0 %v70
  %1591 = vmatpush.msra.mxu0 %v69
  %1592 = vmatpush.msra.mxu0 %v68
  %1593 = vmatpush.msra.mxu0 %v67
  %1594 = vmatpush.msra.mxu0 %v66
  %1595 = vmatpush.msra.mxu0 %v65
  %1596 = vmatpush.msra.mxu0 %v64
  %1597 = vmatpush.msra.mxu0 %v63
  %1598 = vmatpush.msra.mxu0 %v62
  %1599 = vmatmul.f32.gmra.mxu0 %v1581
  %v1600 = vpop.f32.mrf.mxu0
  %v1601 = vadd.f32 %v1577, %v1600
  %1602 = vdwg.mxu0
  %v1603 = vmax.f32 %v1601, 0.0
  %vm1604 = vcmask 31744
  %1605 = vst.msk [vmem:[#allocation4] sm:$0xff] %vm1604, %v1603
  %v1606 = vld [vmem:[#allocation3] sm:$0xff]
  %v1607 = vld [vmem:[#allocation3 + $0x8] sm:$0xff]
  %1610 = vrot.lane.b32.xlu0 %v1606, 64
  %v1611 = vpop.permute.xlu0 %1610
  %1612 = vrot.lane.b32.xlu0 %v1607, 64
  %v1613 = vpop.permute.xlu0 %1612
  %v1614 = vsel %vm111, %v1611, %v1613
  %v1615 = vsel %vm1579, %v1614, 0
  %1617 = vmatpush.msra.mxu0 0.0
  %1618 = vmatpush.msra.mxu0 0.0
  %1619 = vmatpush.msra.mxu0 0.0
  %1620 = vmatpush.msra.mxu0 0.0
  %1621 = vmatpush.msra.mxu0 0.0
  %1622 = vmatpush.msra.mxu0 0.0
  %1623 = vmatpush.msra.mxu0 %v71
  %1624 = vmatpush.msra.mxu0 %v70
  %1625 = vmatpush.msra.mxu0 %v69
  %1626 = vmatpush.msra.mxu0 %v68
  %1627 = vmatpush.msra.mxu0 %v67
  %1628 = vmatpush.msra.mxu0 %v66
  %1629 = vmatpush.msra.mxu0 %v65
  %1630 = vmatpush.msra.mxu0 %v64
  %1631 = vmatpush.msra.mxu0 %v63
  %1632 = vmatpush.msra.mxu0 %v62
  %1633 = vmatmul.f32.gmra.mxu0 %v1615
  %v1634 = vpop.f32.mrf.mxu0
  %v1635 = vadd.f32 %v1577, %v1634
  %1636 = vdwg.mxu0
  %v1637 = vmax.f32 %v1635, 0.0
  %1639 = vrot.lane.b32.xlu0 %v1637, 4
  %v1640 = vpop.permute.xlu0 %1639
  %vm1642 = vcmask 64544
  %1643 = vst.msk [vmem:[#allocation4] sm:$0xff] %vm1642, %v1640
  %v1644 = vld [vmem:[#allocation3 + $0x8] sm:$0xff]
  %v1646 = vsel %vm1579, %v1644, 0
  %1648 = vmatpush.msra.mxu0 0.0
  %1649 = vmatpush.msra.mxu0 0.0
  %1650 = vmatpush.msra.mxu0 0.0
  %1651 = vmatpush.msra.mxu0 0.0
  %1652 = vmatpush.msra.mxu0 0.0
  %1653 = vmatpush.msra.mxu0 0.0
  %1654 = vmatpush.msra.mxu0 %v71
  %1655 = vmatpush.msra.mxu0 %v70
  %1656 = vmatpush.msra.mxu0 %v69
  %1657 = vmatpush.msra.mxu0 %v68
  %1658 = vmatpush.msra.mxu0 %v67
  %1659 = vmatpush.msra.mxu0 %v66
  %1660 = vmatpush.msra.mxu0 %v65
  %1661 = vmatpush.msra.mxu0 %v64
  %1662 = vmatpush.msra.mxu0 %v63
  %1663 = vmatpush.msra.mxu0 %v62
  %1664 = vmatmul.f32.gmra.mxu0 %v1646
  %v1665 = vpop.f32.mrf.mxu0
  %v1666 = vadd.f32 %v1577, %v1665
  %1667 = vdwg.mxu0
  %v1668 = vmax.f32 %v1666, 0.0
  %1670 = vrot.lane.b32.xlu0 %v1668, 8
  %v1671 = vpop.permute.xlu0 %1670
  %vm1673 = vcmask 97344
  %1674 = vst.msk [vmem:[#allocation4] sm:$0xff] %vm1673, %v1671
  %v1675 = vld [vmem:[#allocation3 + $0x8] sm:$0xff]
  %v1676 = vld [vmem:[#allocation3 + $0x10] sm:$0xff]
  %1679 = vrot.lane.b32.xlu0 %v1675, 64
  %v1680 = vpop.permute.xlu0 %1679
  %1681 = vrot.lane.b32.xlu0 %v1676, 64
  %v1682 = vpop.permute.xlu0 %1681
  %v1683 = vsel %vm111, %v1680, %v1682
  %v1684 = vsel %vm1579, %v1683, 0
  %1686 = vmatpush.msra.mxu0 0.0
  %1687 = vmatpush.msra.mxu0 0.0
  %1688 = vmatpush.msra.mxu0 0.0
  %1689 = vmatpush.msra.mxu0 0.0
  %1690 = vmatpush.msra.mxu0 0.0
  %1691 = vmatpush.msra.mxu0 0.0
  %1692 = vmatpush.msra.mxu0 %v71
  %1693 = vmatpush.msra.mxu0 %v70
  %1694 = vmatpush.msra.mxu0 %v69
  %1695 = vmatpush.msra.mxu0 %v68
  %1696 = vmatpush.msra.mxu0 %v67
  %1697 = vmatpush.msra.mxu0 %v66
  %1698 = vmatpush.msra.mxu0 %v65
  %1699 = vmatpush.msra.mxu0 %v64
  %1700 = vmatpush.msra.mxu0 %v63
  %1701 = vmatpush.msra.mxu0 %v62
  %1702 = vmatmul.f32.gmra.mxu0 %v1684
  %v1703 = vpop.f32.mrf.mxu0
  %v1704 = vadd.f32 %v1577, %v1703
  %1705 = vdwg.mxu0
  %v1706 = vmax.f32 %v1704, 0.0
  %1708 = vrot.lane.b32.xlu0 %v1706, 12
  %v1709 = vpop.permute.xlu0 %1708
  %vm1711 = vcmask 130144
  %1712 = vst.msk [vmem:[#allocation4] sm:$0xff] %vm1711, %v1709
  %v1713 = vld [vmem:[#allocation3 + $0x10] sm:$0xff]
  %v1715 = vsel %vm1579, %v1713, 0
  %1717 = vmatpush.msra.mxu0 0.0
  %1718 = vmatpush.msra.mxu0 0.0
  %1719 = vmatpush.msra.mxu0 0.0
  %1720 = vmatpush.msra.mxu0 0.0
  %1721 = vmatpush.msra.mxu0 0.0
  %1722 = vmatpush.msra.mxu0 0.0
  %1723 = vmatpush.msra.mxu0 %v71
  %1724 = vmatpush.msra.mxu0 %v70
  %1725 = vmatpush.msra.mxu0 %v69
  %1726 = vmatpush.msra.mxu0 %v68
  %1727 = vmatpush.msra.mxu0 %v67
  %1728 = vmatpush.msra.mxu0 %v66
  %1729 = vmatpush.msra.mxu0 %v65
  %1730 = vmatpush.msra.mxu0 %v64
  %1731 = vmatpush.msra.mxu0 %v63
  %1732 = vmatpush.msra.mxu0 %v62
  %1733 = vmatmul.f32.gmra.mxu0 %v1715
  %v1734 = vpop.f32.mrf.mxu0
  %v1735 = vadd.f32 %v1577, %v1734
  %1736 = vdwg.mxu0
  %v1737 = vmax.f32 %v1735, 0.0
  %1739 = vrot.lane.b32.xlu0 %v1737, 16
  %v1740 = vpop.permute.xlu0 %1739
  %vm1742 = vcmask 162944
  %1743 = vst.msk [vmem:[#allocation4] sm:$0xff] %vm1742, %v1740
  %v1744 = vld [vmem:[#allocation3 + $0x10] sm:$0xff]
  %v1745 = vld [vmem:[#allocation3 + $0x18] sm:$0xff]
  %1748 = vrot.lane.b32.xlu0 %v1744, 64
  %v1749 = vpop.permute.xlu0 %1748
  %1750 = vrot.lane.b32.xlu0 %v1745, 64
  %v1751 = vpop.permute.xlu0 %1750
  %v1752 = vsel %vm111, %v1749, %v1751
  %v1753 = vsel %vm1579, %v1752, 0
  %1755 = vmatpush.msra.mxu0 0.0
  %1756 = vmatpush.msra.mxu0 0.0
  %1757 = vmatpush.msra.mxu0 0.0
  %1758 = vmatpush.msra.mxu0 0.0
  %1759 = vmatpush.msra.mxu0 0.0
  %1760 = vmatpush.msra.mxu0 0.0
  %1761 = vmatpush.msra.mxu0 %v71
  %1762 = vmatpush.msra.mxu0 %v70
  %1763 = vmatpush.msra.mxu0 %v69
  %1764 = vmatpush.msra.mxu0 %v68
  %1765 = vmatpush.msra.mxu0 %v67
  %1766 = vmatpush.msra.mxu0 %v66
  %1767 = vmatpush.msra.mxu0 %v65
  %1768 = vmatpush.msra.mxu0 %v64
  %1769 = vmatpush.msra.mxu0 %v63
  %1770 = vmatpush.msra.mxu0 %v62
  %1771 = vmatmul.f32.gmra.mxu0 %v1753
  %v1772 = vpop.f32.mrf.mxu0
  %v1773 = vadd.f32 %v1577, %v1772
  %1774 = vdwg.mxu0
  %v1775 = vmax.f32 %v1773, 0.0
  %1777 = vrot.lane.b32.xlu0 %v1775, 20
  %v1778 = vpop.permute.xlu0 %1777
  %vm1780 = vcmask 195744
  %1781 = vst.msk [vmem:[#allocation4] sm:$0xff] %vm1780, %v1778
  %v1782 = vld [vmem:[#allocation3 + $0x18] sm:$0xff]
  %v1784 = vsel %vm1579, %v1782, 0
  %1786 = vmatpush.msra.mxu0 0.0
  %1787 = vmatpush.msra.mxu0 0.0
  %1788 = vmatpush.msra.mxu0 0.0
  %1789 = vmatpush.msra.mxu0 0.0
  %1790 = vmatpush.msra.mxu0 0.0
  %1791 = vmatpush.msra.mxu0 0.0
  %1792 = vmatpush.msra.mxu0 %v71
  %1793 = vmatpush.msra.mxu0 %v70
  %1794 = vmatpush.msra.mxu0 %v69
  %1795 = vmatpush.msra.mxu0 %v68
  %1796 = vmatpush.msra.mxu0 %v67
  %1797 = vmatpush.msra.mxu0 %v66
  %1798 = vmatpush.msra.mxu0 %v65
  %1799 = vmatpush.msra.mxu0 %v64
  %1800 = vmatpush.msra.mxu0 %v63
  %1801 = vmatpush.msra.mxu0 %v62
  %1802 = vmatmul.f32.gmra.mxu0 %v1784
  %v1803 = vpop.f32.mrf.mxu0
  %v1804 = vadd.f32 %v1577, %v1803
  %1805 = vdwg.mxu0
  %v1806 = vmax.f32 %v1804, 0.0
  %1808 = vrot.lane.b32.xlu0 %v1806, 24
  %v1809 = vpop.permute.xlu0 %1808
  %vm1811 = vcmask 228544
  %1812 = vst.msk [vmem:[#allocation4] sm:$0xff] %vm1811, %v1809
  %v1813 = vld [vmem:[#allocation4] sm:$0xff]
  %v1814 = vld [vmem:[%s7] sm:$0xff]
  %v1815 = vld [vmem:[%s7 + $0x8] sm:$0xff]
  %v1816 = vld [vmem:[%s7 + $0x10] sm:$0xff]
  %v1817 = vld [vmem:[%s7 + $0x18] sm:$0xff]
  %v1818 = vld [vmem:[%s7 + $0x20] sm:$0xff]
  %v1819 = vld [vmem:[%s7 + $0x28] sm:$0xff]
  %v1820 = vld [vmem:[%s7 + $0x30] sm:$0xff]
  %v1821 = vld [vmem:[%s7 + $0x38] sm:$0xff]
  %1822 = vrot.lane.b32.xlu0 %v547, 108
  %v1823 = vpop.permute.xlu0 %1822
  %vm1825 = vcmask 228352
  %v1827 = vsel %vm1825, %v1813, 0
  %v1830 = vsel %vm1825, %v1814, 0
  %v1833 = vsel %vm1825, %v1815, 0
  %v1836 = vsel %vm1825, %v1816, 0
  %v1839 = vsel %vm1825, %v1817, 0
  %v1842 = vsel %vm1825, %v1818, 0
  %v1845 = vsel %vm1825, %v1819, 0
  %v1848 = vsel %vm1825, %v1820, 0
  %v1851 = vsel %vm1825, %v1821, 0
  %1853 = vmatpush.xpose.msra.mxu0 0.0
  %1854 = vmatpush.xpose.msra.mxu0 0.0
  %1855 = vmatpush.xpose.msra.mxu0 0.0
  %1856 = vmatpush.xpose.msra.mxu0 0.0
  %1857 = vmatpush.xpose.msra.mxu0 0.0
  %1858 = vmatpush.xpose.msra.mxu0 0.0
  %1859 = vmatpush.xpose.msra.mxu0 0.0
  %1860 = vmatpush.xpose.msra.mxu0 0.0
  %1861 = vmatpush.xpose.msra.mxu0 %v1851
  %1862 = vmatpush.xpose.msra.mxu0 %v1848
  %1863 = vmatpush.xpose.msra.mxu0 %v1845
  %1864 = vmatpush.xpose.msra.mxu0 %v1842
  %1865 = vmatpush.xpose.msra.mxu0 %v1839
  %1866 = vmatpush.xpose.msra.mxu0 %v1836
  %1867 = vmatpush.xpose.msra.mxu0 %v1833
  %1868 = vmatpush.xpose.msra.mxu0 %v1830
  %1869 = vmatmul.f32.gmra.mxu0 %v1827
  %v1870 = vpop.f32.mrf.mxu0
  %v1871 = vadd.f32 %v1823, %v1870
  %1872 = vdwg.mxu0
  %v1873 = vmax.f32 %v1871, 0.0
  %v1874 = vld [vmem:[%s8] sm:$0xff]
  %v1875 = vld [vmem:[%s9] sm:$0xff]
  %1877 = vset.pattern.permute.xlu0 0
  %1878 = vperm.xlu0 %1877, %v1875
  %v1879 = vpop.permute.xlu0 %1878
  %v1882 = vsel %vm111, %v1874, 0
  %v1885 = vsel %vm111, %v1873, 0
  %1887 = vmatpush.xpose.msra.mxu0 0.0
  %1888 = vmatpush.xpose.msra.mxu0 0.0
  %1889 = vmatpush.xpose.msra.mxu0 0.0
  %1890 = vmatpush.xpose.msra.mxu0 0.0
  %1891 = vmatpush.xpose.msra.mxu0 0.0
  %1892 = vmatpush.xpose.msra.mxu0 0.0
  %1893 = vmatpush.xpose.msra.mxu0 0.0
  %1894 = vmatpush.xpose.msra.mxu0 0.0
  %1895 = vmatpush.xpose.msra.mxu0 0.0
  %1896 = vmatpush.xpose.msra.mxu0 0.0
  %1897 = vmatpush.xpose.msra.mxu0 0.0
  %1898 = vmatpush.xpose.msra.mxu0 0.0
  %1899 = vmatpush.xpose.msra.mxu0 0.0
  %1900 = vmatpush.xpose.msra.mxu0 0.0
  %1901 = vmatpush.xpose.msra.mxu0 0.0
  %1902 = vmatpush.xpose.msra.mxu0 %v1885
  %1903 = vmatmul.f32.gmra.mxu0 %v1882
  %v1904 = vpop.f32.mrf.mxu0
  %v1905 = vadd.f32 %v1879, %v1904
  %1906 = vdwg.mxu0
  %vm1907 = vcmask 64512
  %1908 = vst.msk [vmem:[%s10] sm:$0xff] %vm1907, %v1905
  // Predicated region
  $region42: #{decoder_forward.1} parent=0 // pred_check
    _
  $region43: #{decoder_forward.1} parent=0 // pred_check_branch
    %1910 = sbr.rel (0) target = $region45
  $region44: #{decoder_forward.1} parent=0 // pred_region
    _
  $region45: #{decoder_forward.1} parent=0 // pred_fallthru
    _
  // Predicated region
  $region46: #{decoder_forward.1} parent=0 // pred_check
    _
  $region47: #{decoder_forward.1} parent=0 // pred_check_branch
    %1912 = sbr.rel (0) target = $region49
  $region48: #{decoder_forward.1} parent=0 // pred_region
    _
  $region49: #{decoder_forward.1} parent=0 // pred_fallthru
    _

</llo_original>
